<compile_context>
chip_gen: v6e
topology: v6e:2x2x1
jax: 0.10.0
libtpu: 0.0.40
codegen_flags: <defaults>
</compile_context>

<pallas_src>
import jax
import jax.numpy as jnp
from jax import lax
from jax.experimental import pallas as pl
from jax.experimental.pallas import tpu as pltpu

EPS = 1e-5
CP = 128                       # lane-dense padded channel width
VMEM_LIMIT = 32 * 1024 * 1024


# ------------------------------ JAX glue -------------------------------------

def _im2col_s2(x_nhwc, kh, kw, stride, pad):
    """Patches for the strided conv -> (N*Ho*Wo, kh*kw*C), tap-major, chan-minor."""
    N, H, W, C = x_nhwc.shape
    xp = jnp.pad(x_nhwc, ((0, 0), (pad, pad), (pad, pad), (0, 0)))
    Ho = (H + 2 * pad - kh) // stride + 1
    Wo = (W + 2 * pad - kw) // stride + 1
    cols = []
    for i in range(kh):
        for j in range(kw):
            cols.append(xp[:, i:i + stride * Ho:stride, j:j + stride * Wo:stride, :])
    patches = jnp.concatenate(cols, axis=-1)
    return patches.reshape(N * Ho * Wo, kh * kw * C), (N, Ho, Wo)


def _pick_tile(m, target=512):
    """Largest multiple of 8 that divides m and is <= target."""
    t = min(target, m)
    t -= t % 8
    while t > 8 and m % t:
        t -= 8
    return t


def _bn_affine(stats, count, gamma, beta):
    """Finalize BN scale/shift from per-tile (sum, sumsq) partials (tiny JAX)."""
    s = jnp.sum(stats[:, 0, :], axis=0)
    q = jnp.sum(stats[:, 1, :], axis=0)
    mean = s / count
    var = jnp.maximum(q / count - mean * mean, 0.0)
    scale = gamma * lax.rsqrt(var + EPS)
    shift = beta - mean * scale
    return scale, shift


def residual_block_diff(x_nchw, params, *, tile_m_target=512):
    """Forward of ResidualBlock_diff. Input/output are NCHW like PyTorch."""
    (w1, b1, g1, be1,           # left conv1 (3x3/s2/p1) + BN1
     w2, b2, g2, be2,           # left conv2 (3x3/s1/p1) + BN2
     wr, br, gr, ber) = params  # right conv (1x1/s2)    + BNr

    x = jnp.transpose(x_nchw, (0, 2, 3, 1)).astype(jnp.float32)   # NCHW -> NHWC
    N, H, W, Cin = x.shape
    Cout = w1.shape[-1]
    assert Cout <= CP

    # ---- host-side layout plumbing (stride-2 im2col, unpadded K = 9*Cin) -----
    p1, (N_, Ho, Wo) = _im2col_s2(x, 3, 3, stride=2, pad=1)
    M = N_ * Ho * Wo
    HoWo = Ho * Wo
    K1 = 9 * Cin
    KP = ((K1 + 127) // 128) * 128          # K padded to 128 only inside VMEM
    assert M % 8 == 0 and HoWo % 8 == 0
    tile_m = _pick_tile(M, tile_m_target)
    T1 = M // tile_m
    p1 = p1.astype(jnp.bfloat16)

    # fused weights for [conv1 | conv_right]: the 1x1/s2 right conv reads exactly
    # the centre tap (tap 4) of the 3x3/s2 patches, so both share p1.
    wcat = jnp.zeros((KP, 2 * CP), jnp.float32)
    wcat = wcat.at[:K1, :Cout].set(w1.reshape(K1, Cout))
    wcat = wcat.at[4 * Cin:5 * Cin, CP:CP + Cout].set(wr.reshape(Cin, Cout))
    wcat = wcat.astype(jnp.bfloat16)

    prm1 = jnp.zeros((8, 2 * CP), jnp.float32)                    # row0 = [b1 | br]
    prm1 = prm1.at[0, :Cout].set(b1).at[0, CP:CP + Cout].set(br)

    # ---- stage 1: fused (conv1 | conv_right) matmul + BN partial stats -------
    def stage1_kernel(p_ref, w_ref, prm_ref, yl_ref, yr_ref, st_ref, pk_ref):
        # zero-pad K to the 128-aligned KP inside VMEM (HBM keeps only 9*Cin lanes)
        pk_ref[...] = jnp.zeros_like(pk_ref)
        pk_ref[:, :K1] = p_ref[...]
        y = jnp.dot(pk_ref[...], w_ref[...], preferred_element_type=jnp.float32)
        y = y + prm_ref[0:1, :]
        yl_ref[...] = y[:, :CP].astype(jnp.bfloat16)
        yr_ref[...] = y[:, CP:].astype(jnp.bfloat16)
        st_ref[:, 0:1, :] = jnp.sum(y, axis=0, keepdims=True).reshape(1, 1, 2 * CP)
        st_ref[:, 1:2, :] = jnp.sum(y * y, axis=0, keepdims=True).reshape(1, 1, 2 * CP)

    yl, yr, stats1 = pl.pallas_call(
        stage1_kernel,
        grid=(T1,),
        in_specs=[
            pl.BlockSpec((tile_m, K1), lambda i: (i, 0)),
            pl.BlockSpec((KP, 2 * CP), lambda i: (0, 0)),
            pl.BlockSpec((8, 2 * CP), lambda i: (0, 0)),
        ],
        out_specs=(
            pl.BlockSpec((tile_m, CP), lambda i: (i, 0)),
            pl.BlockSpec((tile_m, CP), lambda i: (i, 0)),
            pl.BlockSpec((1, 2, 2 * CP), lambda i: (i, 0, 0)),
        ),
        out_shape=(
            jax.ShapeDtypeStruct((M, CP), jnp.bfloat16),      # conv1 raw (left)
            jax.ShapeDtypeStruct((M, CP), jnp.bfloat16),      # right conv raw
            jax.ShapeDtypeStruct((T1, 2, 2 * CP), jnp.float32),
        ),
        scratch_shapes=[pltpu.VMEM((tile_m, KP), jnp.bfloat16)],
        compiler_params=pltpu.CompilerParams(
            dimension_semantics=("parallel",),
            vmem_limit_bytes=VMEM_LIMIT),
    )(p1, wcat, prm1)

    # finalize BN1 / BNr affine from the tiny per-tile partials.
    gcat = jnp.zeros((2 * CP,), jnp.float32).at[:Cout].set(g1).at[CP:CP + Cout].set(gr)
    bcat = jnp.zeros((2 * CP,), jnp.float32).at[:Cout].set(be1).at[CP:CP + Cout].set(ber)
    scale1, shift1 = _bn_affine(stats1, M, gcat, bcat)

    # per-channel params consumed by stage 2: BN1 affine (left half) + conv2 bias.
    p2 = jnp.zeros((8, CP), jnp.float32)
    p2 = p2.at[0].set(scale1[:CP]).at[1].set(shift1[:CP]).at[2, :Cout].set(b2)

    w2p = jnp.zeros((3, 3, CP, CP), jnp.float32).at[:, :, :Cout, :Cout].set(w2)
    w2taps = w2p.reshape(9, CP, CP).astype(jnp.bfloat16)

    # ---- stage 2: in-kernel 3x3/s1 conv (halo built in VMEM) + BN2 partials --
    # Batch B images per grid step so the matmul M-dim is >= 256 when N allows.
    B = 1
    while B < N_ and N_ % (2 * B) == 0 and B * HoWo < 256 and 2 * B * HoWo <= 2048:
        B *= 2
    G = N_ // B
    HP, WP = Ho + 2, Wo + 2
    y1n = yl.reshape(N_, Ho, Wo, CP)            # free reshape (layout unchanged)

    def stage2_kernel(y1_ref, w2_ref, p2_ref, y2_ref, st_ref, apad_ref):
        scale = p2_ref[0:1, :].reshape(1, 1, 1, CP)
        shift = p2_ref[1:2, :].reshape(1, 1, 1, CP)
        # BN1 affine + ReLU in f32; single bf16 cast hoisted out of the tap loop.
        a = jnp.maximum(y1_ref[...].astype(jnp.float32) * scale + shift, 0.0)
        # 1-pixel zero halo built in VMEM (no host-side jnp.pad HBM pass).
        apad_ref[...] = jnp.zeros_like(apad_ref)
        apad_ref[:, 1:1 + Ho, 1:1 + Wo, :] = a.astype(jnp.bfloat16)
        # 9 accumulating shifted-window matmuls.
        # TODO(synk): on v5e/v6e (FIFO MXU result path) fuse these into a single
        # (B*HoWo, 9*CP) x (9*CP, CP) matmul via a VMEM patch buffer.
        acc = jnp.zeros((B * HoWo, CP), jnp.float32)
        for t in range(9):
            di, dj = t // 3, t % 3
            patch = apad_ref[:, di:di + Ho, dj:dj + Wo, :].reshape(B * HoWo, CP)
            acc = acc + jnp.dot(patch, w2_ref[t],
                                preferred_element_type=jnp.float32)
        y2 = acc + p2_ref[2:3, :]
        y2_ref[...] = y2.astype(jnp.bfloat16)
        st_ref[:, 0:1, :] = jnp.sum(y2, axis=0, keepdims=True).reshape(1, 1, CP)
        st_ref[:, 1:2, :] = jnp.sum(y2 * y2, axis=0, keepdims=True).reshape(1, 1, CP)

    y2raw, stats2 = pl.pallas_call(
        stage2_kernel,
        grid=(G,),
        in_specs=[
            pl.BlockSpec((B, Ho, Wo, CP), lambda g: (g, 0, 0, 0)),
            pl.BlockSpec((9, CP, CP), lambda g: (0, 0, 0)),
            pl.BlockSpec((8, CP), lambda g: (0, 0)),
        ],
        out_specs=(
            pl.BlockSpec((B * HoWo, CP), lambda g: (g, 0)),
            pl.BlockSpec((1, 2, CP), lambda g: (g, 0, 0)),
        ),
        out_shape=(
            jax.ShapeDtypeStruct((M, CP), jnp.bfloat16),
            jax.ShapeDtypeStruct((G, 2, CP), jnp.float32),
        ),
        scratch_shapes=[pltpu.VMEM((B, HP, WP, CP), jnp.bfloat16)],
        compiler_params=pltpu.CompilerParams(
            dimension_semantics=("parallel",),
            vmem_limit_bytes=VMEM_LIMIT),
    )(y1n, w2taps, p2)

    # finalize BN2; pack final affines: lanes [0:CP] = left (BN2), [CP:] = right (BNr).
    g2p = jnp.zeros((CP,), jnp.float32).at[:Cout].set(g2)
    be2p = jnp.zeros((CP,), jnp.float32).at[:Cout].set(be2)
    scale2, shift2 = _bn_affine(stats2, M, g2p, be2p)

    aff = jnp.zeros((8, 2 * CP), jnp.float32)
    aff = aff.at[0, :CP].set(scale2).at[0, CP:].set(scale1[CP:])
    aff = aff.at[1, :CP].set(shift2).at[1, CP:].set(shift1[CP:])

    # ---- stage 3: BN2 / BNr affine + residual add + final ReLU (parallel) ----
    def stage3_kernel(y2_ref, yr_ref, aff_ref, o_ref):
        left = y2_ref[...].astype(jnp.float32) * aff_ref[0:1, :CP] + aff_ref[1:2, :CP]
        right = yr_ref[...].astype(jnp.float32) * aff_ref[0:1, CP:] + aff_ref[1:2, CP:]
        o_ref[...] = jnp.maximum(left + right, 0.0)

    out = pl.pallas_call(
        stage3_kernel,
        grid=(T1,),
        in_specs=[
            pl.BlockSpec((tile_m, CP), lambda i: (i, 0)),
            pl.BlockSpec((tile_m, CP), lambda i: (i, 0)),
            pl.BlockSpec((8, 2 * CP), lambda i: (0, 0)),
        ],
        out_specs=pl.BlockSpec((tile_m, CP), lambda i: (i, 0)),
        out_shape=jax.ShapeDtypeStruct((M, CP), jnp.float32),
        compiler_params=pltpu.CompilerParams(
            dimension_semantics=("parallel",),
            vmem_limit_bytes=VMEM_LIMIT),
    )(y2raw, yr, aff)

    out = out[:, :Cout].reshape(N_, Ho, Wo, Cout)
    return jnp.transpose(out, (0, 3, 1, 2))      # NHWC -> NCHW


# ------------------------------ reference (pure JAX, f32) ---------------------

def reference(x_nchw, params):
    (w1, b1, g1, be1, w2, b2, g2, be2, wr, br, gr, ber) = params
    x = jnp.transpose(x_nchw, (0, 2, 3, 1)).astype(jnp.float32)

    def conv(t, w, b, stride, pad):
        y = lax.conv_general_dilated(t, w, (stride, stride), [(pad, pad), (pad, pad)],
                                     dimension_numbers=('NHWC', 'HWIO', 'NHWC'))
        return y + b

    def bn(y, g, be):
        m = jnp.mean(y, axis=(0, 1, 2))
        v = jnp.mean((y - m) ** 2, axis=(0, 1, 2))
        return (y - m) * lax.rsqrt(v + EPS) * g + be

    left = jax.nn.relu(bn(conv(x, w1, b1, 2, 1), g1, be1))
    left = bn(conv(left, w2, b2, 1, 1), g2, be2)
    right = bn(conv(x, wr, br, 2, 0), gr, ber)
    out = jax.nn.relu(left + right)
    return jnp.transpose(out, (0, 3, 1, 2))


# ------------------------------ main ------------------------------------------

if __name__ == "__main__":
    N, Cin, H, W = 2, 4, 16, 16
    Cout = 8

    key = jax.random.PRNGKey(0)
    ks = jax.random.split(key, 13)
    # Conv weights in HWIO layout (kh, kw, Cin, Cout); BN affine params per channel.
    w1 = 0.1 * jax.random.normal(ks[0], (3, 3, Cin, Cout), jnp.float32)
    b1 = 0.1 * jax.random.normal(ks[1], (Cout,), jnp.float32)
    g1 = 1.0 + 0.1 * jax.random.normal(ks[2], (Cout,), jnp.float32)
    be1 = 0.1 * jax.random.normal(ks[3], (Cout,), jnp.float32)
    w2 = 0.1 * jax.random.normal(ks[4], (3, 3, Cout, Cout), jnp.float32)
    b2 = 0.1 * jax.random.normal(ks[5], (Cout,), jnp.float32)
    g2 = 1.0 + 0.1 * jax.random.normal(ks[6], (Cout,), jnp.float32)
    be2 = 0.1 * jax.random.normal(ks[7], (Cout,), jnp.float32)
    wr = 0.1 * jax.random.normal(ks[8], (1, 1, Cin, Cout), jnp.float32)
    br = 0.1 * jax.random.normal(ks[9], (Cout,), jnp.float32)
    gr = 1.0 + 0.1 * jax.random.normal(ks[10], (Cout,), jnp.float32)
    ber = 0.1 * jax.random.normal(ks[11], (Cout,), jnp.float32)
    params = (w1, b1, g1, be1, w2, b2, g2, be2, wr, br, gr, ber)

    x = jax.random.normal(ks[12], (N, Cin, H, W), jnp.float32)   # NCHW like PyTorch

    fwd = jax.jit(residual_block_diff)
    out = jax.block_until_ready(fwd(x, params))
    ref = jax.block_until_ready(reference(x, params))

    assert out.shape == (N, Cout, H // 2, W // 2), out.shape
    # bf16 matmul inputs / bf16 intermediates (f32 accumulate, f32 BN math).
    err = float(jnp.max(jnp.abs(out - ref)))
    assert jnp.allclose(out, ref, atol=5e-2, rtol=5e-2), err
    print("KERNEL_OK")
</pallas_src>

<mosaic_0001>
module attributes {stable_mosaic.version = 11 : i64} {
  func.func @stage1_kernel(%arg0: i32, %arg1: memref<128x36xbf16, #tpu.memory_space<vmem>>, %arg2: memref<128x256xbf16, #tpu.memory_space<vmem>>, %arg3: memref<8x256xf32, #tpu.memory_space<vmem>>, %arg4: memref<128x128xbf16, #tpu.memory_space<vmem>>, %arg5: memref<128x128xbf16, #tpu.memory_space<vmem>>, %arg6: memref<1x2x256xf32, #tpu.memory_space<vmem>>, %arg7: memref<128x128xbf16, #tpu.memory_space<vmem>>) attributes {dimension_semantics = [#tpu.dimension_semantics<parallel>], iteration_bounds = array<i64: 1>, scalar_prefetch = 0 : i64, scratch_operands = 1 : i64, tpu.core_type = #tpu.core_type<tc>, window_params = [{transform_indices = @transform_0, window_bounds = array<i64: 128, 36>}, {pipeline_mode = #tpu.pipeline_mode<synchronous>, transform_indices = @transform_1, window_bounds = array<i64: 128, 256>}, {pipeline_mode = #tpu.pipeline_mode<synchronous>, transform_indices = @transform_2, window_bounds = array<i64: 8, 256>}, {transform_indices = @transform_3, window_bounds = array<i64: 128, 128>}, {transform_indices = @transform_4, window_bounds = array<i64: 128, 128>}, {transform_indices = @transform_5, window_bounds = array<i64: 1, 2, 256>}]} {
    %cst = arith.constant 0.000000e+00 : bf16
    %0 = vector.broadcast %cst : bf16 to vector<128x128xbf16>
    %c0 = arith.constant 0 : index
    %c0_0 = arith.constant 0 : index
    %1 = vector.load %arg7[%c0, %c0_0] : memref<128x128xbf16, #tpu.memory_space<vmem>>, vector<128x128xbf16>
    tpu.vector_store %arg7[%c0, %c0_0], %0 {strides = array<i32>} : memref<128x128xbf16, #tpu.memory_space<vmem>>, vector<128x128xbf16>,
    %c0_1 = arith.constant 0 : index
    %c0_2 = arith.constant 0 : index
    %2 = vector.load %arg1[%c0_1, %c0_2] : memref<128x36xbf16, #tpu.memory_space<vmem>>, vector<128x36xbf16>
    %c0_3 = arith.constant 0 : index
    %c0_4 = arith.constant 0 : index
    %3 = vector.load %arg7[%c0_3, %c0_4] : memref<128x128xbf16, #tpu.memory_space<vmem>>, vector<128x36xbf16>
    tpu.vector_store %arg7[%c0_3, %c0_4], %2 {strides = array<i32>} : memref<128x128xbf16, #tpu.memory_space<vmem>>, vector<128x36xbf16>,
    %c0_5 = arith.constant 0 : index
    %c0_6 = arith.constant 0 : index
    %4 = vector.load %arg7[%c0_5, %c0_6] : memref<128x128xbf16, #tpu.memory_space<vmem>>, vector<128x128xbf16>
    %c0_7 = arith.constant 0 : index
    %c0_8 = arith.constant 0 : index
    %5 = vector.load %arg2[%c0_7, %c0_8] : memref<128x256xbf16, #tpu.memory_space<vmem>>, vector<128x256xbf16>
    %cst_9 = arith.constant dense<0.000000e+00> : vector<128x256xf32>
    %6 = tpu.matmul %4, %5, %cst_9 {dimension_numbers = #tpu.dot_dimension_numbers<[1], [0], [0], [1], [0, 0, 1, 1], [], []>} : vector<128x128xbf16>, vector<128x256xbf16>, vector<128x256xf32> -> vector<128x256xf32>
    %c0_10 = arith.constant 0 : index
    %c0_11 = arith.constant 0 : index
    %7 = vector.load %arg3[%c0_10, %c0_11] : memref<8x256xf32, #tpu.memory_space<vmem>>, vector<1x256xf32>
    %8 = vector.broadcast %7 : vector<1x256xf32> to vector<128x256xf32>
    %9 = arith.addf %6, %8 : vector<128x256xf32>
    %10 = vector.extract_strided_slice %9 {offsets = [0, 0], sizes = [128, 128], strides = [1, 1]} : vector<128x256xf32> to vector<128x128xf32>
    %11 = arith.truncf %10 : vector<128x128xf32> to vector<128x128xbf16>
    %c0_12 = arith.constant 0 : index
    %c0_13 = arith.constant 0 : index
    %12 = vector.load %arg4[%c0_12, %c0_13] : memref<128x128xbf16, #tpu.memory_space<vmem>>, vector<128x128xbf16>
    tpu.vector_store %arg4[%c0_12, %c0_13], %11 {strides = array<i32>} : memref<128x128xbf16, #tpu.memory_space<vmem>>, vector<128x128xbf16>,
    %13 = vector.extract_strided_slice %9 {offsets = [0, 128], sizes = [128, 128], strides = [1, 1]} : vector<128x256xf32> to vector<128x128xf32>
    %14 = arith.truncf %13 : vector<128x128xf32> to vector<128x128xbf16>
    %c0_14 = arith.constant 0 : index
    %c0_15 = arith.constant 0 : index
    %15 = vector.load %arg5[%c0_14, %c0_15] : memref<128x128xbf16, #tpu.memory_space<vmem>>, vector<128x128xbf16>
    tpu.vector_store %arg5[%c0_14, %c0_15], %14 {strides = array<i32>} : memref<128x128xbf16, #tpu.memory_space<vmem>>, vector<128x128xbf16>,
    %cst_16 = arith.constant dense<0.000000e+00> : vector<256xf32>
    %16 = vector.multi_reduction <add>, %9, %cst_16 [0] : vector<128x256xf32> to vector<256xf32>
    %17 = vector.shape_cast %16 : vector<256xf32> to vector<1x256xf32>
    %18 = vector.shape_cast %17 : vector<1x256xf32> to vector<1x1x256xf32>
    %c0_17 = arith.constant 0 : index
    %c0_18 = arith.constant 0 : index
    %c0_19 = arith.constant 0 : index
    %19 = vector.load %arg6[%c0_17, %c0_18, %c0_19] : memref<1x2x256xf32, #tpu.memory_space<vmem>>, vector<1x1x256xf32>
    tpu.vector_store %arg6[%c0_17, %c0_18, %c0_19], %18 {strides = array<i32>} : memref<1x2x256xf32, #tpu.memory_space<vmem>>, vector<1x1x256xf32>,
    %20 = arith.mulf %9, %9 : vector<128x256xf32>
    %cst_20 = arith.constant dense<0.000000e+00> : vector<256xf32>
    %21 = vector.multi_reduction <add>, %20, %cst_20 [0] : vector<128x256xf32> to vector<256xf32>
    %22 = vector.shape_cast %21 : vector<256xf32> to vector<1x256xf32>
    %23 = vector.shape_cast %22 : vector<1x256xf32> to vector<1x1x256xf32>
    %c0_21 = arith.constant 0 : index
    %c1 = arith.constant 1 : index
    %c0_22 = arith.constant 0 : index
    %24 = vector.load %arg6[%c0_21, %c1, %c0_22] : memref<1x2x256xf32, #tpu.memory_space<vmem>>, vector<1x1x256xf32>
    tpu.vector_store %arg6[%c0_21, %c1, %c0_22], %23 {strides = array<i32>} : memref<1x2x256xf32, #tpu.memory_space<vmem>>, vector<1x1x256xf32>,
    return
  }
  func.func @transform_0(%arg0: i32) -> (i32, i32) {
    %c0_i32 = arith.constant 0 : i32
    %c0_i32_0 = arith.constant 0 : i32
    return %arg0, %c0_i32 : i32, i32
  }
  func.func @transform_1(%arg0: i32) -> (i32, i32) {
    %c0_i32 = arith.constant 0 : i32
    %c0_i32_0 = arith.constant 0 : i32
    %c0_i32_1 = arith.constant 0 : i32
    return %c0_i32, %c0_i32_0 : i32, i32
  }
  func.func @transform_2(%arg0: i32) -> (i32, i32) {
    %c0_i32 = arith.constant 0 : i32
    %c0_i32_0 = arith.constant 0 : i32
    %c0_i32_1 = arith.constant 0 : i32
    return %c0_i32, %c0_i32_0 : i32, i32
  }
  func.func @transform_3(%arg0: i32) -> (i32, i32) {
    %c0_i32 = arith.constant 0 : i32
    %c0_i32_0 = arith.constant 0 : i32
    return %arg0, %c0_i32 : i32, i32
  }
  func.func @transform_4(%arg0: i32) -> (i32, i32) {
    %c0_i32 = arith.constant 0 : i32
    %c0_i32_0 = arith.constant 0 : i32
    return %arg0, %c0_i32 : i32, i32
  }
  func.func @transform_5(%arg0: i32) -> (i32, i32, i32) {
    %c0_i32 = arith.constant 0 : i32
    %c0_i32_0 = arith.constant 0 : i32
    %c0_i32_1 = arith.constant 0 : i32
    return %arg0, %c0_i32, %c0_i32_0 : i32, i32, i32
  }
}

module attributes {stable_mosaic.version = 11 : i64} {
  func.func @stage2_kernel(%arg0: i32, %arg1: memref<2x8x8x128xbf16, #tpu.memory_space<vmem>>, %arg2: memref<9x128x128xbf16, #tpu.memory_space<vmem>>, %arg3: memref<8x128xf32, #tpu.memory_space<vmem>>, %arg4: memref<128x128xbf16, #tpu.memory_space<vmem>>, %arg5: memref<1x2x128xf32, #tpu.memory_space<vmem>>, %arg6: memref<2x10x10x128xbf16, #tpu.memory_space<vmem>>) attributes {dimension_semantics = [#tpu.dimension_semantics<parallel>], iteration_bounds = array<i64: 1>, scalar_prefetch = 0 : i64, scratch_operands = 1 : i64, tpu.core_type = #tpu.core_type<tc>, window_params = [{transform_indices = @transform_0, window_bounds = array<i64: 2, 8, 8, 128>}, {pipeline_mode = #tpu.pipeline_mode<synchronous>, transform_indices = @transform_1, window_bounds = array<i64: 9, 128, 128>}, {pipeline_mode = #tpu.pipeline_mode<synchronous>, transform_indices = @transform_2, window_bounds = array<i64: 8, 128>}, {transform_indices = @transform_3, window_bounds = array<i64: 128, 128>}, {transform_indices = @transform_4, window_bounds = array<i64: 1, 2, 128>}]} {
    %c0 = arith.constant 0 : index
    %c0_0 = arith.constant 0 : index
    %0 = vector.load %arg3[%c0, %c0_0] : memref<8x128xf32, #tpu.memory_space<vmem>>, vector<1x128xf32>
    %1 = vector.shape_cast %0 : vector<1x128xf32> to vector<1x1x1x128xf32>
    %c1 = arith.constant 1 : index
    %c0_1 = arith.constant 0 : index
    %2 = vector.load %arg3[%c1, %c0_1] : memref<8x128xf32, #tpu.memory_space<vmem>>, vector<1x128xf32>
    %3 = vector.shape_cast %2 : vector<1x128xf32> to vector<1x1x1x128xf32>
    %c0_2 = arith.constant 0 : index
    %c0_3 = arith.constant 0 : index
    %c0_4 = arith.constant 0 : index
    %c0_5 = arith.constant 0 : index
    %4 = vector.load %arg1[%c0_2, %c0_3, %c0_4, %c0_5] : memref<2x8x8x128xbf16, #tpu.memory_space<vmem>>, vector<2x8x8x128xbf16>
    %5 = arith.extf %4 : vector<2x8x8x128xbf16> to vector<2x8x8x128xf32>
    %6 = vector.broadcast %1 : vector<1x1x1x128xf32> to vector<2x8x8x128xf32>
    %7 = arith.mulf %5, %6 : vector<2x8x8x128xf32>
    %8 = vector.broadcast %3 : vector<1x1x1x128xf32> to vector<2x8x8x128xf32>
    %9 = arith.addf %7, %8 : vector<2x8x8x128xf32>
    %cst = arith.constant 0.000000e+00 : f32
    %10 = vector.broadcast %cst : f32 to vector<2x8x8x128xf32>
    %11 = arith.maximumf %9, %10 : vector<2x8x8x128xf32>
    %cst_6 = arith.constant 0.000000e+00 : bf16
    %12 = vector.broadcast %cst_6 : bf16 to vector<2x10x10x128xbf16>
    %c0_7 = arith.constant 0 : index
    %c0_8 = arith.constant 0 : index
    %c0_9 = arith.constant 0 : index
    %c0_10 = arith.constant 0 : index
    %13 = vector.load %arg6[%c0_7, %c0_8, %c0_9, %c0_10] : memref<2x10x10x128xbf16, #tpu.memory_space<vmem>>, vector<2x10x10x128xbf16>
    tpu.vector_store %arg6[%c0_7, %c0_8, %c0_9, %c0_10], %12 {strides = array<i32>} : memref<2x10x10x128xbf16, #tpu.memory_space<vmem>>, vector<2x10x10x128xbf16>,
    %14 = arith.truncf %11 : vector<2x8x8x128xf32> to vector<2x8x8x128xbf16>
    %c0_11 = arith.constant 0 : index
    %c1_12 = arith.constant 1 : index
    %c1_13 = arith.constant 1 : index
    %c0_14 = arith.constant 0 : index
    %15 = vector.load %arg6[%c0_11, %c1_12, %c1_13, %c0_14] : memref<2x10x10x128xbf16, #tpu.memory_space<vmem>>, vector<2x8x8x128xbf16>
    tpu.vector_store %arg6[%c0_11, %c1_12, %c1_13, %c0_14], %14 {strides = array<i32>} : memref<2x10x10x128xbf16, #tpu.memory_space<vmem>>, vector<2x8x8x128xbf16>,
    %cst_15 = arith.constant 0.000000e+00 : f32
    %16 = vector.broadcast %cst_15 : f32 to vector<128x128xf32>
    %c0_16 = arith.constant 0 : index
    %c0_17 = arith.constant 0 : index
    %c0_18 = arith.constant 0 : index
    %c0_19 = arith.constant 0 : index
    %17 = vector.load %arg6[%c0_16, %c0_17, %c0_18, %c0_19] : memref<2x10x10x128xbf16, #tpu.memory_space<vmem>>, vector<2x8x8x128xbf16>
    %18 = vector.shape_cast %17 : vector<2x8x8x128xbf16> to vector<128x128xbf16>
    %c0_20 = arith.constant 0 : index
    %c0_21 = arith.constant 0 : index
    %c0_22 = arith.constant 0 : index
    %19 = vector.load %arg2[%c0_20, %c0_21, %c0_22] : memref<9x128x128xbf16, #tpu.memory_space<vmem>>, vector<1x128x128xbf16>
    %20 = vector.shape_cast %19 : vector<1x128x128xbf16> to vector<128x128xbf16>
    %cst_23 = arith.constant dense<0.000000e+00> : vector<128x128xf32>
    %21 = tpu.matmul %18, %20, %cst_23 {dimension_numbers = #tpu.dot_dimension_numbers<[1], [0], [0], [1], [0, 0, 1, 1], [], []>} : vector<128x128xbf16>, vector<128x128xbf16>, vector<128x128xf32> -> vector<128x128xf32>
    %22 = arith.addf %16, %21 : vector<128x128xf32>
    %c0_24 = arith.constant 0 : index
    %c0_25 = arith.constant 0 : index
    %c1_26 = arith.constant 1 : index
    %c0_27 = arith.constant 0 : index
    %23 = vector.load %arg6[%c0_24, %c0_25, %c1_26, %c0_27] : memref<2x10x10x128xbf16, #tpu.memory_space<vmem>>, vector<2x8x8x128xbf16>
    %24 = vector.shape_cast %23 : vector<2x8x8x128xbf16> to vector<128x128xbf16>
    %c1_28 = arith.constant 1 : index
    %c0_29 = arith.constant 0 : index
    %c0_30 = arith.constant 0 : index
    %25 = vector.load %arg2[%c1_28, %c0_29, %c0_30] : memref<9x128x128xbf16, #tpu.memory_space<vmem>>, vector<1x128x128xbf16>
    %26 = vector.shape_cast %25 : vector<1x128x128xbf16> to vector<128x128xbf16>
    %cst_31 = arith.constant dense<0.000000e+00> : vector<128x128xf32>
    %27 = tpu.matmul %24, %26, %cst_31 {dimension_numbers = #tpu.dot_dimension_numbers<[1], [0], [0], [1], [0, 0, 1, 1], [], []>} : vector<128x128xbf16>, vector<128x128xbf16>, vector<128x128xf32> -> vector<128x128xf32>
    %28 = arith.addf %22, %27 : vector<128x128xf32>
    %c0_32 = arith.constant 0 : index
    %c0_33 = arith.constant 0 : index
    %c2 = arith.constant 2 : index
    %c0_34 = arith.constant 0 : index
    %29 = vector.load %arg6[%c0_32, %c0_33, %c2, %c0_34] : memref<2x10x10x128xbf16, #tpu.memory_space<vmem>>, vector<2x8x8x128xbf16>
    %30 = vector.shape_cast %29 : vector<2x8x8x128xbf16> to vector<128x128xbf16>
    %c2_35 = arith.constant 2 : index
    %c0_36 = arith.constant 0 : index
    %c0_37 = arith.constant 0 : index
    %31 = vector.load %arg2[%c2_35, %c0_36, %c0_37] : memref<9x128x128xbf16, #tpu.memory_space<vmem>>, vector<1x128x128xbf16>
    %32 = vector.shape_cast %31 : vector<1x128x128xbf16> to vector<128x128xbf16>
    %cst_38 = arith.constant dense<0.000000e+00> : vector<128x128xf32>
    %33 = tpu.matmul %30, %32, %cst_38 {dimension_numbers = #tpu.dot_dimension_numbers<[1], [0], [0], [1], [0, 0, 1, 1], [], []>} : vector<128x128xbf16>, vector<128x128xbf16>, vector<128x128xf32> -> vector<128x128xf32>
    %34 = arith.addf %28, %33 : vector<128x128xf32>
    %c0_39 = arith.constant 0 : index
    %c1_40 = arith.constant 1 : index
    %c0_41 = arith.constant 0 : index
    %c0_42 = arith.constant 0 : index
    %35 = vector.load %arg6[%c0_39, %c1_40, %c0_41, %c0_42] : memref<2x10x10x128xbf16, #tpu.memory_space<vmem>>, vector<2x8x8x128xbf16>
    %36 = vector.shape_cast %35 : vector<2x8x8x128xbf16> to vector<128x128xbf16>
    %c3 = arith.constant 3 : index
    %c0_43 = arith.constant 0 : index
    %c0_44 = arith.constant 0 : index
    %37 = vector.load %arg2[%c3, %c0_43, %c0_44] : memref<9x128x128xbf16, #tpu.memory_space<vmem>>, vector<1x128x128xbf16>
    %38 = vector.shape_cast %37 : vector<1x128x128xbf16> to vector<128x128xbf16>
    %cst_45 = arith.constant dense<0.000000e+00> : vector<128x128xf32>
    %39 = tpu.matmul %36, %38, %cst_45 {dimension_numbers = #tpu.dot_dimension_numbers<[1], [0], [0], [1], [0, 0, 1, 1], [], []>} : vector<128x128xbf16>, vector<128x128xbf16>, vector<128x128xf32> -> vector<128x128xf32>
    %40 = arith.addf %34, %39 : vector<128x128xf32>
    %c0_46 = arith.constant 0 : index
    %c1_47 = arith.constant 1 : index
    %c1_48 = arith.constant 1 : index
    %c0_49 = arith.constant 0 : index
    %41 = vector.load %arg6[%c0_46, %c1_47, %c1_48, %c0_49] : memref<2x10x10x128xbf16, #tpu.memory_space<vmem>>, vector<2x8x8x128xbf16>
    %42 = vector.shape_cast %41 : vector<2x8x8x128xbf16> to vector<128x128xbf16>
    %c4 = arith.constant 4 : index
    %c0_50 = arith.constant 0 : index
    %c0_51 = arith.constant 0 : index
    %43 = vector.load %arg2[%c4, %c0_50, %c0_51] : memref<9x128x128xbf16, #tpu.memory_space<vmem>>, vector<1x128x128xbf16>
    %44 = vector.shape_cast %43 : vector<1x128x128xbf16> to vector<128x128xbf16>
    %cst_52 = arith.constant dense<0.000000e+00> : vector<128x128xf32>
    %45 = tpu.matmul %42, %44, %cst_52 {dimension_numbers = #tpu.dot_dimension_numbers<[1], [0], [0], [1], [0, 0, 1, 1], [], []>} : vector<128x128xbf16>, vector<128x128xbf16>, vector<128x128xf32> -> vector<128x128xf32>
    %46 = arith.addf %40, %45 : vector<128x128xf32>
    %c0_53 = arith.constant 0 : index
    %c1_54 = arith.constant 1 : index
    %c2_55 = arith.constant 2 : index
    %c0_56 = arith.constant 0 : index
    %47 = vector.load %arg6[%c0_53, %c1_54, %c2_55, %c0_56] : memref<2x10x10x128xbf16, #tpu.memory_space<vmem>>, vector<2x8x8x128xbf16>
    %48 = vector.shape_cast %47 : vector<2x8x8x128xbf16> to vector<128x128xbf16>
    %c5 = arith.constant 5 : index
    %c0_57 = arith.constant 0 : index
    %c0_58 = arith.constant 0 : index
    %49 = vector.load %arg2[%c5, %c0_57, %c0_58] : memref<9x128x128xbf16, #tpu.memory_space<vmem>>, vector<1x128x128xbf16>
    %50 = vector.shape_cast %49 : vector<1x128x128xbf16> to vector<128x128xbf16>
    %cst_59 = arith.constant dense<0.000000e+00> : vector<128x128xf32>
    %51 = tpu.matmul %48, %50, %cst_59 {dimension_numbers = #tpu.dot_dimension_numbers<[1], [0], [0], [1], [0, 0, 1, 1], [], []>} : vector<128x128xbf16>, vector<128x128xbf16>, vector<128x128xf32> -> vector<128x128xf32>
    %52 = arith.addf %46, %51 : vector<128x128xf32>
    %c0_60 = arith.constant 0 : index
    %c2_61 = arith.constant 2 : index
    %c0_62 = arith.constant 0 : index
    %c0_63 = arith.constant 0 : index
    %53 = vector.load %arg6[%c0_60, %c2_61, %c0_62, %c0_63] : memref<2x10x10x128xbf16, #tpu.memory_space<vmem>>, vector<2x8x8x128xbf16>
    %54 = vector.shape_cast %53 : vector<2x8x8x128xbf16> to vector<128x128xbf16>
    %c6 = arith.constant 6 : index
    %c0_64 = arith.constant 0 : index
    %c0_65 = arith.constant 0 : index
    %55 = vector.load %arg2[%c6, %c0_64, %c0_65] : memref<9x128x128xbf16, #tpu.memory_space<vmem>>, vector<1x128x128xbf16>
    %56 = vector.shape_cast %55 : vector<1x128x128xbf16> to vector<128x128xbf16>
    %cst_66 = arith.constant dense<0.000000e+00> : vector<128x128xf32>
    %57 = tpu.matmul %54, %56, %cst_66 {dimension_numbers = #tpu.dot_dimension_numbers<[1], [0], [0], [1], [0, 0, 1, 1], [], []>} : vector<128x128xbf16>, vector<128x128xbf16>, vector<128x128xf32> -> vector<128x128xf32>
    %58 = arith.addf %52, %57 : vector<128x128xf32>
    %c0_67 = arith.constant 0 : index
    %c2_68 = arith.constant 2 : index
    %c1_69 = arith.constant 1 : index
    %c0_70 = arith.constant 0 : index
    %59 = vector.load %arg6[%c0_67, %c2_68, %c1_69, %c0_70] : memref<2x10x10x128xbf16, #tpu.memory_space<vmem>>, vector<2x8x8x128xbf16>
    %60 = vector.shape_cast %59 : vector<2x8x8x128xbf16> to vector<128x128xbf16>
    %c7 = arith.constant 7 : index
    %c0_71 = arith.constant 0 : index
    %c0_72 = arith.constant 0 : index
    %61 = vector.load %arg2[%c7, %c0_71, %c0_72] : memref<9x128x128xbf16, #tpu.memory_space<vmem>>, vector<1x128x128xbf16>
    %62 = vector.shape_cast %61 : vector<1x128x128xbf16> to vector<128x128xbf16>
    %cst_73 = arith.constant dense<0.000000e+00> : vector<128x128xf32>
    %63 = tpu.matmul %60, %62, %cst_73 {dimension_numbers = #tpu.dot_dimension_numbers<[1], [0], [0], [1], [0, 0, 1, 1], [], []>} : vector<128x128xbf16>, vector<128x128xbf16>, vector<128x128xf32> -> vector<128x128xf32>
    %64 = arith.addf %58, %63 : vector<128x128xf32>
    %c0_74 = arith.constant 0 : index
    %c2_75 = arith.constant 2 : index
    %c2_76 = arith.constant 2 : index
    %c0_77 = arith.constant 0 : index
    %65 = vector.load %arg6[%c0_74, %c2_75, %c2_76, %c0_77] : memref<2x10x10x128xbf16, #tpu.memory_space<vmem>>, vector<2x8x8x128xbf16>
    %66 = vector.shape_cast %65 : vector<2x8x8x128xbf16> to vector<128x128xbf16>
    %c8 = arith.constant 8 : index
    %c0_78 = arith.constant 0 : index
    %c0_79 = arith.constant 0 : index
    %67 = vector.load %arg2[%c8, %c0_78, %c0_79] : memref<9x128x128xbf16, #tpu.memory_space<vmem>>, vector<1x128x128xbf16>
    %68 = vector.shape_cast %67 : vector<1x128x128xbf16> to vector<128x128xbf16>
    %cst_80 = arith.constant dense<0.000000e+00> : vector<128x128xf32>
    %69 = tpu.matmul %66, %68, %cst_80 {dimension_numbers = #tpu.dot_dimension_numbers<[1], [0], [0], [1], [0, 0, 1, 1], [], []>} : vector<128x128xbf16>, vector<128x128xbf16>, vector<128x128xf32> -> vector<128x128xf32>
    %70 = arith.addf %64, %69 : vector<128x128xf32>
    %c2_81 = arith.constant 2 : index
    %c0_82 = arith.constant 0 : index
    %71 = vector.load %arg3[%c2_81, %c0_82] : memref<8x128xf32, #tpu.memory_space<vmem>>, vector<1x128xf32>
    %72 = vector.broadcast %71 : vector<1x128xf32> to vector<128x128xf32>
    %73 = arith.addf %70, %72 : vector<128x128xf32>
    %74 = arith.truncf %73 : vector<128x128xf32> to vector<128x128xbf16>
    %c0_83 = arith.constant 0 : index
    %c0_84 = arith.constant 0 : index
    %75 = vector.load %arg4[%c0_83, %c0_84] : memref<128x128xbf16, #tpu.memory_space<vmem>>, vector<128x128xbf16>
    tpu.vector_store %arg4[%c0_83, %c0_84], %74 {strides = array<i32>} : memref<128x128xbf16, #tpu.memory_space<vmem>>, vector<128x128xbf16>,
    %cst_85 = arith.constant dense<0.000000e+00> : vector<128xf32>
    %76 = vector.multi_reduction <add>, %73, %cst_85 [0] : vector<128x128xf32> to vector<128xf32>
    %77 = vector.shape_cast %76 : vector<128xf32> to vector<1x128xf32>
    %78 = vector.shape_cast %77 : vector<1x128xf32> to vector<1x1x128xf32>
    %c0_86 = arith.constant 0 : index
    %c0_87 = arith.constant 0 : index
    %c0_88 = arith.constant 0 : index
    %79 = vector.load %arg5[%c0_86, %c0_87, %c0_88] : memref<1x2x128xf32, #tpu.memory_space<vmem>>, vector<1x1x128xf32>
    tpu.vector_store %arg5[%c0_86, %c0_87, %c0_88], %78 {strides = array<i32>} : memref<1x2x128xf32, #tpu.memory_space<vmem>>, vector<1x1x128xf32>,
    %80 = arith.mulf %73, %73 : vector<128x128xf32>
    %cst_89 = arith.constant dense<0.000000e+00> : vector<128xf32>
    %81 = vector.multi_reduction <add>, %80, %cst_89 [0] : vector<128x128xf32> to vector<128xf32>
    %82 = vector.shape_cast %81 : vector<128xf32> to vector<1x128xf32>
    %83 = vector.shape_cast %82 : vector<1x128xf32> to vector<1x1x128xf32>
    %c0_90 = arith.constant 0 : index
    %c1_91 = arith.constant 1 : index
    %c0_92 = arith.constant 0 : index
    %84 = vector.load %arg5[%c0_90, %c1_91, %c0_92] : memref<1x2x128xf32, #tpu.memory_space<vmem>>, vector<1x1x128xf32>
    tpu.vector_store %arg5[%c0_90, %c1_91, %c0_92], %83 {strides = array<i32>} : memref<1x2x128xf32, #tpu.memory_space<vmem>>, vector<1x1x128xf32>,
    return
  }
  func.func @transform_0(%arg0: i32) -> (i32, i32, i32, i32) {
    %c0_i32 = arith.constant 0 : i32
    %c0_i32_0 = arith.constant 0 : i32
    %c0_i32_1 = arith.constant 0 : i32
    %c0_i32_2 = arith.constant 0 : i32
    return %arg0, %c0_i32, %c0_i32_0, %c0_i32_1 : i32, i32, i32, i32
  }
  func.func @transform_1(%arg0: i32) -> (i32, i32, i32) {
    %c0_i32 = arith.constant 0 : i32
    %c0_i32_0 = arith.constant 0 : i32
    %c0_i32_1 = arith.constant 0 : i32
    %c0_i32_2 = arith.constant 0 : i32
    return %c0_i32, %c0_i32_0, %c0_i32_1 : i32, i32, i32
  }
  func.func @transform_2(%arg0: i32) -> (i32, i32) {
    %c0_i32 = arith.constant 0 : i32
    %c0_i32_0 = arith.constant 0 : i32
    %c0_i32_1 = arith.constant 0 : i32
    return %c0_i32, %c0_i32_0 : i32, i32
  }
  func.func @transform_3(%arg0: i32) -> (i32, i32) {
    %c0_i32 = arith.constant 0 : i32
    %c0_i32_0 = arith.constant 0 : i32
    return %arg0, %c0_i32 : i32, i32
  }
  func.func @transform_4(%arg0: i32) -> (i32, i32, i32) {
    %c0_i32 = arith.constant 0 : i32
    %c0_i32_0 = arith.constant 0 : i32
    %c0_i32_1 = arith.constant 0 : i32
    return %arg0, %c0_i32, %c0_i32_0 : i32, i32, i32
  }
}

module attributes {stable_mosaic.version = 11 : i64} {
  func.func @stage3_kernel(%arg0: i32, %arg1: memref<128x128xbf16, #tpu.memory_space<vmem>>, %arg2: memref<128x128xbf16, #tpu.memory_space<vmem>>, %arg3: memref<8x256xf32, #tpu.memory_space<vmem>>, %arg4: memref<128x128xf32, #tpu.memory_space<vmem>>) attributes {dimension_semantics = [#tpu.dimension_semantics<parallel>], iteration_bounds = array<i64: 1>, scalar_prefetch = 0 : i64, scratch_operands = 0 : i64, tpu.core_type = #tpu.core_type<tc>, window_params = [{transform_indices = @transform_0, window_bounds = array<i64: 128, 128>}, {transform_indices = @transform_1, window_bounds = array<i64: 128, 128>}, {pipeline_mode = #tpu.pipeline_mode<synchronous>, transform_indices = @transform_2, window_bounds = array<i64: 8, 256>}, {transform_indices = @transform_3, window_bounds = array<i64: 128, 128>}]} {
    %c0 = arith.constant 0 : index
    %c0_0 = arith.constant 0 : index
    %0 = vector.load %arg1[%c0, %c0_0] : memref<128x128xbf16, #tpu.memory_space<vmem>>, vector<128x128xbf16>
    %1 = arith.extf %0 : vector<128x128xbf16> to vector<128x128xf32>
    %c0_1 = arith.constant 0 : index
    %c0_2 = arith.constant 0 : index
    %2 = vector.load %arg3[%c0_1, %c0_2] : memref<8x256xf32, #tpu.memory_space<vmem>>, vector<1x128xf32>
    %3 = vector.broadcast %2 : vector<1x128xf32> to vector<128x128xf32>
    %4 = arith.mulf %1, %3 : vector<128x128xf32>
    %c1 = arith.constant 1 : index
    %c0_3 = arith.constant 0 : index
    %5 = vector.load %arg3[%c1, %c0_3] : memref<8x256xf32, #tpu.memory_space<vmem>>, vector<1x128xf32>
    %6 = vector.broadcast %5 : vector<1x128xf32> to vector<128x128xf32>
    %7 = arith.addf %4, %6 : vector<128x128xf32>
    %c0_4 = arith.constant 0 : index
    %c0_5 = arith.constant 0 : index
    %8 = vector.load %arg2[%c0_4, %c0_5] : memref<128x128xbf16, #tpu.memory_space<vmem>>, vector<128x128xbf16>
    %9 = arith.extf %8 : vector<128x128xbf16> to vector<128x128xf32>
    %c0_6 = arith.constant 0 : index
    %c128 = arith.constant 128 : index
    %10 = vector.load %arg3[%c0_6, %c128] : memref<8x256xf32, #tpu.memory_space<vmem>>, vector<1x128xf32>
    %11 = vector.broadcast %10 : vector<1x128xf32> to vector<128x128xf32>
    %12 = arith.mulf %9, %11 : vector<128x128xf32>
    %c1_7 = arith.constant 1 : index
    %c128_8 = arith.constant 128 : index
    %13 = vector.load %arg3[%c1_7, %c128_8] : memref<8x256xf32, #tpu.memory_space<vmem>>, vector<1x128xf32>
    %14 = vector.broadcast %13 : vector<1x128xf32> to vector<128x128xf32>
    %15 = arith.addf %12, %14 : vector<128x128xf32>
    %16 = arith.addf %7, %15 : vector<128x128xf32>
    %cst = arith.constant 0.000000e+00 : f32
    %17 = vector.broadcast %cst : f32 to vector<128x128xf32>
    %18 = arith.maximumf %16, %17 : vector<128x128xf32>
    %c0_9 = arith.constant 0 : index
    %c0_10 = arith.constant 0 : index
    %19 = vector.load %arg4[%c0_9, %c0_10] : memref<128x128xf32, #tpu.memory_space<vmem>>, vector<128x128xf32>
    tpu.vector_store %arg4[%c0_9, %c0_10], %18 {strides = array<i32>} : memref<128x128xf32, #tpu.memory_space<vmem>>, vector<128x128xf32>,
    return
  }
  func.func @transform_0(%arg0: i32) -> (i32, i32) {
    %c0_i32 = arith.constant 0 : i32
    %c0_i32_0 = arith.constant 0 : i32
    return %arg0, %c0_i32 : i32, i32
  }
  func.func @transform_1(%arg0: i32) -> (i32, i32) {
    %c0_i32 = arith.constant 0 : i32
    %c0_i32_0 = arith.constant 0 : i32
    return %arg0, %c0_i32 : i32, i32
  }
  func.func @transform_2(%arg0: i32) -> (i32, i32) {
    %c0_i32 = arith.constant 0 : i32
    %c0_i32_0 = arith.constant 0 : i32
    %c0_i32_1 = arith.constant 0 : i32
    return %c0_i32, %c0_i32_0 : i32, i32
  }
  func.func @transform_3(%arg0: i32) -> (i32, i32) {
    %c0_i32 = arith.constant 0 : i32
    %c0_i32_0 = arith.constant 0 : i32
    return %arg0, %c0_i32 : i32, i32
  }
}

</mosaic_0001>

<llo_original>
// kernel: residual_block_diff.3
$region0: #{residual_block_diff.3}
  #allocation0 [shape = 'u32[]', space=smem, size = 0x4, offset = 0x4, fixed_abs, tag = 'smem constant byte address 0x4 - core index']
  #allocation1 [shape = 'u32[144,128]{1,0:T(1,128)}', space=vmem, size = 0x12000, scoped, tag = 'internal scratch']
  #allocation2 [shape = 'bf16[128,128]{1,0:T(8,128)(2,1)}', space=vmem, size = 0x8000, scoped, tag = 'scratch operand']
  %s0 = inlined_call_operand.vmem [shape: bf16[128,36], index: 0, kind: input, shape index: {}]
  %s1 = inlined_call_operand.vmem [shape: bf16[128,256], index: 1, kind: input, shape index: {}]
  %s2 = inlined_call_operand.vmem [shape: f32[8,256], index: 2, kind: input, shape index: {}]
  %s3 = inlined_call_operand.vmem [shape: bf16[128,128], index: 3, kind: output, shape index: {0}]
  %s4 = inlined_call_operand.vmem [shape: bf16[128,128], index: 4, kind: output, shape index: {1}]
  %s5 = inlined_call_operand.vmem [shape: f32[1,2,256], index: 5, kind: output, shape index: {2}]
  %6 = xla_tuple %s3, %s4, %s5
  %s7 = sld [smem:[#allocation0]]
  $region38: #{residual_block_diff.3} parent=0
    _
  %s9 = ssub.s32 1, %s7
  %s10 = scalar_select 0, %s9, %s7
  // Predicated region
  $region2: #{residual_block_diff.3} parent=0 // pred_check
    _
  $region3: #{residual_block_diff.3} parent=0 // pred_check_branch
    %12 = sbr.rel (0) target = $region5
  $region4: #{residual_block_diff.3} parent=0 // pred_region
    _
  $region5: #{residual_block_diff.3} parent=0 // pred_fallthru
    _
  // Predicated region
  $region6: #{residual_block_diff.3} parent=0 // pred_check
    _
  $region7: #{residual_block_diff.3} parent=0 // pred_check_branch
    %14 = sbr.rel (0) target = $region9
  $region8: #{residual_block_diff.3} parent=0 // pred_region
    _
  $region9: #{residual_block_diff.3} parent=0 // pred_fallthru
    _
  // Predicated region
  $region10: #{residual_block_diff.3} parent=0 // pred_check
    _
  $region11: #{residual_block_diff.3} parent=0 // pred_check_branch
    %16 = sbr.rel (0) target = $region13
  $region12: #{residual_block_diff.3} parent=0 // pred_region
    _
  $region13: #{residual_block_diff.3} parent=0 // pred_fallthru
    _
  %18 = vst [vmem:[#allocation2] sm:$0xf] 0
  %19 = vst [vmem:[#allocation2 + $0x4] sm:$0xf] 0
  %20 = vst [vmem:[#allocation2 + $0x8] sm:$0xf] 0
  %21 = vst [vmem:[#allocation2 + $0xc] sm:$0xf] 0
  %22 = vst [vmem:[#allocation2 + $0x10] sm:$0xf] 0
  %23 = vst [vmem:[#allocation2 + $0x14] sm:$0xf] 0
  %24 = vst [vmem:[#allocation2 + $0x18] sm:$0xf] 0
  %25 = vst [vmem:[#allocation2 + $0x1c] sm:$0xf] 0
  %26 = vst [vmem:[#allocation2 + $0x20] sm:$0xf] 0
  %27 = vst [vmem:[#allocation2 + $0x24] sm:$0xf] 0
  %28 = vst [vmem:[#allocation2 + $0x28] sm:$0xf] 0
  %29 = vst [vmem:[#allocation2 + $0x2c] sm:$0xf] 0
  %30 = vst [vmem:[#allocation2 + $0x30] sm:$0xf] 0
  %31 = vst [vmem:[#allocation2 + $0x34] sm:$0xf] 0
  %32 = vst [vmem:[#allocation2 + $0x38] sm:$0xf] 0
  %33 = vst [vmem:[#allocation2 + $0x3c] sm:$0xf] 0
  %v34 = vld [vmem:[%s0] sm:$0xf]
  %v35 = vld [vmem:[%s0 + $0x4] sm:$0xf]
  %v36 = vld [vmem:[%s0 + $0x8] sm:$0xf]
  %v37 = vld [vmem:[%s0 + $0xc] sm:$0xf]
  %v38 = vld [vmem:[%s0 + $0x10] sm:$0xf]
  %v39 = vld [vmem:[%s0 + $0x14] sm:$0xf]
  %v40 = vld [vmem:[%s0 + $0x18] sm:$0xf]
  %v41 = vld [vmem:[%s0 + $0x1c] sm:$0xf]
  %v42 = vld [vmem:[%s0 + $0x20] sm:$0xf]
  %v43 = vld [vmem:[%s0 + $0x24] sm:$0xf]
  %v44 = vld [vmem:[%s0 + $0x28] sm:$0xf]
  %v45 = vld [vmem:[%s0 + $0x2c] sm:$0xf]
  %v46 = vld [vmem:[%s0 + $0x30] sm:$0xf]
  %v47 = vld [vmem:[%s0 + $0x34] sm:$0xf]
  %v48 = vld [vmem:[%s0 + $0x38] sm:$0xf]
  %v49 = vld [vmem:[%s0 + $0x3c] sm:$0xf]
  %vm50 = vcmask 289792
  %51 = vst.msk [vmem:[#allocation2] sm:$0xf] %vm50, %v34
  %52 = vst.msk [vmem:[#allocation2 + $0x4] sm:$0xf] %vm50, %v35
  %53 = vst.msk [vmem:[#allocation2 + $0x8] sm:$0xf] %vm50, %v36
  %54 = vst.msk [vmem:[#allocation2 + $0xc] sm:$0xf] %vm50, %v37
  %55 = vst.msk [vmem:[#allocation2 + $0x10] sm:$0xf] %vm50, %v38
  %56 = vst.msk [vmem:[#allocation2 + $0x14] sm:$0xf] %vm50, %v39
  %57 = vst.msk [vmem:[#allocation2 + $0x18] sm:$0xf] %vm50, %v40
  %58 = vst.msk [vmem:[#allocation2 + $0x1c] sm:$0xf] %vm50, %v41
  %59 = vst.msk [vmem:[#allocation2 + $0x20] sm:$0xf] %vm50, %v42
  %60 = vst.msk [vmem:[#allocation2 + $0x24] sm:$0xf] %vm50, %v43
  %61 = vst.msk [vmem:[#allocation2 + $0x28] sm:$0xf] %vm50, %v44
  %62 = vst.msk [vmem:[#allocation2 + $0x2c] sm:$0xf] %vm50, %v45
  %63 = vst.msk [vmem:[#allocation2 + $0x30] sm:$0xf] %vm50, %v46
  %64 = vst.msk [vmem:[#allocation2 + $0x34] sm:$0xf] %vm50, %v47
  %65 = vst.msk [vmem:[#allocation2 + $0x38] sm:$0xf] %vm50, %v48
  %66 = vst.msk [vmem:[#allocation2 + $0x3c] sm:$0xf] %vm50, %v49
  %v67 = vld [vmem:[#allocation2] sm:$0xf]
  %v68 = vld [vmem:[#allocation2 + $0x4] sm:$0xf]
  %v69 = vld [vmem:[#allocation2 + $0x8] sm:$0xf]
  %v70 = vld [vmem:[#allocation2 + $0xc] sm:$0xf]
  %v71 = vld [vmem:[#allocation2 + $0x10] sm:$0xf]
  %v72 = vld [vmem:[#allocation2 + $0x14] sm:$0xf]
  %v73 = vld [vmem:[#allocation2 + $0x18] sm:$0xf]
  %v74 = vld [vmem:[#allocation2 + $0x1c] sm:$0xf]
  %v75 = vld [vmem:[#allocation2 + $0x20] sm:$0xf]
  %v76 = vld [vmem:[#allocation2 + $0x24] sm:$0xf]
  %v77 = vld [vmem:[#allocation2 + $0x28] sm:$0xf]
  %v78 = vld [vmem:[#allocation2 + $0x2c] sm:$0xf]
  %v79 = vld [vmem:[#allocation2 + $0x30] sm:$0xf]
  %v80 = vld [vmem:[#allocation2 + $0x34] sm:$0xf]
  %v81 = vld [vmem:[#allocation2 + $0x38] sm:$0xf]
  %v82 = vld [vmem:[#allocation2 + $0x3c] sm:$0xf]
  %v83 = vld [vmem:[%s1] sm:$0xff]
  %v84 = vld [vmem:[%s1 + $0x8] sm:$0xff]
  %v85 = vld [vmem:[%s1 + $0x10] sm:$0xff]
  %v86 = vld [vmem:[%s1 + $0x18] sm:$0xff]
  %v87 = vld [vmem:[%s1 + $0x20] sm:$0xff]
  %v88 = vld [vmem:[%s1 + $0x28] sm:$0xff]
  %v89 = vld [vmem:[%s1 + $0x30] sm:$0xff]
  %v90 = vld [vmem:[%s1 + $0x38] sm:$0xff]
  %v91 = vld [vmem:[%s1 + $0x40] sm:$0xff]
  %v92 = vld [vmem:[%s1 + $0x48] sm:$0xff]
  %v93 = vld [vmem:[%s1 + $0x50] sm:$0xff]
  %v94 = vld [vmem:[%s1 + $0x58] sm:$0xff]
  %v95 = vld [vmem:[%s1 + $0x60] sm:$0xff]
  %v96 = vld [vmem:[%s1 + $0x68] sm:$0xff]
  %v97 = vld [vmem:[%s1 + $0x70] sm:$0xff]
  %v98 = vld [vmem:[%s1 + $0x78] sm:$0xff]
  %v99 = vld [vmem:[%s2] ss:$8 sm:$0x3]
  %v101 = vlaneseq
  %v102 = vshrl.u32 %v101, 7
  %v103 = vsub.s32 0, %v102
  %v104 = vrot.slane %v99, %v103
  %v105 = vlaneseq
  %v106 = vshrl.u32 %v105, 7
  %v107 = vsub.s32 1, %v106
  %v108 = vrot.slane %v99, %v107
  %v127 = vunpack.c.l.b16 %v67
  %v128 = vunpack.c.l.b16 %v68
  %v129 = vunpack.c.l.b16 %v69
  %v130 = vunpack.c.l.b16 %v70
  %v131 = vunpack.c.l.b16 %v71
  %v132 = vunpack.c.l.b16 %v72
  %v133 = vunpack.c.l.b16 %v73
  %v134 = vunpack.c.l.b16 %v74
  %v135 = vunpack.c.l.b16 %v75
  %v136 = vunpack.c.l.b16 %v76
  %v137 = vunpack.c.l.b16 %v77
  %v138 = vunpack.c.l.b16 %v78
  %v139 = vunpack.c.l.b16 %v79
  %v140 = vunpack.c.l.b16 %v80
  %v141 = vunpack.c.l.b16 %v81
  %v142 = vunpack.c.l.b16 %v82
  %v143 = vpack.c.b16 %v128, %v127
  %v144 = vpack.c.b16 %v130, %v129
  %v145 = vpack.c.b16 %v132, %v131
  %v146 = vpack.c.b16 %v134, %v133
  %v147 = vpack.c.b16 %v136, %v135
  %v148 = vpack.c.b16 %v138, %v137
  %v149 = vpack.c.b16 %v140, %v139
  %v150 = vpack.c.b16 %v142, %v141
  %v175 = vunpack.c.l.b16 %v83
  %v176 = vunpack.c.h.b16 %v83
  %v177 = vunpack.c.l.b16 %v84
  %v178 = vunpack.c.h.b16 %v84
  %v179 = vunpack.c.l.b16 %v85
  %v180 = vunpack.c.h.b16 %v85
  %v181 = vunpack.c.l.b16 %v86
  %v182 = vunpack.c.h.b16 %v86
  %v183 = vunpack.c.l.b16 %v87
  %v184 = vunpack.c.h.b16 %v87
  %v185 = vunpack.c.l.b16 %v88
  %v186 = vunpack.c.h.b16 %v88
  %v187 = vunpack.c.l.b16 %v89
  %v188 = vunpack.c.h.b16 %v89
  %v189 = vunpack.c.l.b16 %v90
  %v190 = vunpack.c.h.b16 %v90
  %v191 = vunpack.c.l.b16 %v91
  %v192 = vunpack.c.h.b16 %v91
  %v193 = vunpack.c.l.b16 %v92
  %v194 = vunpack.c.h.b16 %v92
  %v195 = vunpack.c.l.b16 %v93
  %v196 = vunpack.c.h.b16 %v93
  %v197 = vunpack.c.l.b16 %v94
  %v198 = vunpack.c.h.b16 %v94
  %v199 = vunpack.c.l.b16 %v95
  %v200 = vunpack.c.h.b16 %v95
  %v201 = vunpack.c.l.b16 %v96
  %v202 = vunpack.c.h.b16 %v96
  %v203 = vunpack.c.l.b16 %v97
  %v204 = vunpack.c.h.b16 %v97
  %v205 = vunpack.c.l.b16 %v98
  %v206 = vunpack.c.h.b16 %v98
  %v207 = vpack.c.b16 %v177, %v175
  %v208 = vpack.c.b16 %v178, %v176
  %v209 = vpack.c.b16 %v181, %v179
  %v210 = vpack.c.b16 %v182, %v180
  %v211 = vpack.c.b16 %v185, %v183
  %v212 = vpack.c.b16 %v186, %v184
  %v213 = vpack.c.b16 %v189, %v187
  %v214 = vpack.c.b16 %v190, %v188
  %v215 = vpack.c.b16 %v193, %v191
  %v216 = vpack.c.b16 %v194, %v192
  %v217 = vpack.c.b16 %v197, %v195
  %v218 = vpack.c.b16 %v198, %v196
  %v219 = vpack.c.b16 %v201, %v199
  %v220 = vpack.c.b16 %v202, %v200
  %v221 = vpack.c.b16 %v205, %v203
  %v222 = vpack.c.b16 %v206, %v204
  %239 = vmatprep.subr.bf16.mxu0 %v222
  %240 = vmatpush1.bf16.msra.mxu0 %v221
  %241 = vmatprep.subr.bf16.mxu0 %v220
  %242 = vmatpush1.bf16.msra.mxu0 %v219
  %243 = vmatprep.subr.bf16.mxu0 %v218
  %244 = vmatpush1.bf16.msra.mxu0 %v217
  %245 = vmatprep.subr.bf16.mxu0 %v216
  %246 = vmatpush1.bf16.msra.mxu0 %v215
  %247 = vmatprep.subr.bf16.mxu0 %v214
  %248 = vmatpush1.bf16.msra.mxu0 %v213
  %249 = vmatprep.subr.bf16.mxu0 %v212
  %250 = vmatpush1.bf16.msra.mxu0 %v211
  %251 = vmatprep.subr.bf16.mxu0 %v210
  %252 = vmatpush1.bf16.msra.mxu0 %v209
  %253 = vmatprep.subr.bf16.mxu0 %v208
  %254 = vmatpush1.bf16.msra.mxu0 %v207
  %255 = vmatprep.subr.bf16.mxu0 0
  %256 = vmatpush2.bf16.msra.mxu0 0
  %257 = vmatprep.subr.bf16.mxu0 0
  %258 = vmatpush2.bf16.msra.mxu0 0
  %259 = vmatprep.subr.bf16.mxu0 0
  %260 = vmatpush2.bf16.msra.mxu0 0
  %261 = vmatprep.subr.bf16.mxu0 0
  %262 = vmatpush2.bf16.msra.mxu0 0
  %263 = vmatprep.subr.bf16.mxu0 0
  %264 = vmatpush2.bf16.msra.mxu0 0
  %265 = vmatprep.subr.bf16.mxu0 0
  %266 = vmatpush2.bf16.msra.mxu0 0
  %267 = vmatprep.subr.bf16.mxu0 0
  %268 = vmatpush2.bf16.msra.mxu0 0
  %269 = vmatprep.subr.bf16.mxu0 0
  %270 = vmatpush2.bf16.msra.mxu0 0
  %271 = vmatprep.mubr.bf16.mxu0 0
  %272 = vmatmul.mubr.bf16.gmra.mxu0 %v143
  %v273 = vpop.f32.mrf.mxu0
  %v274 = vadd.f32 %v104, %v273
  %v275 = vpop.f32.mrf.mxu0
  %v276 = vadd.f32 %v108, %v275
  %v277 = vpop.f32.mrf.mxu0
  %v278 = vadd.f32 %v104, %v277
  %v279 = vpop.f32.mrf.mxu0
  %v280 = vadd.f32 %v108, %v279
  %281 = vmatprep.mubr.bf16.mxu0 0
  %282 = vmatmul.mubr.bf16.gmra.mxu0 %v144
  %v283 = vpop.f32.mrf.mxu0
  %v284 = vadd.f32 %v104, %v283
  %v285 = vpop.f32.mrf.mxu0
  %v286 = vadd.f32 %v108, %v285
  %v287 = vpop.f32.mrf.mxu0
  %v288 = vadd.f32 %v104, %v287
  %v289 = vpop.f32.mrf.mxu0
  %v290 = vadd.f32 %v108, %v289
  %291 = vmatprep.mubr.bf16.mxu0 0
  %292 = vmatmul.mubr.bf16.gmra.mxu0 %v145
  %v293 = vpop.f32.mrf.mxu0
  %v294 = vadd.f32 %v104, %v293
  %v295 = vpop.f32.mrf.mxu0
  %v296 = vadd.f32 %v108, %v295
  %v297 = vpop.f32.mrf.mxu0
  %v298 = vadd.f32 %v104, %v297
  %v299 = vpop.f32.mrf.mxu0
  %v300 = vadd.f32 %v108, %v299
  %301 = vmatprep.mubr.bf16.mxu0 0
  %302 = vmatmul.mubr.bf16.gmra.mxu0 %v146
  %v303 = vpop.f32.mrf.mxu0
  %v304 = vadd.f32 %v104, %v303
  %v305 = vpop.f32.mrf.mxu0
  %v306 = vadd.f32 %v108, %v305
  %v307 = vpop.f32.mrf.mxu0
  %v308 = vadd.f32 %v104, %v307
  %v309 = vpop.f32.mrf.mxu0
  %v310 = vadd.f32 %v108, %v309
  %311 = vmatprep.mubr.bf16.mxu0 0
  %312 = vmatmul.mubr.bf16.gmra.mxu0 %v147
  %v313 = vpop.f32.mrf.mxu0
  %v314 = vadd.f32 %v104, %v313
  %v315 = vpop.f32.mrf.mxu0
  %v316 = vadd.f32 %v108, %v315
  %v317 = vpop.f32.mrf.mxu0
  %v318 = vadd.f32 %v104, %v317
  %v319 = vpop.f32.mrf.mxu0
  %v320 = vadd.f32 %v108, %v319
  %321 = vmatprep.mubr.bf16.mxu0 0
  %322 = vmatmul.mubr.bf16.gmra.mxu0 %v148
  %v323 = vpop.f32.mrf.mxu0
  %v324 = vadd.f32 %v104, %v323
  %v325 = vpop.f32.mrf.mxu0
  %v326 = vadd.f32 %v108, %v325
  %v327 = vpop.f32.mrf.mxu0
  %v328 = vadd.f32 %v104, %v327
  %v329 = vpop.f32.mrf.mxu0
  %v330 = vadd.f32 %v108, %v329
  %331 = vmatprep.mubr.bf16.mxu0 0
  %332 = vmatmul.mubr.bf16.gmra.mxu0 %v149
  %v333 = vpop.f32.mrf.mxu0
  %v334 = vadd.f32 %v104, %v333
  %v335 = vpop.f32.mrf.mxu0
  %v336 = vadd.f32 %v108, %v335
  %v337 = vpop.f32.mrf.mxu0
  %v338 = vadd.f32 %v104, %v337
  %v339 = vpop.f32.mrf.mxu0
  %v340 = vadd.f32 %v108, %v339
  %341 = vmatprep.mubr.bf16.mxu0 0
  %342 = vmatmul.mubr.bf16.gmra.mxu0 %v150
  %v343 = vpop.f32.mrf.mxu0
  %v344 = vadd.f32 %v104, %v343
  %v345 = vpop.f32.mrf.mxu0
  %v346 = vadd.f32 %v108, %v345
  %v347 = vpop.f32.mrf.mxu0
  %v348 = vadd.f32 %v104, %v347
  %v349 = vpop.f32.mrf.mxu0
  %v350 = vadd.f32 %v108, %v349
  %351 = vdwg.mxu0
  %v352 = vpack.c.bf16 %v278, %v274
  %v353 = vpack.c.bf16 %v288, %v284
  %v354 = vpack.c.bf16 %v298, %v294
  %v355 = vpack.c.bf16 %v308, %v304
  %v356 = vpack.c.bf16 %v318, %v314
  %v357 = vpack.c.bf16 %v328, %v324
  %v358 = vpack.c.bf16 %v338, %v334
  %v359 = vpack.c.bf16 %v348, %v344
  %v368 = vunpack.c.l.b16 %v352
  %v369 = vunpack.c.h.b16 %v352
  %v370 = vunpack.c.l.b16 %v353
  %v371 = vunpack.c.h.b16 %v353
  %v372 = vunpack.c.l.b16 %v354
  %v373 = vunpack.c.h.b16 %v354
  %v374 = vunpack.c.l.b16 %v355
  %v375 = vunpack.c.h.b16 %v355
  %v376 = vunpack.c.l.b16 %v356
  %v377 = vunpack.c.h.b16 %v356
  %v378 = vunpack.c.l.b16 %v357
  %v379 = vunpack.c.h.b16 %v357
  %v380 = vunpack.c.l.b16 %v358
  %v381 = vunpack.c.h.b16 %v358
  %v382 = vunpack.c.l.b16 %v359
  %v383 = vunpack.c.h.b16 %v359
  %v384 = vpack.c.b16 %v368, %v368
  %v385 = vpack.c.b16 %v369, %v369
  %v386 = vpack.c.b16 %v370, %v370
  %v387 = vpack.c.b16 %v371, %v371
  %v388 = vpack.c.b16 %v372, %v372
  %v389 = vpack.c.b16 %v373, %v373
  %v390 = vpack.c.b16 %v374, %v374
  %v391 = vpack.c.b16 %v375, %v375
  %v392 = vpack.c.b16 %v376, %v376
  %v393 = vpack.c.b16 %v377, %v377
  %v394 = vpack.c.b16 %v378, %v378
  %v395 = vpack.c.b16 %v379, %v379
  %v396 = vpack.c.b16 %v380, %v380
  %v397 = vpack.c.b16 %v381, %v381
  %v398 = vpack.c.b16 %v382, %v382
  %v399 = vpack.c.b16 %v383, %v383
  %416 = vst [vmem:[%s3] sm:$0xf] %v384
  %417 = vst [vmem:[%s3 + $0x4] sm:$0xf] %v385
  %418 = vst [vmem:[%s3 + $0x8] sm:$0xf] %v386
  %419 = vst [vmem:[%s3 + $0xc] sm:$0xf] %v387
  %420 = vst [vmem:[%s3 + $0x10] sm:$0xf] %v388
  %421 = vst [vmem:[%s3 + $0x14] sm:$0xf] %v389
  %422 = vst [vmem:[%s3 + $0x18] sm:$0xf] %v390
  %423 = vst [vmem:[%s3 + $0x1c] sm:$0xf] %v391
  %424 = vst [vmem:[%s3 + $0x20] sm:$0xf] %v392
  %425 = vst [vmem:[%s3 + $0x24] sm:$0xf] %v393
  %426 = vst [vmem:[%s3 + $0x28] sm:$0xf] %v394
  %427 = vst [vmem:[%s3 + $0x2c] sm:$0xf] %v395
  %428 = vst [vmem:[%s3 + $0x30] sm:$0xf] %v396
  %429 = vst [vmem:[%s3 + $0x34] sm:$0xf] %v397
  %430 = vst [vmem:[%s3 + $0x38] sm:$0xf] %v398
  %431 = vst [vmem:[%s3 + $0x3c] sm:$0xf] %v399
  %v432 = vpack.c.bf16 %v280, %v276
  %v433 = vpack.c.bf16 %v290, %v286
  %v434 = vpack.c.bf16 %v300, %v296
  %v435 = vpack.c.bf16 %v310, %v306
  %v436 = vpack.c.bf16 %v320, %v316
  %v437 = vpack.c.bf16 %v330, %v326
  %v438 = vpack.c.bf16 %v340, %v336
  %v439 = vpack.c.bf16 %v350, %v346
  %v448 = vunpack.c.l.b16 %v432
  %v449 = vunpack.c.h.b16 %v432
  %v450 = vunpack.c.l.b16 %v433
  %v451 = vunpack.c.h.b16 %v433
  %v452 = vunpack.c.l.b16 %v434
  %v453 = vunpack.c.h.b16 %v434
  %v454 = vunpack.c.l.b16 %v435
  %v455 = vunpack.c.h.b16 %v435
  %v456 = vunpack.c.l.b16 %v436
  %v457 = vunpack.c.h.b16 %v436
  %v458 = vunpack.c.l.b16 %v437
  %v459 = vunpack.c.h.b16 %v437
  %v460 = vunpack.c.l.b16 %v438
  %v461 = vunpack.c.h.b16 %v438
  %v462 = vunpack.c.l.b16 %v439
  %v463 = vunpack.c.h.b16 %v439
  %v464 = vpack.c.b16 %v448, %v448
  %v465 = vpack.c.b16 %v449, %v449
  %v466 = vpack.c.b16 %v450, %v450
  %v467 = vpack.c.b16 %v451, %v451
  %v468 = vpack.c.b16 %v452, %v452
  %v469 = vpack.c.b16 %v453, %v453
  %v470 = vpack.c.b16 %v454, %v454
  %v471 = vpack.c.b16 %v455, %v455
  %v472 = vpack.c.b16 %v456, %v456
  %v473 = vpack.c.b16 %v457, %v457
  %v474 = vpack.c.b16 %v458, %v458
  %v475 = vpack.c.b16 %v459, %v459
  %v476 = vpack.c.b16 %v460, %v460
  %v477 = vpack.c.b16 %v461, %v461
  %v478 = vpack.c.b16 %v462, %v462
  %v479 = vpack.c.b16 %v463, %v463
  %496 = vst [vmem:[%s4] sm:$0xf] %v464
  %497 = vst [vmem:[%s4 + $0x4] sm:$0xf] %v465
  %498 = vst [vmem:[%s4 + $0x8] sm:$0xf] %v466
  %499 = vst [vmem:[%s4 + $0xc] sm:$0xf] %v467
  %500 = vst [vmem:[%s4 + $0x10] sm:$0xf] %v468
  %501 = vst [vmem:[%s4 + $0x14] sm:$0xf] %v469
  %502 = vst [vmem:[%s4 + $0x18] sm:$0xf] %v470
  %503 = vst [vmem:[%s4 + $0x1c] sm:$0xf] %v471
  %504 = vst [vmem:[%s4 + $0x20] sm:$0xf] %v472
  %505 = vst [vmem:[%s4 + $0x24] sm:$0xf] %v473
  %506 = vst [vmem:[%s4 + $0x28] sm:$0xf] %v474
  %507 = vst [vmem:[%s4 + $0x2c] sm:$0xf] %v475
  %508 = vst [vmem:[%s4 + $0x30] sm:$0xf] %v476
  %509 = vst [vmem:[%s4 + $0x34] sm:$0xf] %v477
  %510 = vst [vmem:[%s4 + $0x38] sm:$0xf] %v478
  %511 = vst [vmem:[%s4 + $0x3c] sm:$0xf] %v479
  %v512 = vadd.f32 %v274, %v278
  %v513 = vadd.f32 %v512, %v284
  %v514 = vadd.f32 %v513, %v288
  %v515 = vadd.f32 %v514, %v294
  %v516 = vadd.f32 %v515, %v298
  %v517 = vadd.f32 %v516, %v304
  %v518 = vadd.f32 %v517, %v308
  %v519 = vadd.f32 %v518, %v314
  %v520 = vadd.f32 %v519, %v318
  %v521 = vadd.f32 %v520, %v324
  %v522 = vadd.f32 %v521, %v328
  %v523 = vadd.f32 %v522, %v334
  %v524 = vadd.f32 %v523, %v338
  %v525 = vadd.f32 %v524, %v344
  %v526 = vadd.f32 %v525, %v348
  %v527 = vrot.slane %v526, 4
  %v528 = vadd.f32 %v526, %v527
  %v529 = vrot.slane %v528, 2
  %v530 = vadd.f32 %v528, %v529
  %v531 = vrot.slane %v530, 1
  %v532 = vadd.f32 %v530, %v531
  %v533 = vadd.f32 %v276, %v280
  %v534 = vadd.f32 %v533, %v286
  %v535 = vadd.f32 %v534, %v290
  %v536 = vadd.f32 %v535, %v296
  %v537 = vadd.f32 %v536, %v300
  %v538 = vadd.f32 %v537, %v306
  %v539 = vadd.f32 %v538, %v310
  %v540 = vadd.f32 %v539, %v316
  %v541 = vadd.f32 %v540, %v320
  %v542 = vadd.f32 %v541, %v326
  %v543 = vadd.f32 %v542, %v330
  %v544 = vadd.f32 %v543, %v336
  %v545 = vadd.f32 %v544, %v340
  %v546 = vadd.f32 %v545, %v346
  %v547 = vadd.f32 %v546, %v350
  %v548 = vrot.slane %v547, 4
  %v549 = vadd.f32 %v547, %v548
  %v550 = vrot.slane %v549, 2
  %v551 = vadd.f32 %v549, %v550
  %v552 = vrot.slane %v551, 1
  %v553 = vadd.f32 %v551, %v552
  %v556 = vcombine.low %v532, %v553
  %v558 = vunpack.c.l.s4 1966171168
  %v559 = vunpack.c.0.s8 %v558
  %v560 = vlaneseq
  %v561 = vshrl.u32 %v560, 7
  %v562 = vsub.s32 %v559, %v561
  %v563 = vrot.slane %v556, %v562
  %v565 = vunpack.c.l.s4 1966171168
  %v566 = vunpack.c.0.s8 %v565
  %v567 = vlaneseq
  %v568 = vshrl.u32 %v567, 7
  %v569 = vsub.s32 %v566, %v568
  %v570 = vrot.slane %v563, %v569
  %v572 = vlaneseq
  %vm573 = vcmp.ge.s32.totalorder %v572, 0
  %vm574 = vcmp.lt.s32.totalorder %v572, 256
  %vm575 = vmand %vm573, %vm574
  %576 = vst.msk [vmem:[%s5] ss:$2 sm:$0x3] %vm575, %v570
  %v577 = vmul.f32 %v274, %v274
  %v578 = vmul.f32 %v276, %v276
  %v579 = vmul.f32 %v278, %v278
  %v580 = vmul.f32 %v280, %v280
  %v581 = vmul.f32 %v284, %v284
  %v582 = vmul.f32 %v286, %v286
  %v583 = vmul.f32 %v288, %v288
  %v584 = vmul.f32 %v290, %v290
  %v585 = vmul.f32 %v294, %v294
  %v586 = vmul.f32 %v296, %v296
  %v587 = vmul.f32 %v298, %v298
  %v588 = vmul.f32 %v300, %v300
  %v589 = vmul.f32 %v304, %v304
  %v590 = vmul.f32 %v306, %v306
  %v591 = vmul.f32 %v308, %v308
  %v592 = vmul.f32 %v310, %v310
  %v593 = vmul.f32 %v314, %v314
  %v594 = vmul.f32 %v316, %v316
  %v595 = vmul.f32 %v318, %v318
  %v596 = vmul.f32 %v320, %v320
  %v597 = vmul.f32 %v324, %v324
  %v598 = vmul.f32 %v326, %v326
  %v599 = vmul.f32 %v328, %v328
  %v600 = vmul.f32 %v330, %v330
  %v601 = vmul.f32 %v334, %v334
  %v602 = vmul.f32 %v336, %v336
  %v603 = vmul.f32 %v338, %v338
  %v604 = vmul.f32 %v340, %v340
  %v605 = vmul.f32 %v344, %v344
  %v606 = vmul.f32 %v346, %v346
  %v607 = vmul.f32 %v348, %v348
  %v608 = vmul.f32 %v350, %v350
  %v609 = vadd.f32 %v577, %v579
  %v610 = vadd.f32 %v609, %v581
  %v611 = vadd.f32 %v610, %v583
  %v612 = vadd.f32 %v611, %v585
  %v613 = vadd.f32 %v612, %v587
  %v614 = vadd.f32 %v613, %v589
  %v615 = vadd.f32 %v614, %v591
  %v616 = vadd.f32 %v615, %v593
  %v617 = vadd.f32 %v616, %v595
  %v618 = vadd.f32 %v617, %v597
  %v619 = vadd.f32 %v618, %v599
  %v620 = vadd.f32 %v619, %v601
  %v621 = vadd.f32 %v620, %v603
  %v622 = vadd.f32 %v621, %v605
  %v623 = vadd.f32 %v622, %v607
  %v624 = vrot.slane %v623, 4
  %v625 = vadd.f32 %v623, %v624
  %v626 = vrot.slane %v625, 2
  %v627 = vadd.f32 %v625, %v626
  %v628 = vrot.slane %v627, 1
  %v629 = vadd.f32 %v627, %v628
  %v630 = vadd.f32 %v578, %v580
  %v631 = vadd.f32 %v630, %v582
  %v632 = vadd.f32 %v631, %v584
  %v633 = vadd.f32 %v632, %v586
  %v634 = vadd.f32 %v633, %v588
  %v635 = vadd.f32 %v634, %v590
  %v636 = vadd.f32 %v635, %v592
  %v637 = vadd.f32 %v636, %v594
  %v638 = vadd.f32 %v637, %v596
  %v639 = vadd.f32 %v638, %v598
  %v640 = vadd.f32 %v639, %v600
  %v641 = vadd.f32 %v640, %v602
  %v642 = vadd.f32 %v641, %v604
  %v643 = vadd.f32 %v642, %v606
  %v644 = vadd.f32 %v643, %v608
  %v645 = vrot.slane %v644, 4
  %v646 = vadd.f32 %v644, %v645
  %v647 = vrot.slane %v646, 2
  %v648 = vadd.f32 %v646, %v647
  %v649 = vrot.slane %v648, 1
  %v650 = vadd.f32 %v648, %v649
  %v653 = vcombine.low %v629, %v650
  %v655 = vunpack.c.l.s4 1966171168
  %v656 = vunpack.c.0.s8 %v655
  %v657 = vlaneseq
  %v658 = vshrl.u32 %v657, 7
  %v659 = vsub.s32 %v656, %v658
  %v660 = vrot.slane %v653, %v659
  %v662 = vunpack.c.l.s4 1966171168
  %v663 = vunpack.c.0.s8 %v662
  %v664 = vlaneseq
  %v665 = vshrl.u32 %v664, 7
  %v666 = vsub.s32 %v663, %v665
  %v667 = vrot.slane %v660, %v666
  %s669 = scalar_lea.vmem %s5, 1
  %670 = vst.msk [vmem:[%s669] ss:$2 sm:$0x3] %vm575, %v667
  // Predicated region
  $region14: #{residual_block_diff.3} parent=0 // pred_check
    _
  $region15: #{residual_block_diff.3} parent=0 // pred_check_branch
    %672 = sbr.rel (0) target = $region17
  $region16: #{residual_block_diff.3} parent=0 // pred_region
    _
  $region17: #{residual_block_diff.3} parent=0 // pred_fallthru
    _
  // Predicated region
  $region18: #{residual_block_diff.3} parent=0 // pred_check
    _
  $region19: #{residual_block_diff.3} parent=0 // pred_check_branch
    %674 = sbr.rel (0) target = $region21
  $region20: #{residual_block_diff.3} parent=0 // pred_region
    _
  $region21: #{residual_block_diff.3} parent=0 // pred_fallthru
    _
  // Predicated region
  $region22: #{residual_block_diff.3} parent=0 // pred_check
    _
  $region23: #{residual_block_diff.3} parent=0 // pred_check_branch
    %676 = sbr.rel (0) target = $region25
  $region24: #{residual_block_diff.3} parent=0 // pred_region
    _
  $region25: #{residual_block_diff.3} parent=0 // pred_fallthru
    _
  // Predicated region
  $region26: #{residual_block_diff.3} parent=0 // pred_check
    _
  $region27: #{residual_block_diff.3} parent=0 // pred_check_branch
    %678 = sbr.rel (0) target = $region29
  $region28: #{residual_block_diff.3} parent=0 // pred_region
    _
  $region29: #{residual_block_diff.3} parent=0 // pred_fallthru
    _
  // Predicated region
  $region30: #{residual_block_diff.3} parent=0 // pred_check
    _
  $region31: #{residual_block_diff.3} parent=0 // pred_check_branch
    %680 = sbr.rel (0) target = $region33
  $region32: #{residual_block_diff.3} parent=0 // pred_region
    _
  $region33: #{residual_block_diff.3} parent=0 // pred_fallthru
    _
  // Predicated region
  $region34: #{residual_block_diff.3} parent=0 // pred_check
    _
  $region35: #{residual_block_diff.3} parent=0 // pred_check_branch
    %682 = sbr.rel (0) target = $region37
  $region36: #{residual_block_diff.3} parent=0 // pred_region
    _
  $region37: #{residual_block_diff.3} parent=0 // pred_fallthru
    _

// kernel: residual_block_diff.5
$region0: #{residual_block_diff.5}
  #allocation0 [shape = 'u32[]', space=smem, size = 0x4, offset = 0x4, fixed_abs, tag = 'smem constant byte address 0x4 - core index']
  #allocation1 [shape = 'u32[144,128]{1,0:T(1,128)}', space=vmem, size = 0x12000, scoped, tag = 'internal scratch']
  %s0 = inlined_call_operand.vmem [shape: bf16[128,128], index: 0, kind: input, shape index: {}]
  %s1 = inlined_call_operand.vmem [shape: bf16[128,128], index: 1, kind: input, shape index: {}]
  %s2 = inlined_call_operand.vmem [shape: f32[8,256], index: 2, kind: input, shape index: {}]
  %s3 = inlined_call_operand.vmem [shape: f32[128,128], index: 3, kind: output, shape index: {}]
  %s4 = sld [smem:[#allocation0]]
  $region22: #{residual_block_diff.5} parent=0
    _
  %s6 = ssub.s32 1, %s4
  %s7 = scalar_select 0, %s6, %s4
  // Predicated region
  $region2: #{residual_block_diff.5} parent=0 // pred_check
    _
  $region3: #{residual_block_diff.5} parent=0 // pred_check_branch
    %9 = sbr.rel (0) target = $region5
  $region4: #{residual_block_diff.5} parent=0 // pred_region
    _
  $region5: #{residual_block_diff.5} parent=0 // pred_fallthru
    _
  // Predicated region
  $region6: #{residual_block_diff.5} parent=0 // pred_check
    _
  $region7: #{residual_block_diff.5} parent=0 // pred_check_branch
    %11 = sbr.rel (0) target = $region9
  $region8: #{residual_block_diff.5} parent=0 // pred_region
    _
  $region9: #{residual_block_diff.5} parent=0 // pred_fallthru
    _
  // Predicated region
  $region10: #{residual_block_diff.5} parent=0 // pred_check
    _
  $region11: #{residual_block_diff.5} parent=0 // pred_check_branch
    %13 = sbr.rel (0) target = $region13
  $region12: #{residual_block_diff.5} parent=0 // pred_region
    _
  $region13: #{residual_block_diff.5} parent=0 // pred_fallthru
    _
  %v14 = vld [vmem:[%s0] sm:$0xf]
  %v15 = vld [vmem:[%s0 + $0x4] sm:$0xf]
  %v16 = vld [vmem:[%s0 + $0x8] sm:$0xf]
  %v17 = vld [vmem:[%s0 + $0xc] sm:$0xf]
  %v18 = vld [vmem:[%s0 + $0x10] sm:$0xf]
  %v19 = vld [vmem:[%s0 + $0x14] sm:$0xf]
  %v20 = vld [vmem:[%s0 + $0x18] sm:$0xf]
  %v21 = vld [vmem:[%s0 + $0x1c] sm:$0xf]
  %v22 = vld [vmem:[%s0 + $0x20] sm:$0xf]
  %v23 = vld [vmem:[%s0 + $0x24] sm:$0xf]
  %v24 = vld [vmem:[%s0 + $0x28] sm:$0xf]
  %v25 = vld [vmem:[%s0 + $0x2c] sm:$0xf]
  %v26 = vld [vmem:[%s0 + $0x30] sm:$0xf]
  %v27 = vld [vmem:[%s0 + $0x34] sm:$0xf]
  %v28 = vld [vmem:[%s0 + $0x38] sm:$0xf]
  %v29 = vld [vmem:[%s0 + $0x3c] sm:$0xf]
  %v30 = vunpack.c.l.bf16 %v14
  %v31 = vunpack.c.l.bf16 %v15
  %v32 = vunpack.c.l.bf16 %v16
  %v33 = vunpack.c.l.bf16 %v17
  %v34 = vunpack.c.l.bf16 %v18
  %v35 = vunpack.c.l.bf16 %v19
  %v36 = vunpack.c.l.bf16 %v20
  %v37 = vunpack.c.l.bf16 %v21
  %v38 = vunpack.c.l.bf16 %v22
  %v39 = vunpack.c.l.bf16 %v23
  %v40 = vunpack.c.l.bf16 %v24
  %v41 = vunpack.c.l.bf16 %v25
  %v42 = vunpack.c.l.bf16 %v26
  %v43 = vunpack.c.l.bf16 %v27
  %v44 = vunpack.c.l.bf16 %v28
  %v45 = vunpack.c.l.bf16 %v29
  %v46 = vld [vmem:[%s2] ss:$0 sm:$0xff]
  %v47 = vmul.f32 %v30, %v46
  %v48 = vmul.f32 %v31, %v46
  %v49 = vmul.f32 %v32, %v46
  %v50 = vmul.f32 %v33, %v46
  %v51 = vmul.f32 %v34, %v46
  %v52 = vmul.f32 %v35, %v46
  %v53 = vmul.f32 %v36, %v46
  %v54 = vmul.f32 %v37, %v46
  %v55 = vmul.f32 %v38, %v46
  %v56 = vmul.f32 %v39, %v46
  %v57 = vmul.f32 %v40, %v46
  %v58 = vmul.f32 %v41, %v46
  %v59 = vmul.f32 %v42, %v46
  %v60 = vmul.f32 %v43, %v46
  %v61 = vmul.f32 %v44, %v46
  %v62 = vmul.f32 %v45, %v46
  %v63 = vld [vmem:[%s2 + $0x1] ss:$0 sm:$0xff]
  %v64 = vadd.f32 %v47, %v63
  %v65 = vadd.f32 %v48, %v63
  %v66 = vadd.f32 %v49, %v63
  %v67 = vadd.f32 %v50, %v63
  %v68 = vadd.f32 %v51, %v63
  %v69 = vadd.f32 %v52, %v63
  %v70 = vadd.f32 %v53, %v63
  %v71 = vadd.f32 %v54, %v63
  %v72 = vadd.f32 %v55, %v63
  %v73 = vadd.f32 %v56, %v63
  %v74 = vadd.f32 %v57, %v63
  %v75 = vadd.f32 %v58, %v63
  %v76 = vadd.f32 %v59, %v63
  %v77 = vadd.f32 %v60, %v63
  %v78 = vadd.f32 %v61, %v63
  %v79 = vadd.f32 %v62, %v63
  %v80 = vld [vmem:[%s1] sm:$0xf]
  %v81 = vld [vmem:[%s1 + $0x4] sm:$0xf]
  %v82 = vld [vmem:[%s1 + $0x8] sm:$0xf]
  %v83 = vld [vmem:[%s1 + $0xc] sm:$0xf]
  %v84 = vld [vmem:[%s1 + $0x10] sm:$0xf]
  %v85 = vld [vmem:[%s1 + $0x14] sm:$0xf]
  %v86 = vld [vmem:[%s1 + $0x18] sm:$0xf]
  %v87 = vld [vmem:[%s1 + $0x1c] sm:$0xf]
  %v88 = vld [vmem:[%s1 + $0x20] sm:$0xf]
  %v89 = vld [vmem:[%s1 + $0x24] sm:$0xf]
  %v90 = vld [vmem:[%s1 + $0x28] sm:$0xf]
  %v91 = vld [vmem:[%s1 + $0x2c] sm:$0xf]
  %v92 = vld [vmem:[%s1 + $0x30] sm:$0xf]
  %v93 = vld [vmem:[%s1 + $0x34] sm:$0xf]
  %v94 = vld [vmem:[%s1 + $0x38] sm:$0xf]
  %v95 = vld [vmem:[%s1 + $0x3c] sm:$0xf]
  %v96 = vunpack.c.l.bf16 %v80
  %v97 = vunpack.c.l.bf16 %v81
  %v98 = vunpack.c.l.bf16 %v82
  %v99 = vunpack.c.l.bf16 %v83
  %v100 = vunpack.c.l.bf16 %v84
  %v101 = vunpack.c.l.bf16 %v85
  %v102 = vunpack.c.l.bf16 %v86
  %v103 = vunpack.c.l.bf16 %v87
  %v104 = vunpack.c.l.bf16 %v88
  %v105 = vunpack.c.l.bf16 %v89
  %v106 = vunpack.c.l.bf16 %v90
  %v107 = vunpack.c.l.bf16 %v91
  %v108 = vunpack.c.l.bf16 %v92
  %v109 = vunpack.c.l.bf16 %v93
  %v110 = vunpack.c.l.bf16 %v94
  %v111 = vunpack.c.l.bf16 %v95
  %v112 = vld [vmem:[%s2 + $0x8] ss:$0 sm:$0xff]
  %v113 = vmul.f32 %v96, %v112
  %v114 = vmul.f32 %v97, %v112
  %v115 = vmul.f32 %v98, %v112
  %v116 = vmul.f32 %v99, %v112
  %v117 = vmul.f32 %v100, %v112
  %v118 = vmul.f32 %v101, %v112
  %v119 = vmul.f32 %v102, %v112
  %v120 = vmul.f32 %v103, %v112
  %v121 = vmul.f32 %v104, %v112
  %v122 = vmul.f32 %v105, %v112
  %v123 = vmul.f32 %v106, %v112
  %v124 = vmul.f32 %v107, %v112
  %v125 = vmul.f32 %v108, %v112
  %v126 = vmul.f32 %v109, %v112
  %v127 = vmul.f32 %v110, %v112
  %v128 = vmul.f32 %v111, %v112
  %v129 = vld [vmem:[%s2 + $0x9] ss:$0 sm:$0xff]
  %v130 = vadd.f32 %v113, %v129
  %v131 = vadd.f32 %v114, %v129
  %v132 = vadd.f32 %v115, %v129
  %v133 = vadd.f32 %v116, %v129
  %v134 = vadd.f32 %v117, %v129
  %v135 = vadd.f32 %v118, %v129
  %v136 = vadd.f32 %v119, %v129
  %v137 = vadd.f32 %v120, %v129
  %v138 = vadd.f32 %v121, %v129
  %v139 = vadd.f32 %v122, %v129
  %v140 = vadd.f32 %v123, %v129
  %v141 = vadd.f32 %v124, %v129
  %v142 = vadd.f32 %v125, %v129
  %v143 = vadd.f32 %v126, %v129
  %v144 = vadd.f32 %v127, %v129
  %v145 = vadd.f32 %v128, %v129
  %v146 = vadd.f32 %v64, %v130
  %v147 = vadd.f32 %v65, %v131
  %v148 = vadd.f32 %v66, %v132
  %v149 = vadd.f32 %v67, %v133
  %v150 = vadd.f32 %v68, %v134
  %v151 = vadd.f32 %v69, %v135
  %v152 = vadd.f32 %v70, %v136
  %v153 = vadd.f32 %v71, %v137
  %v154 = vadd.f32 %v72, %v138
  %v155 = vadd.f32 %v73, %v139
  %v156 = vadd.f32 %v74, %v140
  %v157 = vadd.f32 %v75, %v141
  %v158 = vadd.f32 %v76, %v142
  %v159 = vadd.f32 %v77, %v143
  %v160 = vadd.f32 %v78, %v144
  %v161 = vadd.f32 %v79, %v145
  %v162 = vmax.f32 %v146, 0.0
  %v163 = vmax.f32 %v147, 0.0
  %v164 = vmax.f32 %v148, 0.0
  %v165 = vmax.f32 %v149, 0.0
  %v166 = vmax.f32 %v150, 0.0
  %v167 = vmax.f32 %v151, 0.0
  %v168 = vmax.f32 %v152, 0.0
  %v169 = vmax.f32 %v153, 0.0
  %v170 = vmax.f32 %v154, 0.0
  %v171 = vmax.f32 %v155, 0.0
  %v172 = vmax.f32 %v156, 0.0
  %v173 = vmax.f32 %v157, 0.0
  %v174 = vmax.f32 %v158, 0.0
  %v175 = vmax.f32 %v159, 0.0
  %v176 = vmax.f32 %v160, 0.0
  %v177 = vmax.f32 %v161, 0.0
  %178 = vst [vmem:[%s3] sm:$0xff] %v162
  %179 = vst [vmem:[%s3 + $0x8] sm:$0xff] %v163
  %180 = vst [vmem:[%s3 + $0x10] sm:$0xff] %v164
  %181 = vst [vmem:[%s3 + $0x18] sm:$0xff] %v165
  %182 = vst [vmem:[%s3 + $0x20] sm:$0xff] %v166
  %183 = vst [vmem:[%s3 + $0x28] sm:$0xff] %v167
  %184 = vst [vmem:[%s3 + $0x30] sm:$0xff] %v168
  %185 = vst [vmem:[%s3 + $0x38] sm:$0xff] %v169
  %186 = vst [vmem:[%s3 + $0x40] sm:$0xff] %v170
  %187 = vst [vmem:[%s3 + $0x48] sm:$0xff] %v171
  %188 = vst [vmem:[%s3 + $0x50] sm:$0xff] %v172
  %189 = vst [vmem:[%s3 + $0x58] sm:$0xff] %v173
  %190 = vst [vmem:[%s3 + $0x60] sm:$0xff] %v174
  %191 = vst [vmem:[%s3 + $0x68] sm:$0xff] %v175
  %192 = vst [vmem:[%s3 + $0x70] sm:$0xff] %v176
  %193 = vst [vmem:[%s3 + $0x78] sm:$0xff] %v177
  // Predicated region
  $region14: #{residual_block_diff.5} parent=0 // pred_check
    _
  $region15: #{residual_block_diff.5} parent=0 // pred_check_branch
    %195 = sbr.rel (0) target = $region17
  $region16: #{residual_block_diff.5} parent=0 // pred_region
    _
  $region17: #{residual_block_diff.5} parent=0 // pred_fallthru
    _
  // Predicated region
  $region18: #{residual_block_diff.5} parent=0 // pred_check
    _
  $region19: #{residual_block_diff.5} parent=0 // pred_check_branch
    %197 = sbr.rel (0) target = $region21
  $region20: #{residual_block_diff.5} parent=0 // pred_region
    _
  $region21: #{residual_block_diff.5} parent=0 // pred_fallthru
    _

// kernel: residual_block_diff.4
$region0: #{residual_block_diff.4}
  #allocation0 [shape = 'u32[]', space=smem, size = 0x4, offset = 0x4, fixed_abs, tag = 'smem constant byte address 0x4 - core index']
  #allocation1 [shape = 'u32[144,128]{1,0:T(1,128)}', space=vmem, size = 0x12000, scoped, tag = 'internal scratch']
  #allocation2 [shape = 'bf16[2,10,10,128]{3,2,1,0:T(8,128)(2,1)}', space=vmem, size = 0x14000, scoped, tag = 'scratch operand']
  %s0 = inlined_call_operand.vmem [shape: bf16[2,8,8,128], index: 0, kind: input, shape index: {}]
  %s1 = inlined_call_operand.vmem [shape: bf16[9,128,128], index: 1, kind: input, shape index: {}]
  %s2 = inlined_call_operand.vmem [shape: f32[8,128], index: 2, kind: input, shape index: {}]
  %s3 = inlined_call_operand.vmem [shape: bf16[128,128], index: 3, kind: output, shape index: {0}]
  %s4 = inlined_call_operand.vmem [shape: f32[1,2,128], index: 4, kind: output, shape index: {1}]
  %5 = xla_tuple %s3, %s4
  %s6 = sld [smem:[#allocation0]]
  $region30: #{residual_block_diff.4} parent=0
    _
  %s8 = ssub.s32 1, %s6
  %s9 = scalar_select 0, %s8, %s6
  // Predicated region
  $region2: #{residual_block_diff.4} parent=0 // pred_check
    _
  $region3: #{residual_block_diff.4} parent=0 // pred_check_branch
    %11 = sbr.rel (0) target = $region5
  $region4: #{residual_block_diff.4} parent=0 // pred_region
    _
  $region5: #{residual_block_diff.4} parent=0 // pred_fallthru
    _
  // Predicated region
  $region6: #{residual_block_diff.4} parent=0 // pred_check
    _
  $region7: #{residual_block_diff.4} parent=0 // pred_check_branch
    %13 = sbr.rel (0) target = $region9
  $region8: #{residual_block_diff.4} parent=0 // pred_region
    _
  $region9: #{residual_block_diff.4} parent=0 // pred_fallthru
    _
  // Predicated region
  $region10: #{residual_block_diff.4} parent=0 // pred_check
    _
  $region11: #{residual_block_diff.4} parent=0 // pred_check_branch
    %15 = sbr.rel (0) target = $region13
  $region12: #{residual_block_diff.4} parent=0 // pred_region
    _
  $region13: #{residual_block_diff.4} parent=0 // pred_fallthru
    _
  %v17 = vld [vmem:[%s2] sm:$0x1]
  %v18 = vld [vmem:[%s2 + $0x1] sm:$0x1]
  %v19 = vld [vmem:[%s0] sm:$0xf]
  %v20 = vld [vmem:[%s0 + $0x4] sm:$0xf]
  %v21 = vld [vmem:[%s0 + $0x8] sm:$0xf]
  %v22 = vld [vmem:[%s0 + $0xc] sm:$0xf]
  %v23 = vld [vmem:[%s0 + $0x10] sm:$0xf]
  %v24 = vld [vmem:[%s0 + $0x14] sm:$0xf]
  %v25 = vld [vmem:[%s0 + $0x18] sm:$0xf]
  %v26 = vld [vmem:[%s0 + $0x1c] sm:$0xf]
  %v27 = vld [vmem:[%s0 + $0x20] sm:$0xf]
  %v28 = vld [vmem:[%s0 + $0x24] sm:$0xf]
  %v29 = vld [vmem:[%s0 + $0x28] sm:$0xf]
  %v30 = vld [vmem:[%s0 + $0x2c] sm:$0xf]
  %v31 = vld [vmem:[%s0 + $0x30] sm:$0xf]
  %v32 = vld [vmem:[%s0 + $0x34] sm:$0xf]
  %v33 = vld [vmem:[%s0 + $0x38] sm:$0xf]
  %v34 = vld [vmem:[%s0 + $0x3c] sm:$0xf]
  %v35 = vunpack.c.l.bf16 %v19
  %v36 = vunpack.c.l.bf16 %v20
  %v37 = vunpack.c.l.bf16 %v21
  %v38 = vunpack.c.l.bf16 %v22
  %v39 = vunpack.c.l.bf16 %v23
  %v40 = vunpack.c.l.bf16 %v24
  %v41 = vunpack.c.l.bf16 %v25
  %v42 = vunpack.c.l.bf16 %v26
  %v43 = vunpack.c.l.bf16 %v27
  %v44 = vunpack.c.l.bf16 %v28
  %v45 = vunpack.c.l.bf16 %v29
  %v46 = vunpack.c.l.bf16 %v30
  %v47 = vunpack.c.l.bf16 %v31
  %v48 = vunpack.c.l.bf16 %v32
  %v49 = vunpack.c.l.bf16 %v33
  %v50 = vunpack.c.l.bf16 %v34
  %v51 = vlaneseq
  %v52 = vshrl.u32 %v51, 7
  %v53 = vsub.s32 0, %v52
  %v54 = vrot.slane %v17, %v53
  %v55 = vmul.f32 %v35, %v54
  %v56 = vmul.f32 %v36, %v54
  %v57 = vmul.f32 %v37, %v54
  %v58 = vmul.f32 %v38, %v54
  %v59 = vmul.f32 %v39, %v54
  %v60 = vmul.f32 %v40, %v54
  %v61 = vmul.f32 %v41, %v54
  %v62 = vmul.f32 %v42, %v54
  %v63 = vmul.f32 %v43, %v54
  %v64 = vmul.f32 %v44, %v54
  %v65 = vmul.f32 %v45, %v54
  %v66 = vmul.f32 %v46, %v54
  %v67 = vmul.f32 %v47, %v54
  %v68 = vmul.f32 %v48, %v54
  %v69 = vmul.f32 %v49, %v54
  %v70 = vmul.f32 %v50, %v54
  %v71 = vlaneseq
  %v72 = vshrl.u32 %v71, 7
  %v73 = vsub.s32 0, %v72
  %v74 = vrot.slane %v18, %v73
  %v75 = vadd.f32 %v55, %v74
  %v76 = vadd.f32 %v56, %v74
  %v77 = vadd.f32 %v57, %v74
  %v78 = vadd.f32 %v58, %v74
  %v79 = vadd.f32 %v59, %v74
  %v80 = vadd.f32 %v60, %v74
  %v81 = vadd.f32 %v61, %v74
  %v82 = vadd.f32 %v62, %v74
  %v83 = vadd.f32 %v63, %v74
  %v84 = vadd.f32 %v64, %v74
  %v85 = vadd.f32 %v65, %v74
  %v86 = vadd.f32 %v66, %v74
  %v87 = vadd.f32 %v67, %v74
  %v88 = vadd.f32 %v68, %v74
  %v89 = vadd.f32 %v69, %v74
  %v90 = vadd.f32 %v70, %v74
  %v91 = vmax.f32 %v75, 0.0
  %v92 = vmax.f32 %v76, 0.0
  %v93 = vmax.f32 %v77, 0.0
  %v94 = vmax.f32 %v78, 0.0
  %v95 = vmax.f32 %v79, 0.0
  %v96 = vmax.f32 %v80, 0.0
  %v97 = vmax.f32 %v81, 0.0
  %v98 = vmax.f32 %v82, 0.0
  %v99 = vmax.f32 %v83, 0.0
  %v100 = vmax.f32 %v84, 0.0
  %v101 = vmax.f32 %v85, 0.0
  %v102 = vmax.f32 %v86, 0.0
  %v103 = vmax.f32 %v87, 0.0
  %v104 = vmax.f32 %v88, 0.0
  %v105 = vmax.f32 %v89, 0.0
  %v106 = vmax.f32 %v90, 0.0
  %107 = vst [vmem:[#allocation2] sm:$0xf] 0
  %108 = vst [vmem:[#allocation2 + $0x4] sm:$0x1] 0
  %109 = vst [vmem:[#allocation2 + $0x8] sm:$0xf] 0
  %110 = vst [vmem:[#allocation2 + $0xc] sm:$0x1] 0
  %111 = vst [vmem:[#allocation2 + $0x10] sm:$0xf] 0
  %112 = vst [vmem:[#allocation2 + $0x14] sm:$0x1] 0
  %113 = vst [vmem:[#allocation2 + $0x18] sm:$0xf] 0
  %114 = vst [vmem:[#allocation2 + $0x1c] sm:$0x1] 0
  %115 = vst [vmem:[#allocation2 + $0x20] sm:$0xf] 0
  %116 = vst [vmem:[#allocation2 + $0x24] sm:$0x1] 0
  %117 = vst [vmem:[#allocation2 + $0x28] sm:$0xf] 0
  %118 = vst [vmem:[#allocation2 + $0x2c] sm:$0x1] 0
  %119 = vst [vmem:[#allocation2 + $0x30] sm:$0xf] 0
  %120 = vst [vmem:[#allocation2 + $0x34] sm:$0x1] 0
  %121 = vst [vmem:[#allocation2 + $0x38] sm:$0xf] 0
  %122 = vst [vmem:[#allocation2 + $0x3c] sm:$0x1] 0
  %123 = vst [vmem:[#allocation2 + $0x40] sm:$0xf] 0
  %124 = vst [vmem:[#allocation2 + $0x44] sm:$0x1] 0
  %125 = vst [vmem:[#allocation2 + $0x48] sm:$0xf] 0
  %126 = vst [vmem:[#allocation2 + $0x4c] sm:$0x1] 0
  %127 = vst [vmem:[#allocation2 + $0x50] sm:$0xf] 0
  %128 = vst [vmem:[#allocation2 + $0x54] sm:$0x1] 0
  %129 = vst [vmem:[#allocation2 + $0x58] sm:$0xf] 0
  %130 = vst [vmem:[#allocation2 + $0x5c] sm:$0x1] 0
  %131 = vst [vmem:[#allocation2 + $0x60] sm:$0xf] 0
  %132 = vst [vmem:[#allocation2 + $0x64] sm:$0x1] 0
  %133 = vst [vmem:[#allocation2 + $0x68] sm:$0xf] 0
  %134 = vst [vmem:[#allocation2 + $0x6c] sm:$0x1] 0
  %135 = vst [vmem:[#allocation2 + $0x70] sm:$0xf] 0
  %136 = vst [vmem:[#allocation2 + $0x74] sm:$0x1] 0
  %137 = vst [vmem:[#allocation2 + $0x78] sm:$0xf] 0
  %138 = vst [vmem:[#allocation2 + $0x7c] sm:$0x1] 0
  %139 = vst [vmem:[#allocation2 + $0x80] sm:$0xf] 0
  %140 = vst [vmem:[#allocation2 + $0x84] sm:$0x1] 0
  %141 = vst [vmem:[#allocation2 + $0x88] sm:$0xf] 0
  %142 = vst [vmem:[#allocation2 + $0x8c] sm:$0x1] 0
  %143 = vst [vmem:[#allocation2 + $0x90] sm:$0xf] 0
  %144 = vst [vmem:[#allocation2 + $0x94] sm:$0x1] 0
  %145 = vst [vmem:[#allocation2 + $0x98] sm:$0xf] 0
  %146 = vst [vmem:[#allocation2 + $0x9c] sm:$0x1] 0
  %v147 = vpack.c.bf16 %v91, %v91
  %v148 = vpack.c.bf16 %v92, %v92
  %v149 = vpack.c.bf16 %v93, %v93
  %v150 = vpack.c.bf16 %v94, %v94
  %v151 = vpack.c.bf16 %v95, %v95
  %v152 = vpack.c.bf16 %v96, %v96
  %v153 = vpack.c.bf16 %v97, %v97
  %v154 = vpack.c.bf16 %v98, %v98
  %v155 = vpack.c.bf16 %v99, %v99
  %v156 = vpack.c.bf16 %v100, %v100
  %v157 = vpack.c.bf16 %v101, %v101
  %v158 = vpack.c.bf16 %v102, %v102
  %v159 = vpack.c.bf16 %v103, %v103
  %v160 = vpack.c.bf16 %v104, %v104
  %v161 = vpack.c.bf16 %v105, %v105
  %v162 = vpack.c.bf16 %v106, %v106
  %v179 = vunpack.c.l.b16 %v147
  %v180 = vunpack.c.l.b16 %v148
  %v181 = vunpack.c.l.b16 %v149
  %v182 = vunpack.c.l.b16 %v150
  %v183 = vunpack.c.l.b16 %v151
  %v184 = vunpack.c.l.b16 %v152
  %v185 = vunpack.c.l.b16 %v153
  %v186 = vunpack.c.l.b16 %v154
  %v187 = vunpack.c.l.b16 %v155
  %v188 = vunpack.c.l.b16 %v156
  %v189 = vunpack.c.l.b16 %v157
  %v190 = vunpack.c.l.b16 %v158
  %v191 = vunpack.c.l.b16 %v159
  %v192 = vunpack.c.l.b16 %v160
  %v193 = vunpack.c.l.b16 %v161
  %v194 = vunpack.c.l.b16 %v162
  %v195 = vpack.c.b16 %v179, %v179
  %v196 = vpack.c.b16 %v180, %v180
  %v197 = vpack.c.b16 %v181, %v181
  %v198 = vpack.c.b16 %v182, %v182
  %v199 = vpack.c.b16 %v183, %v183
  %v200 = vpack.c.b16 %v184, %v184
  %v201 = vpack.c.b16 %v185, %v185
  %v202 = vpack.c.b16 %v186, %v186
  %v203 = vpack.c.b16 %v187, %v187
  %v204 = vpack.c.b16 %v188, %v188
  %v205 = vpack.c.b16 %v189, %v189
  %v206 = vpack.c.b16 %v190, %v190
  %v207 = vpack.c.b16 %v191, %v191
  %v208 = vpack.c.b16 %v192, %v192
  %v209 = vpack.c.b16 %v193, %v193
  %v210 = vpack.c.b16 %v194, %v194
  %v212 = vshrl.u32 %v195, 16
  %v214 = vrot.slane %v212, 7
  %v215 = vshll.u32 %v195, 16
  %v217 = vor.u32 %v214, %v215
  %v218 = vrot.slane %v214, 4
  %v220 = vshrl.u32 %v196, 16
  %v222 = vrot.slane %v220, 7
  %v223 = vshll.u32 %v196, 16
  %v225 = vor.u32 %v222, %v223
  %v226 = vrot.slane %v222, 4
  %v228 = vshrl.u32 %v197, 16
  %v230 = vrot.slane %v228, 7
  %v231 = vshll.u32 %v197, 16
  %v233 = vor.u32 %v230, %v231
  %v234 = vrot.slane %v230, 4
  %v236 = vshrl.u32 %v198, 16
  %v238 = vrot.slane %v236, 7
  %v239 = vshll.u32 %v198, 16
  %v241 = vor.u32 %v238, %v239
  %v242 = vrot.slane %v238, 4
  %v244 = vshrl.u32 %v199, 16
  %v246 = vrot.slane %v244, 7
  %v247 = vshll.u32 %v199, 16
  %v249 = vor.u32 %v246, %v247
  %v250 = vrot.slane %v246, 4
  %v252 = vshrl.u32 %v200, 16
  %v254 = vrot.slane %v252, 7
  %v255 = vshll.u32 %v200, 16
  %v257 = vor.u32 %v254, %v255
  %v258 = vrot.slane %v254, 4
  %v260 = vshrl.u32 %v201, 16
  %v262 = vrot.slane %v260, 7
  %v263 = vshll.u32 %v201, 16
  %v265 = vor.u32 %v262, %v263
  %v266 = vrot.slane %v262, 4
  %v268 = vshrl.u32 %v202, 16
  %v270 = vrot.slane %v268, 7
  %v271 = vshll.u32 %v202, 16
  %v273 = vor.u32 %v270, %v271
  %v274 = vrot.slane %v270, 4
  %v276 = vshrl.u32 %v203, 16
  %v278 = vrot.slane %v276, 7
  %v279 = vshll.u32 %v203, 16
  %v281 = vor.u32 %v278, %v279
  %v282 = vrot.slane %v278, 4
  %v284 = vshrl.u32 %v204, 16
  %v286 = vrot.slane %v284, 7
  %v287 = vshll.u32 %v204, 16
  %v289 = vor.u32 %v286, %v287
  %v290 = vrot.slane %v286, 4
  %v292 = vshrl.u32 %v205, 16
  %v294 = vrot.slane %v292, 7
  %v295 = vshll.u32 %v205, 16
  %v297 = vor.u32 %v294, %v295
  %v298 = vrot.slane %v294, 4
  %v300 = vshrl.u32 %v206, 16
  %v302 = vrot.slane %v300, 7
  %v303 = vshll.u32 %v206, 16
  %v305 = vor.u32 %v302, %v303
  %v306 = vrot.slane %v302, 4
  %v308 = vshrl.u32 %v207, 16
  %v310 = vrot.slane %v308, 7
  %v311 = vshll.u32 %v207, 16
  %v313 = vor.u32 %v310, %v311
  %v314 = vrot.slane %v310, 4
  %v316 = vshrl.u32 %v208, 16
  %v318 = vrot.slane %v316, 7
  %v319 = vshll.u32 %v208, 16
  %v321 = vor.u32 %v318, %v319
  %v322 = vrot.slane %v318, 4
  %v324 = vshrl.u32 %v209, 16
  %v326 = vrot.slane %v324, 7
  %v327 = vshll.u32 %v209, 16
  %v329 = vor.u32 %v326, %v327
  %v330 = vrot.slane %v326, 4
  %v332 = vshrl.u32 %v210, 16
  %v334 = vrot.slane %v332, 7
  %v335 = vshll.u32 %v210, 16
  %v337 = vor.u32 %v334, %v335
  %v338 = vrot.slane %v334, 4
  %s371 = scalar_lea.vmem [#allocation2], 8
  %vm372 = vcmask 1043456
  %vm373 = vsmask.f32 7938
  %vm374 = vmand %vm372, %vm373
  %v375 = vld [vmem:[%s371] sm:$0xf]
  %v376 = vsel %vm374, %v217, %v375
  %377 = vst [vmem:[%s371] sm:$0xf] %v376
  %vm378 = vcmask 1040384
  %vm379 = vsmask.f32 256
  %vm380 = vmand %vm378, %vm379
  %v381 = vld [vmem:[%s371 + $0x4] sm:$0x1]
  %v382 = vsel %vm380, %v218, %v381
  %383 = vst [vmem:[%s371 + $0x4] sm:$0x1] %v382
  %v384 = vld [vmem:[%s371 + $0x8] sm:$0xf]
  %v385 = vsel %vm374, %v225, %v384
  %386 = vst [vmem:[%s371 + $0x8] sm:$0xf] %v385
  %v387 = vld [vmem:[%s371 + $0xc] sm:$0x1]
  %v388 = vsel %vm380, %v226, %v387
  %389 = vst [vmem:[%s371 + $0xc] sm:$0x1] %v388
  %v390 = vld [vmem:[%s371 + $0x10] sm:$0xf]
  %v391 = vsel %vm374, %v233, %v390
  %392 = vst [vmem:[%s371 + $0x10] sm:$0xf] %v391
  %v393 = vld [vmem:[%s371 + $0x14] sm:$0x1]
  %v394 = vsel %vm380, %v234, %v393
  %395 = vst [vmem:[%s371 + $0x14] sm:$0x1] %v394
  %v396 = vld [vmem:[%s371 + $0x18] sm:$0xf]
  %v397 = vsel %vm374, %v241, %v396
  %398 = vst [vmem:[%s371 + $0x18] sm:$0xf] %v397
  %v399 = vld [vmem:[%s371 + $0x1c] sm:$0x1]
  %v400 = vsel %vm380, %v242, %v399
  %401 = vst [vmem:[%s371 + $0x1c] sm:$0x1] %v400
  %v402 = vld [vmem:[%s371 + $0x20] sm:$0xf]
  %v403 = vsel %vm374, %v249, %v402
  %404 = vst [vmem:[%s371 + $0x20] sm:$0xf] %v403
  %v405 = vld [vmem:[%s371 + $0x24] sm:$0x1]
  %v406 = vsel %vm380, %v250, %v405
  %407 = vst [vmem:[%s371 + $0x24] sm:$0x1] %v406
  %v408 = vld [vmem:[%s371 + $0x28] sm:$0xf]
  %v409 = vsel %vm374, %v257, %v408
  %410 = vst [vmem:[%s371 + $0x28] sm:$0xf] %v409
  %v411 = vld [vmem:[%s371 + $0x2c] sm:$0x1]
  %v412 = vsel %vm380, %v258, %v411
  %413 = vst [vmem:[%s371 + $0x2c] sm:$0x1] %v412
  %v414 = vld [vmem:[%s371 + $0x30] sm:$0xf]
  %v415 = vsel %vm374, %v265, %v414
  %416 = vst [vmem:[%s371 + $0x30] sm:$0xf] %v415
  %v417 = vld [vmem:[%s371 + $0x34] sm:$0x1]
  %v418 = vsel %vm380, %v266, %v417
  %419 = vst [vmem:[%s371 + $0x34] sm:$0x1] %v418
  %v420 = vld [vmem:[%s371 + $0x38] sm:$0xf]
  %v421 = vsel %vm374, %v273, %v420
  %422 = vst [vmem:[%s371 + $0x38] sm:$0xf] %v421
  %v423 = vld [vmem:[%s371 + $0x3c] sm:$0x1]
  %v424 = vsel %vm380, %v274, %v423
  %425 = vst [vmem:[%s371 + $0x3c] sm:$0x1] %v424
  %v426 = vld [vmem:[%s371 + $0x50] sm:$0xf]
  %v427 = vsel %vm374, %v281, %v426
  %428 = vst [vmem:[%s371 + $0x50] sm:$0xf] %v427
  %v429 = vld [vmem:[%s371 + $0x54] sm:$0x1]
  %v430 = vsel %vm380, %v282, %v429
  %431 = vst [vmem:[%s371 + $0x54] sm:$0x1] %v430
  %v432 = vld [vmem:[%s371 + $0x58] sm:$0xf]
  %v433 = vsel %vm374, %v289, %v432
  %434 = vst [vmem:[%s371 + $0x58] sm:$0xf] %v433
  %v435 = vld [vmem:[%s371 + $0x5c] sm:$0x1]
  %v436 = vsel %vm380, %v290, %v435
  %437 = vst [vmem:[%s371 + $0x5c] sm:$0x1] %v436
  %v438 = vld [vmem:[%s371 + $0x60] sm:$0xf]
  %v439 = vsel %vm374, %v297, %v438
  %440 = vst [vmem:[%s371 + $0x60] sm:$0xf] %v439
  %v441 = vld [vmem:[%s371 + $0x64] sm:$0x1]
  %v442 = vsel %vm380, %v298, %v441
  %443 = vst [vmem:[%s371 + $0x64] sm:$0x1] %v442
  %v444 = vld [vmem:[%s371 + $0x68] sm:$0xf]
  %v445 = vsel %vm374, %v305, %v444
  %446 = vst [vmem:[%s371 + $0x68] sm:$0xf] %v445
  %v447 = vld [vmem:[%s371 + $0x6c] sm:$0x1]
  %v448 = vsel %vm380, %v306, %v447
  %449 = vst [vmem:[%s371 + $0x6c] sm:$0x1] %v448
  %v450 = vld [vmem:[%s371 + $0x70] sm:$0xf]
  %v451 = vsel %vm374, %v313, %v450
  %452 = vst [vmem:[%s371 + $0x70] sm:$0xf] %v451
  %v453 = vld [vmem:[%s371 + $0x74] sm:$0x1]
  %v454 = vsel %vm380, %v314, %v453
  %455 = vst [vmem:[%s371 + $0x74] sm:$0x1] %v454
  %v456 = vld [vmem:[%s371 + $0x78] sm:$0xf]
  %v457 = vsel %vm374, %v321, %v456
  %458 = vst [vmem:[%s371 + $0x78] sm:$0xf] %v457
  %v459 = vld [vmem:[%s371 + $0x7c] sm:$0x1]
  %v460 = vsel %vm380, %v322, %v459
  %461 = vst [vmem:[%s371 + $0x7c] sm:$0x1] %v460
  %v462 = vld [vmem:[%s371 + $0x80] sm:$0xf]
  %v463 = vsel %vm374, %v329, %v462
  %464 = vst [vmem:[%s371 + $0x80] sm:$0xf] %v463
  %v465 = vld [vmem:[%s371 + $0x84] sm:$0x1]
  %v466 = vsel %vm380, %v330, %v465
  %467 = vst [vmem:[%s371 + $0x84] sm:$0x1] %v466
  %v468 = vld [vmem:[%s371 + $0x88] sm:$0xf]
  %v469 = vsel %vm374, %v337, %v468
  %470 = vst [vmem:[%s371 + $0x88] sm:$0xf] %v469
  %v471 = vld [vmem:[%s371 + $0x8c] sm:$0x1]
  %v472 = vsel %vm380, %v338, %v471
  %473 = vst [vmem:[%s371 + $0x8c] sm:$0x1] %v472
  %v474 = vld [vmem:[#allocation2] sm:$0xf]
  %v475 = vld [vmem:[#allocation2 + $0x8] sm:$0xf]
  %v476 = vld [vmem:[#allocation2 + $0x10] sm:$0xf]
  %v477 = vld [vmem:[#allocation2 + $0x18] sm:$0xf]
  %v478 = vld [vmem:[#allocation2 + $0x20] sm:$0xf]
  %v479 = vld [vmem:[#allocation2 + $0x28] sm:$0xf]
  %v480 = vld [vmem:[#allocation2 + $0x30] sm:$0xf]
  %v481 = vld [vmem:[#allocation2 + $0x38] sm:$0xf]
  %v482 = vld [vmem:[#allocation2 + $0x50] sm:$0xf]
  %v483 = vld [vmem:[#allocation2 + $0x58] sm:$0xf]
  %v484 = vld [vmem:[#allocation2 + $0x60] sm:$0xf]
  %v485 = vld [vmem:[#allocation2 + $0x68] sm:$0xf]
  %v486 = vld [vmem:[#allocation2 + $0x70] sm:$0xf]
  %v487 = vld [vmem:[#allocation2 + $0x78] sm:$0xf]
  %v488 = vld [vmem:[#allocation2 + $0x80] sm:$0xf]
  %v489 = vld [vmem:[#allocation2 + $0x88] sm:$0xf]
  %v490 = vld [vmem:[%s1] sm:$0xf]
  %v491 = vld [vmem:[%s1 + $0x4] sm:$0xf]
  %v492 = vld [vmem:[%s1 + $0x8] sm:$0xf]
  %v493 = vld [vmem:[%s1 + $0xc] sm:$0xf]
  %v494 = vld [vmem:[%s1 + $0x10] sm:$0xf]
  %v495 = vld [vmem:[%s1 + $0x14] sm:$0xf]
  %v496 = vld [vmem:[%s1 + $0x18] sm:$0xf]
  %v497 = vld [vmem:[%s1 + $0x1c] sm:$0xf]
  %v498 = vld [vmem:[%s1 + $0x20] sm:$0xf]
  %v499 = vld [vmem:[%s1 + $0x24] sm:$0xf]
  %v500 = vld [vmem:[%s1 + $0x28] sm:$0xf]
  %v501 = vld [vmem:[%s1 + $0x2c] sm:$0xf]
  %v502 = vld [vmem:[%s1 + $0x30] sm:$0xf]
  %v503 = vld [vmem:[%s1 + $0x34] sm:$0xf]
  %v504 = vld [vmem:[%s1 + $0x38] sm:$0xf]
  %v505 = vld [vmem:[%s1 + $0x3c] sm:$0xf]
  %v506 = vld [vmem:[#allocation2 + $0x4] sm:$0x1]
  %v507 = vld [vmem:[#allocation2 + $0xc] sm:$0x1]
  %v508 = vld [vmem:[#allocation2 + $0x14] sm:$0x1]
  %v509 = vld [vmem:[#allocation2 + $0x1c] sm:$0x1]
  %v510 = vld [vmem:[#allocation2 + $0x24] sm:$0x1]
  %v511 = vld [vmem:[#allocation2 + $0x2c] sm:$0x1]
  %v512 = vld [vmem:[#allocation2 + $0x34] sm:$0x1]
  %v513 = vld [vmem:[#allocation2 + $0x3c] sm:$0x1]
  %v514 = vld [vmem:[#allocation2 + $0x54] sm:$0x1]
  %v515 = vld [vmem:[#allocation2 + $0x5c] sm:$0x1]
  %v516 = vld [vmem:[#allocation2 + $0x64] sm:$0x1]
  %v517 = vld [vmem:[#allocation2 + $0x6c] sm:$0x1]
  %v518 = vld [vmem:[#allocation2 + $0x74] sm:$0x1]
  %v519 = vld [vmem:[#allocation2 + $0x7c] sm:$0x1]
  %v520 = vld [vmem:[#allocation2 + $0x84] sm:$0x1]
  %v521 = vld [vmem:[#allocation2 + $0x8c] sm:$0x1]
  %vm522 = vsmask.f32 3328
  %vm523 = vsmask.f32 7440
  %vm524 = vmor %vm522, %vm523
  %v526 = vshrl.u32 %v474, 16
  %v528 = vrot.slane %v526, 4
  %v529 = vshll.u32 %v474, 16
  %v531 = vrot.slane %v529, 5
  %v532 = vor.u32 %v528, %v531
  %v533 = vrot.slane %v532, 4
  %v535 = vshll.u32 %v506, 16
  %v537 = vrot.slane %v535, 5
  %v538 = vsel %vm524, %v533, %v537
  %v540 = vshrl.u32 %v475, 16
  %v542 = vrot.slane %v540, 4
  %v543 = vshll.u32 %v475, 16
  %v545 = vrot.slane %v543, 5
  %v546 = vor.u32 %v542, %v545
  %v547 = vrot.slane %v546, 4
  %v549 = vshll.u32 %v507, 16
  %v551 = vrot.slane %v549, 5
  %v552 = vsel %vm524, %v547, %v551
  %v554 = vshrl.u32 %v476, 16
  %v556 = vrot.slane %v554, 4
  %v557 = vshll.u32 %v476, 16
  %v559 = vrot.slane %v557, 5
  %v560 = vor.u32 %v556, %v559
  %v561 = vrot.slane %v560, 4
  %v563 = vshll.u32 %v508, 16
  %v565 = vrot.slane %v563, 5
  %v566 = vsel %vm524, %v561, %v565
  %v568 = vshrl.u32 %v477, 16
  %v570 = vrot.slane %v568, 4
  %v571 = vshll.u32 %v477, 16
  %v573 = vrot.slane %v571, 5
  %v574 = vor.u32 %v570, %v573
  %v575 = vrot.slane %v574, 4
  %v577 = vshll.u32 %v509, 16
  %v579 = vrot.slane %v577, 5
  %v580 = vsel %vm524, %v575, %v579
  %v582 = vshrl.u32 %v478, 16
  %v584 = vrot.slane %v582, 4
  %v585 = vshll.u32 %v478, 16
  %v587 = vrot.slane %v585, 5
  %v588 = vor.u32 %v584, %v587
  %v589 = vrot.slane %v588, 4
  %v591 = vshll.u32 %v510, 16
  %v593 = vrot.slane %v591, 5
  %v594 = vsel %vm524, %v589, %v593
  %v596 = vshrl.u32 %v479, 16
  %v598 = vrot.slane %v596, 4
  %v599 = vshll.u32 %v479, 16
  %v601 = vrot.slane %v599, 5
  %v602 = vor.u32 %v598, %v601
  %v603 = vrot.slane %v602, 4
  %v605 = vshll.u32 %v511, 16
  %v607 = vrot.slane %v605, 5
  %v608 = vsel %vm524, %v603, %v607
  %v610 = vshrl.u32 %v480, 16
  %v612 = vrot.slane %v610, 4
  %v613 = vshll.u32 %v480, 16
  %v615 = vrot.slane %v613, 5
  %v616 = vor.u32 %v612, %v615
  %v617 = vrot.slane %v616, 4
  %v619 = vshll.u32 %v512, 16
  %v621 = vrot.slane %v619, 5
  %v622 = vsel %vm524, %v617, %v621
  %v624 = vshrl.u32 %v481, 16
  %v626 = vrot.slane %v624, 4
  %v627 = vshll.u32 %v481, 16
  %v629 = vrot.slane %v627, 5
  %v630 = vor.u32 %v626, %v629
  %v631 = vrot.slane %v630, 4
  %v633 = vshll.u32 %v513, 16
  %v635 = vrot.slane %v633, 5
  %v636 = vsel %vm524, %v631, %v635
  %v638 = vshrl.u32 %v482, 16
  %v640 = vrot.slane %v638, 4
  %v641 = vshll.u32 %v482, 16
  %v643 = vrot.slane %v641, 5
  %v644 = vor.u32 %v640, %v643
  %v645 = vrot.slane %v644, 4
  %v647 = vshll.u32 %v514, 16
  %v649 = vrot.slane %v647, 5
  %v650 = vsel %vm524, %v645, %v649
  %v652 = vshrl.u32 %v483, 16
  %v654 = vrot.slane %v652, 4
  %v655 = vshll.u32 %v483, 16
  %v657 = vrot.slane %v655, 5
  %v658 = vor.u32 %v654, %v657
  %v659 = vrot.slane %v658, 4
  %v661 = vshll.u32 %v515, 16
  %v663 = vrot.slane %v661, 5
  %v664 = vsel %vm524, %v659, %v663
  %v666 = vshrl.u32 %v484, 16
  %v668 = vrot.slane %v666, 4
  %v669 = vshll.u32 %v484, 16
  %v671 = vrot.slane %v669, 5
  %v672 = vor.u32 %v668, %v671
  %v673 = vrot.slane %v672, 4
  %v675 = vshll.u32 %v516, 16
  %v677 = vrot.slane %v675, 5
  %v678 = vsel %vm524, %v673, %v677
  %v680 = vshrl.u32 %v485, 16
  %v682 = vrot.slane %v680, 4
  %v683 = vshll.u32 %v485, 16
  %v685 = vrot.slane %v683, 5
  %v686 = vor.u32 %v682, %v685
  %v687 = vrot.slane %v686, 4
  %v689 = vshll.u32 %v517, 16
  %v691 = vrot.slane %v689, 5
  %v692 = vsel %vm524, %v687, %v691
  %v694 = vshrl.u32 %v486, 16
  %v696 = vrot.slane %v694, 4
  %v697 = vshll.u32 %v486, 16
  %v699 = vrot.slane %v697, 5
  %v700 = vor.u32 %v696, %v699
  %v701 = vrot.slane %v700, 4
  %v703 = vshll.u32 %v518, 16
  %v705 = vrot.slane %v703, 5
  %v706 = vsel %vm524, %v701, %v705
  %v708 = vshrl.u32 %v487, 16
  %v710 = vrot.slane %v708, 4
  %v711 = vshll.u32 %v487, 16
  %v713 = vrot.slane %v711, 5
  %v714 = vor.u32 %v710, %v713
  %v715 = vrot.slane %v714, 4
  %v717 = vshll.u32 %v519, 16
  %v719 = vrot.slane %v717, 5
  %v720 = vsel %vm524, %v715, %v719
  %v722 = vshrl.u32 %v488, 16
  %v724 = vrot.slane %v722, 4
  %v725 = vshll.u32 %v488, 16
  %v727 = vrot.slane %v725, 5
  %v728 = vor.u32 %v724, %v727
  %v729 = vrot.slane %v728, 4
  %v731 = vshll.u32 %v520, 16
  %v733 = vrot.slane %v731, 5
  %v734 = vsel %vm524, %v729, %v733
  %v736 = vshrl.u32 %v489, 16
  %v738 = vrot.slane %v736, 4
  %v739 = vshll.u32 %v489, 16
  %v741 = vrot.slane %v739, 5
  %v742 = vor.u32 %v738, %v741
  %v743 = vrot.slane %v742, 4
  %v745 = vshll.u32 %v521, 16
  %v747 = vrot.slane %v745, 5
  %v748 = vsel %vm524, %v743, %v747
  %s749 = scalar_lea.vmem %s1, 64
  %v750 = vld [vmem:[%s749] sm:$0xf]
  %v751 = vld [vmem:[%s749 + $0x4] sm:$0xf]
  %v752 = vld [vmem:[%s749 + $0x8] sm:$0xf]
  %v753 = vld [vmem:[%s749 + $0xc] sm:$0xf]
  %v754 = vld [vmem:[%s749 + $0x10] sm:$0xf]
  %v755 = vld [vmem:[%s749 + $0x14] sm:$0xf]
  %v756 = vld [vmem:[%s749 + $0x18] sm:$0xf]
  %v757 = vld [vmem:[%s749 + $0x1c] sm:$0xf]
  %v758 = vld [vmem:[%s749 + $0x20] sm:$0xf]
  %v759 = vld [vmem:[%s749 + $0x24] sm:$0xf]
  %v760 = vld [vmem:[%s749 + $0x28] sm:$0xf]
  %v761 = vld [vmem:[%s749 + $0x2c] sm:$0xf]
  %v762 = vld [vmem:[%s749 + $0x30] sm:$0xf]
  %v763 = vld [vmem:[%s749 + $0x34] sm:$0xf]
  %v764 = vld [vmem:[%s749 + $0x38] sm:$0xf]
  %v765 = vld [vmem:[%s749 + $0x3c] sm:$0xf]
  %v766 = vunpack.c.l.b16 %v538
  %v767 = vunpack.c.l.b16 %v552
  %v768 = vunpack.c.l.b16 %v566
  %v769 = vunpack.c.l.b16 %v580
  %v770 = vunpack.c.l.b16 %v594
  %v771 = vunpack.c.l.b16 %v608
  %v772 = vunpack.c.l.b16 %v622
  %v773 = vunpack.c.l.b16 %v636
  %v774 = vunpack.c.l.b16 %v650
  %v775 = vunpack.c.l.b16 %v664
  %v776 = vunpack.c.l.b16 %v678
  %v777 = vunpack.c.l.b16 %v692
  %v778 = vunpack.c.l.b16 %v706
  %v779 = vunpack.c.l.b16 %v720
  %v780 = vunpack.c.l.b16 %v734
  %v781 = vunpack.c.l.b16 %v748
  %v782 = vpack.c.b16 %v767, %v766
  %v783 = vpack.c.b16 %v769, %v768
  %v784 = vpack.c.b16 %v771, %v770
  %v785 = vpack.c.b16 %v773, %v772
  %v786 = vpack.c.b16 %v775, %v774
  %v787 = vpack.c.b16 %v777, %v776
  %v788 = vpack.c.b16 %v779, %v778
  %v789 = vpack.c.b16 %v781, %v780
  %v814 = vunpack.c.l.b16 %v750
  %v815 = vunpack.c.l.b16 %v751
  %v816 = vunpack.c.l.b16 %v752
  %v817 = vunpack.c.l.b16 %v753
  %v818 = vunpack.c.l.b16 %v754
  %v819 = vunpack.c.l.b16 %v755
  %v820 = vunpack.c.l.b16 %v756
  %v821 = vunpack.c.l.b16 %v757
  %v822 = vunpack.c.l.b16 %v758
  %v823 = vunpack.c.l.b16 %v759
  %v824 = vunpack.c.l.b16 %v760
  %v825 = vunpack.c.l.b16 %v761
  %v826 = vunpack.c.l.b16 %v762
  %v827 = vunpack.c.l.b16 %v763
  %v828 = vunpack.c.l.b16 %v764
  %v829 = vunpack.c.l.b16 %v765
  %v830 = vpack.c.b16 %v815, %v814
  %v831 = vpack.c.b16 %v817, %v816
  %v832 = vpack.c.b16 %v819, %v818
  %v833 = vpack.c.b16 %v821, %v820
  %v834 = vpack.c.b16 %v823, %v822
  %v835 = vpack.c.b16 %v825, %v824
  %v836 = vpack.c.b16 %v827, %v826
  %v837 = vpack.c.b16 %v829, %v828
  %846 = vmatprep.subr.bf16.mxu0 0
  %847 = vmatpush1.bf16.msra.mxu0 %v837
  %848 = vmatprep.subr.bf16.mxu0 0
  %849 = vmatpush1.bf16.msra.mxu0 %v836
  %850 = vmatprep.subr.bf16.mxu0 0
  %851 = vmatpush1.bf16.msra.mxu0 %v835
  %852 = vmatprep.subr.bf16.mxu0 0
  %853 = vmatpush1.bf16.msra.mxu0 %v834
  %854 = vmatprep.subr.bf16.mxu0 0
  %855 = vmatpush1.bf16.msra.mxu0 %v833
  %856 = vmatprep.subr.bf16.mxu0 0
  %857 = vmatpush1.bf16.msra.mxu0 %v832
  %858 = vmatprep.subr.bf16.mxu0 0
  %859 = vmatpush1.bf16.msra.mxu0 %v831
  %860 = vmatprep.subr.bf16.mxu0 0
  %861 = vmatpush1.bf16.msra.mxu0 %v830
  %862 = vmatprep.subr.bf16.mxu0 0
  %863 = vmatpush2.bf16.msra.mxu0 0
  %864 = vmatprep.subr.bf16.mxu0 0
  %865 = vmatpush2.bf16.msra.mxu0 0
  %866 = vmatprep.subr.bf16.mxu0 0
  %867 = vmatpush2.bf16.msra.mxu0 0
  %868 = vmatprep.subr.bf16.mxu0 0
  %869 = vmatpush2.bf16.msra.mxu0 0
  %870 = vmatprep.subr.bf16.mxu0 0
  %871 = vmatpush2.bf16.msra.mxu0 0
  %872 = vmatprep.subr.bf16.mxu0 0
  %873 = vmatpush2.bf16.msra.mxu0 0
  %874 = vmatprep.subr.bf16.mxu0 0
  %875 = vmatpush2.bf16.msra.mxu0 0
  %876 = vmatprep.subr.bf16.mxu0 0
  %877 = vmatpush2.bf16.msra.mxu0 0
  %878 = vmatprep.mubr.bf16.mxu0 0
  %879 = vmatmul.mubr.bf16.gmra.mxu0 %v782
  %v880 = vpop.f32.mrf.mxu0
  %v881 = vadd.f32 0.0, %v880
  %v882 = vpop.f32.mrf.mxu0
  %v883 = vpop.f32.mrf.mxu0
  %v884 = vadd.f32 0.0, %v883
  %v885 = vpop.f32.mrf.mxu0
  %886 = vmatprep.mubr.bf16.mxu0 0
  %887 = vmatmul.mubr.bf16.gmra.mxu0 %v783
  %v888 = vpop.f32.mrf.mxu0
  %v889 = vadd.f32 0.0, %v888
  %v890 = vpop.f32.mrf.mxu0
  %v891 = vpop.f32.mrf.mxu0
  %v892 = vadd.f32 0.0, %v891
  %v893 = vpop.f32.mrf.mxu0
  %894 = vmatprep.mubr.bf16.mxu0 0
  %895 = vmatmul.mubr.bf16.gmra.mxu0 %v784
  %v896 = vpop.f32.mrf.mxu0
  %v897 = vadd.f32 0.0, %v896
  %v898 = vpop.f32.mrf.mxu0
  %v899 = vpop.f32.mrf.mxu0
  %v900 = vadd.f32 0.0, %v899
  %v901 = vpop.f32.mrf.mxu0
  %902 = vmatprep.mubr.bf16.mxu0 0
  %903 = vmatmul.mubr.bf16.gmra.mxu0 %v785
  %v904 = vpop.f32.mrf.mxu0
  %v905 = vadd.f32 0.0, %v904
  %v906 = vpop.f32.mrf.mxu0
  %v907 = vpop.f32.mrf.mxu0
  %v908 = vadd.f32 0.0, %v907
  %v909 = vpop.f32.mrf.mxu0
  %910 = vmatprep.mubr.bf16.mxu0 0
  %911 = vmatmul.mubr.bf16.gmra.mxu0 %v786
  %v912 = vpop.f32.mrf.mxu0
  %v913 = vadd.f32 0.0, %v912
  %v914 = vpop.f32.mrf.mxu0
  %v915 = vpop.f32.mrf.mxu0
  %v916 = vadd.f32 0.0, %v915
  %v917 = vpop.f32.mrf.mxu0
  %918 = vmatprep.mubr.bf16.mxu0 0
  %919 = vmatmul.mubr.bf16.gmra.mxu0 %v787
  %v920 = vpop.f32.mrf.mxu0
  %v921 = vadd.f32 0.0, %v920
  %v922 = vpop.f32.mrf.mxu0
  %v923 = vpop.f32.mrf.mxu0
  %v924 = vadd.f32 0.0, %v923
  %v925 = vpop.f32.mrf.mxu0
  %926 = vmatprep.mubr.bf16.mxu0 0
  %927 = vmatmul.mubr.bf16.gmra.mxu0 %v788
  %v928 = vpop.f32.mrf.mxu0
  %v929 = vadd.f32 0.0, %v928
  %v930 = vpop.f32.mrf.mxu0
  %v931 = vpop.f32.mrf.mxu0
  %v932 = vadd.f32 0.0, %v931
  %v933 = vpop.f32.mrf.mxu0
  %934 = vmatprep.mubr.bf16.mxu0 0
  %935 = vmatmul.mubr.bf16.gmra.mxu0 %v789
  %v936 = vpop.f32.mrf.mxu0
  %v937 = vadd.f32 0.0, %v936
  %v938 = vpop.f32.mrf.mxu0
  %v939 = vpop.f32.mrf.mxu0
  %v940 = vadd.f32 0.0, %v939
  %v941 = vpop.f32.mrf.mxu0
  %942 = vdwg.mxu0
  %v959 = vunpack.c.l.b16 %v474
  %v960 = vunpack.c.l.b16 %v475
  %v961 = vunpack.c.l.b16 %v476
  %v962 = vunpack.c.l.b16 %v477
  %v963 = vunpack.c.l.b16 %v478
  %v964 = vunpack.c.l.b16 %v479
  %v965 = vunpack.c.l.b16 %v480
  %v966 = vunpack.c.l.b16 %v481
  %v967 = vunpack.c.l.b16 %v482
  %v968 = vunpack.c.l.b16 %v483
  %v969 = vunpack.c.l.b16 %v484
  %v970 = vunpack.c.l.b16 %v485
  %v971 = vunpack.c.l.b16 %v486
  %v972 = vunpack.c.l.b16 %v487
  %v973 = vunpack.c.l.b16 %v488
  %v974 = vunpack.c.l.b16 %v489
  %v975 = vpack.c.b16 %v960, %v959
  %v976 = vpack.c.b16 %v962, %v961
  %v977 = vpack.c.b16 %v964, %v963
  %v978 = vpack.c.b16 %v966, %v965
  %v979 = vpack.c.b16 %v968, %v967
  %v980 = vpack.c.b16 %v970, %v969
  %v981 = vpack.c.b16 %v972, %v971
  %v982 = vpack.c.b16 %v974, %v973
  %v1007 = vunpack.c.l.b16 %v490
  %v1008 = vunpack.c.l.b16 %v491
  %v1009 = vunpack.c.l.b16 %v492
  %v1010 = vunpack.c.l.b16 %v493
  %v1011 = vunpack.c.l.b16 %v494
  %v1012 = vunpack.c.l.b16 %v495
  %v1013 = vunpack.c.l.b16 %v496
  %v1014 = vunpack.c.l.b16 %v497
  %v1015 = vunpack.c.l.b16 %v498
  %v1016 = vunpack.c.l.b16 %v499
  %v1017 = vunpack.c.l.b16 %v500
  %v1018 = vunpack.c.l.b16 %v501
  %v1019 = vunpack.c.l.b16 %v502
  %v1020 = vunpack.c.l.b16 %v503
  %v1021 = vunpack.c.l.b16 %v504
  %v1022 = vunpack.c.l.b16 %v505
  %v1023 = vpack.c.b16 %v1008, %v1007
  %v1024 = vpack.c.b16 %v1010, %v1009
  %v1025 = vpack.c.b16 %v1012, %v1011
  %v1026 = vpack.c.b16 %v1014, %v1013
  %v1027 = vpack.c.b16 %v1016, %v1015
  %v1028 = vpack.c.b16 %v1018, %v1017
  %v1029 = vpack.c.b16 %v1020, %v1019
  %v1030 = vpack.c.b16 %v1022, %v1021
  %1039 = vmatprep.subr.bf16.mxu0 0
  %1040 = vmatpush1.bf16.msra.mxu0 %v1030
  %1041 = vmatprep.subr.bf16.mxu0 0
  %1042 = vmatpush1.bf16.msra.mxu0 %v1029
  %1043 = vmatprep.subr.bf16.mxu0 0
  %1044 = vmatpush1.bf16.msra.mxu0 %v1028
  %1045 = vmatprep.subr.bf16.mxu0 0
  %1046 = vmatpush1.bf16.msra.mxu0 %v1027
  %1047 = vmatprep.subr.bf16.mxu0 0
  %1048 = vmatpush1.bf16.msra.mxu0 %v1026
  %1049 = vmatprep.subr.bf16.mxu0 0
  %1050 = vmatpush1.bf16.msra.mxu0 %v1025
  %1051 = vmatprep.subr.bf16.mxu0 0
  %1052 = vmatpush1.bf16.msra.mxu0 %v1024
  %1053 = vmatprep.subr.bf16.mxu0 0
  %1054 = vmatpush1.bf16.msra.mxu0 %v1023
  %1055 = vmatprep.subr.bf16.mxu0 0
  %1056 = vmatpush2.bf16.msra.mxu0 0
  %1057 = vmatprep.subr.bf16.mxu0 0
  %1058 = vmatpush2.bf16.msra.mxu0 0
  %1059 = vmatprep.subr.bf16.mxu0 0
  %1060 = vmatpush2.bf16.msra.mxu0 0
  %1061 = vmatprep.subr.bf16.mxu0 0
  %1062 = vmatpush2.bf16.msra.mxu0 0
  %1063 = vmatprep.subr.bf16.mxu0 0
  %1064 = vmatpush2.bf16.msra.mxu0 0
  %1065 = vmatprep.subr.bf16.mxu0 0
  %1066 = vmatpush2.bf16.msra.mxu0 0
  %1067 = vmatprep.subr.bf16.mxu0 0
  %1068 = vmatpush2.bf16.msra.mxu0 0
  %1069 = vmatprep.subr.bf16.mxu0 0
  %1070 = vmatpush2.bf16.msra.mxu0 0
  %1071 = vmatprep.mubr.bf16.mxu0 0
  %1072 = vmatmul.mubr.bf16.gmra.mxu0 %v975
  %v1073 = vpop.f32.mrf.mxu0
  %v1074 = vadd.f32 %v881, %v1073
  %v1075 = vpop.f32.mrf.mxu0
  %v1076 = vpop.f32.mrf.mxu0
  %v1077 = vadd.f32 %v884, %v1076
  %v1078 = vpop.f32.mrf.mxu0
  %1079 = vmatprep.mubr.bf16.mxu0 0
  %1080 = vmatmul.mubr.bf16.gmra.mxu0 %v976
  %v1081 = vpop.f32.mrf.mxu0
  %v1082 = vadd.f32 %v889, %v1081
  %v1083 = vpop.f32.mrf.mxu0
  %v1084 = vpop.f32.mrf.mxu0
  %v1085 = vadd.f32 %v892, %v1084
  %v1086 = vpop.f32.mrf.mxu0
  %1087 = vmatprep.mubr.bf16.mxu0 0
  %1088 = vmatmul.mubr.bf16.gmra.mxu0 %v977
  %v1089 = vpop.f32.mrf.mxu0
  %v1090 = vadd.f32 %v897, %v1089
  %v1091 = vpop.f32.mrf.mxu0
  %v1092 = vpop.f32.mrf.mxu0
  %v1093 = vadd.f32 %v900, %v1092
  %v1094 = vpop.f32.mrf.mxu0
  %1095 = vmatprep.mubr.bf16.mxu0 0
  %1096 = vmatmul.mubr.bf16.gmra.mxu0 %v978
  %v1097 = vpop.f32.mrf.mxu0
  %v1098 = vadd.f32 %v905, %v1097
  %v1099 = vpop.f32.mrf.mxu0
  %v1100 = vpop.f32.mrf.mxu0
  %v1101 = vadd.f32 %v908, %v1100
  %v1102 = vpop.f32.mrf.mxu0
  %1103 = vmatprep.mubr.bf16.mxu0 0
  %1104 = vmatmul.mubr.bf16.gmra.mxu0 %v979
  %v1105 = vpop.f32.mrf.mxu0
  %v1106 = vadd.f32 %v913, %v1105
  %v1107 = vpop.f32.mrf.mxu0
  %v1108 = vpop.f32.mrf.mxu0
  %v1109 = vadd.f32 %v916, %v1108
  %v1110 = vpop.f32.mrf.mxu0
  %1111 = vmatprep.mubr.bf16.mxu0 0
  %1112 = vmatmul.mubr.bf16.gmra.mxu0 %v980
  %v1113 = vpop.f32.mrf.mxu0
  %v1114 = vadd.f32 %v921, %v1113
  %v1115 = vpop.f32.mrf.mxu0
  %v1116 = vpop.f32.mrf.mxu0
  %v1117 = vadd.f32 %v924, %v1116
  %v1118 = vpop.f32.mrf.mxu0
  %1119 = vmatprep.mubr.bf16.mxu0 0
  %1120 = vmatmul.mubr.bf16.gmra.mxu0 %v981
  %v1121 = vpop.f32.mrf.mxu0
  %v1122 = vadd.f32 %v929, %v1121
  %v1123 = vpop.f32.mrf.mxu0
  %v1124 = vpop.f32.mrf.mxu0
  %v1125 = vadd.f32 %v932, %v1124
  %v1126 = vpop.f32.mrf.mxu0
  %1127 = vmatprep.mubr.bf16.mxu0 0
  %1128 = vmatmul.mubr.bf16.gmra.mxu0 %v982
  %v1129 = vpop.f32.mrf.mxu0
  %v1130 = vadd.f32 %v937, %v1129
  %v1131 = vpop.f32.mrf.mxu0
  %v1132 = vpop.f32.mrf.mxu0
  %v1133 = vadd.f32 %v940, %v1132
  %v1134 = vpop.f32.mrf.mxu0
  %1135 = vdwg.mxu0
  %v1136 = vld [vmem:[#allocation2] sm:$0xe]
  %v1137 = vld [vmem:[#allocation2 + $0x8] sm:$0xe]
  %v1138 = vld [vmem:[#allocation2 + $0x10] sm:$0xe]
  %v1139 = vld [vmem:[#allocation2 + $0x18] sm:$0xe]
  %v1140 = vld [vmem:[#allocation2 + $0x20] sm:$0xe]
  %v1141 = vld [vmem:[#allocation2 + $0x28] sm:$0xe]
  %v1142 = vld [vmem:[#allocation2 + $0x30] sm:$0xe]
  %v1143 = vld [vmem:[#allocation2 + $0x38] sm:$0xe]
  %v1144 = vld [vmem:[#allocation2 + $0x50] sm:$0xe]
  %v1145 = vld [vmem:[#allocation2 + $0x58] sm:$0xe]
  %v1146 = vld [vmem:[#allocation2 + $0x60] sm:$0xe]
  %v1147 = vld [vmem:[#allocation2 + $0x68] sm:$0xe]
  %v1148 = vld [vmem:[#allocation2 + $0x70] sm:$0xe]
  %v1149 = vld [vmem:[#allocation2 + $0x78] sm:$0xe]
  %v1150 = vld [vmem:[#allocation2 + $0x80] sm:$0xe]
  %v1151 = vld [vmem:[#allocation2 + $0x88] sm:$0xe]
  %vm1184 = vcmask 1042432
  %vm1185 = vcmask 1046532
  %vm1186 = vmor %vm1184, %vm1185
  %v1187 = vrot.slane %v1136, 5
  %v1188 = vrot.slane %v1187, 4
  %v1189 = vrot.slane %v506, 5
  %v1190 = vsel %vm1186, %v1188, %v1189
  %v1191 = vrot.slane %v1137, 5
  %v1192 = vrot.slane %v1191, 4
  %v1193 = vrot.slane %v507, 5
  %v1194 = vsel %vm1186, %v1192, %v1193
  %v1195 = vrot.slane %v1138, 5
  %v1196 = vrot.slane %v1195, 4
  %v1197 = vrot.slane %v508, 5
  %v1198 = vsel %vm1186, %v1196, %v1197
  %v1199 = vrot.slane %v1139, 5
  %v1200 = vrot.slane %v1199, 4
  %v1201 = vrot.slane %v509, 5
  %v1202 = vsel %vm1186, %v1200, %v1201
  %v1203 = vrot.slane %v1140, 5
  %v1204 = vrot.slane %v1203, 4
  %v1205 = vrot.slane %v510, 5
  %v1206 = vsel %vm1186, %v1204, %v1205
  %v1207 = vrot.slane %v1141, 5
  %v1208 = vrot.slane %v1207, 4
  %v1209 = vrot.slane %v511, 5
  %v1210 = vsel %vm1186, %v1208, %v1209
  %v1211 = vrot.slane %v1142, 5
  %v1212 = vrot.slane %v1211, 4
  %v1213 = vrot.slane %v512, 5
  %v1214 = vsel %vm1186, %v1212, %v1213
  %v1215 = vrot.slane %v1143, 5
  %v1216 = vrot.slane %v1215, 4
  %v1217 = vrot.slane %v513, 5
  %v1218 = vsel %vm1186, %v1216, %v1217
  %v1219 = vrot.slane %v1144, 5
  %v1220 = vrot.slane %v1219, 4
  %v1221 = vrot.slane %v514, 5
  %v1222 = vsel %vm1186, %v1220, %v1221
  %v1223 = vrot.slane %v1145, 5
  %v1224 = vrot.slane %v1223, 4
  %v1225 = vrot.slane %v515, 5
  %v1226 = vsel %vm1186, %v1224, %v1225
  %v1227 = vrot.slane %v1146, 5
  %v1228 = vrot.slane %v1227, 4
  %v1229 = vrot.slane %v516, 5
  %v1230 = vsel %vm1186, %v1228, %v1229
  %v1231 = vrot.slane %v1147, 5
  %v1232 = vrot.slane %v1231, 4
  %v1233 = vrot.slane %v517, 5
  %v1234 = vsel %vm1186, %v1232, %v1233
  %v1235 = vrot.slane %v1148, 5
  %v1236 = vrot.slane %v1235, 4
  %v1237 = vrot.slane %v518, 5
  %v1238 = vsel %vm1186, %v1236, %v1237
  %v1239 = vrot.slane %v1149, 5
  %v1240 = vrot.slane %v1239, 4
  %v1241 = vrot.slane %v519, 5
  %v1242 = vsel %vm1186, %v1240, %v1241
  %v1243 = vrot.slane %v1150, 5
  %v1244 = vrot.slane %v1243, 4
  %v1245 = vrot.slane %v520, 5
  %v1246 = vsel %vm1186, %v1244, %v1245
  %v1247 = vrot.slane %v1151, 5
  %v1248 = vrot.slane %v1247, 4
  %v1249 = vrot.slane %v521, 5
  %v1250 = vsel %vm1186, %v1248, %v1249
  %s1251 = scalar_lea.vmem %s1, 128
  %v1252 = vld [vmem:[%s1251] sm:$0xf]
  %v1253 = vld [vmem:[%s1251 + $0x4] sm:$0xf]
  %v1254 = vld [vmem:[%s1251 + $0x8] sm:$0xf]
  %v1255 = vld [vmem:[%s1251 + $0xc] sm:$0xf]
  %v1256 = vld [vmem:[%s1251 + $0x10] sm:$0xf]
  %v1257 = vld [vmem:[%s1251 + $0x14] sm:$0xf]
  %v1258 = vld [vmem:[%s1251 + $0x18] sm:$0xf]
  %v1259 = vld [vmem:[%s1251 + $0x1c] sm:$0xf]
  %v1260 = vld [vmem:[%s1251 + $0x20] sm:$0xf]
  %v1261 = vld [vmem:[%s1251 + $0x24] sm:$0xf]
  %v1262 = vld [vmem:[%s1251 + $0x28] sm:$0xf]
  %v1263 = vld [vmem:[%s1251 + $0x2c] sm:$0xf]
  %v1264 = vld [vmem:[%s1251 + $0x30] sm:$0xf]
  %v1265 = vld [vmem:[%s1251 + $0x34] sm:$0xf]
  %v1266 = vld [vmem:[%s1251 + $0x38] sm:$0xf]
  %v1267 = vld [vmem:[%s1251 + $0x3c] sm:$0xf]
  %v1268 = vunpack.c.l.b16 %v1190
  %v1269 = vunpack.c.l.b16 %v1194
  %v1270 = vunpack.c.l.b16 %v1198
  %v1271 = vunpack.c.l.b16 %v1202
  %v1272 = vunpack.c.l.b16 %v1206
  %v1273 = vunpack.c.l.b16 %v1210
  %v1274 = vunpack.c.l.b16 %v1214
  %v1275 = vunpack.c.l.b16 %v1218
  %v1276 = vunpack.c.l.b16 %v1222
  %v1277 = vunpack.c.l.b16 %v1226
  %v1278 = vunpack.c.l.b16 %v1230
  %v1279 = vunpack.c.l.b16 %v1234
  %v1280 = vunpack.c.l.b16 %v1238
  %v1281 = vunpack.c.l.b16 %v1242
  %v1282 = vunpack.c.l.b16 %v1246
  %v1283 = vunpack.c.l.b16 %v1250
  %v1284 = vpack.c.b16 %v1269, %v1268
  %v1285 = vpack.c.b16 %v1271, %v1270
  %v1286 = vpack.c.b16 %v1273, %v1272
  %v1287 = vpack.c.b16 %v1275, %v1274
  %v1288 = vpack.c.b16 %v1277, %v1276
  %v1289 = vpack.c.b16 %v1279, %v1278
  %v1290 = vpack.c.b16 %v1281, %v1280
  %v1291 = vpack.c.b16 %v1283, %v1282
  %v1316 = vunpack.c.l.b16 %v1252
  %v1317 = vunpack.c.l.b16 %v1253
  %v1318 = vunpack.c.l.b16 %v1254
  %v1319 = vunpack.c.l.b16 %v1255
  %v1320 = vunpack.c.l.b16 %v1256
  %v1321 = vunpack.c.l.b16 %v1257
  %v1322 = vunpack.c.l.b16 %v1258
  %v1323 = vunpack.c.l.b16 %v1259
  %v1324 = vunpack.c.l.b16 %v1260
  %v1325 = vunpack.c.l.b16 %v1261
  %v1326 = vunpack.c.l.b16 %v1262
  %v1327 = vunpack.c.l.b16 %v1263
  %v1328 = vunpack.c.l.b16 %v1264
  %v1329 = vunpack.c.l.b16 %v1265
  %v1330 = vunpack.c.l.b16 %v1266
  %v1331 = vunpack.c.l.b16 %v1267
  %v1332 = vpack.c.b16 %v1317, %v1316
  %v1333 = vpack.c.b16 %v1319, %v1318
  %v1334 = vpack.c.b16 %v1321, %v1320
  %v1335 = vpack.c.b16 %v1323, %v1322
  %v1336 = vpack.c.b16 %v1325, %v1324
  %v1337 = vpack.c.b16 %v1327, %v1326
  %v1338 = vpack.c.b16 %v1329, %v1328
  %v1339 = vpack.c.b16 %v1331, %v1330
  %1348 = vmatprep.subr.bf16.mxu0 0
  %1349 = vmatpush1.bf16.msra.mxu0 %v1339
  %1350 = vmatprep.subr.bf16.mxu0 0
  %1351 = vmatpush1.bf16.msra.mxu0 %v1338
  %1352 = vmatprep.subr.bf16.mxu0 0
  %1353 = vmatpush1.bf16.msra.mxu0 %v1337
  %1354 = vmatprep.subr.bf16.mxu0 0
  %1355 = vmatpush1.bf16.msra.mxu0 %v1336
  %1356 = vmatprep.subr.bf16.mxu0 0
  %1357 = vmatpush1.bf16.msra.mxu0 %v1335
  %1358 = vmatprep.subr.bf16.mxu0 0
  %1359 = vmatpush1.bf16.msra.mxu0 %v1334
  %1360 = vmatprep.subr.bf16.mxu0 0
  %1361 = vmatpush1.bf16.msra.mxu0 %v1333
  %1362 = vmatprep.subr.bf16.mxu0 0
  %1363 = vmatpush1.bf16.msra.mxu0 %v1332
  %1364 = vmatprep.subr.bf16.mxu0 0
  %1365 = vmatpush2.bf16.msra.mxu0 0
  %1366 = vmatprep.subr.bf16.mxu0 0
  %1367 = vmatpush2.bf16.msra.mxu0 0
  %1368 = vmatprep.subr.bf16.mxu0 0
  %1369 = vmatpush2.bf16.msra.mxu0 0
  %1370 = vmatprep.subr.bf16.mxu0 0
  %1371 = vmatpush2.bf16.msra.mxu0 0
  %1372 = vmatprep.subr.bf16.mxu0 0
  %1373 = vmatpush2.bf16.msra.mxu0 0
  %1374 = vmatprep.subr.bf16.mxu0 0
  %1375 = vmatpush2.bf16.msra.mxu0 0
  %1376 = vmatprep.subr.bf16.mxu0 0
  %1377 = vmatpush2.bf16.msra.mxu0 0
  %1378 = vmatprep.subr.bf16.mxu0 0
  %1379 = vmatpush2.bf16.msra.mxu0 0
  %1380 = vmatprep.mubr.bf16.mxu0 0
  %1381 = vmatmul.mubr.bf16.gmra.mxu0 %v1284
  %v1382 = vpop.f32.mrf.mxu0
  %v1383 = vadd.f32 0.0, %v1382
  %v1384 = vpop.f32.mrf.mxu0
  %v1385 = vpop.f32.mrf.mxu0
  %v1386 = vadd.f32 0.0, %v1385
  %v1387 = vpop.f32.mrf.mxu0
  %1388 = vmatprep.mubr.bf16.mxu0 0
  %1389 = vmatmul.mubr.bf16.gmra.mxu0 %v1285
  %v1390 = vpop.f32.mrf.mxu0
  %v1391 = vadd.f32 0.0, %v1390
  %v1392 = vpop.f32.mrf.mxu0
  %v1393 = vpop.f32.mrf.mxu0
  %v1394 = vadd.f32 0.0, %v1393
  %v1395 = vpop.f32.mrf.mxu0
  %1396 = vmatprep.mubr.bf16.mxu0 0
  %1397 = vmatmul.mubr.bf16.gmra.mxu0 %v1286
  %v1398 = vpop.f32.mrf.mxu0
  %v1399 = vadd.f32 0.0, %v1398
  %v1400 = vpop.f32.mrf.mxu0
  %v1401 = vpop.f32.mrf.mxu0
  %v1402 = vadd.f32 0.0, %v1401
  %v1403 = vpop.f32.mrf.mxu0
  %1404 = vmatprep.mubr.bf16.mxu0 0
  %1405 = vmatmul.mubr.bf16.gmra.mxu0 %v1287
  %v1406 = vpop.f32.mrf.mxu0
  %v1407 = vadd.f32 0.0, %v1406
  %v1408 = vpop.f32.mrf.mxu0
  %v1409 = vpop.f32.mrf.mxu0
  %v1410 = vadd.f32 0.0, %v1409
  %v1411 = vpop.f32.mrf.mxu0
  %1412 = vmatprep.mubr.bf16.mxu0 0
  %1413 = vmatmul.mubr.bf16.gmra.mxu0 %v1288
  %v1414 = vpop.f32.mrf.mxu0
  %v1415 = vadd.f32 0.0, %v1414
  %v1416 = vpop.f32.mrf.mxu0
  %v1417 = vpop.f32.mrf.mxu0
  %v1418 = vadd.f32 0.0, %v1417
  %v1419 = vpop.f32.mrf.mxu0
  %1420 = vmatprep.mubr.bf16.mxu0 0
  %1421 = vmatmul.mubr.bf16.gmra.mxu0 %v1289
  %v1422 = vpop.f32.mrf.mxu0
  %v1423 = vadd.f32 0.0, %v1422
  %v1424 = vpop.f32.mrf.mxu0
  %v1425 = vpop.f32.mrf.mxu0
  %v1426 = vadd.f32 0.0, %v1425
  %v1427 = vpop.f32.mrf.mxu0
  %1428 = vmatprep.mubr.bf16.mxu0 0
  %1429 = vmatmul.mubr.bf16.gmra.mxu0 %v1290
  %v1430 = vpop.f32.mrf.mxu0
  %v1431 = vadd.f32 0.0, %v1430
  %v1432 = vpop.f32.mrf.mxu0
  %v1433 = vpop.f32.mrf.mxu0
  %v1434 = vadd.f32 0.0, %v1433
  %v1435 = vpop.f32.mrf.mxu0
  %1436 = vmatprep.mubr.bf16.mxu0 0
  %1437 = vmatmul.mubr.bf16.gmra.mxu0 %v1291
  %v1438 = vpop.f32.mrf.mxu0
  %v1439 = vadd.f32 0.0, %v1438
  %v1440 = vpop.f32.mrf.mxu0
  %v1441 = vpop.f32.mrf.mxu0
  %v1442 = vadd.f32 0.0, %v1441
  %v1443 = vpop.f32.mrf.mxu0
  %1444 = vdwg.mxu0
  %v1445 = vadd.f32 %v1074, %v1383
  %v1446 = vadd.f32 %v1077, %v1386
  %v1447 = vadd.f32 %v1082, %v1391
  %v1448 = vadd.f32 %v1085, %v1394
  %v1449 = vadd.f32 %v1090, %v1399
  %v1450 = vadd.f32 %v1093, %v1402
  %v1451 = vadd.f32 %v1098, %v1407
  %v1452 = vadd.f32 %v1101, %v1410
  %v1453 = vadd.f32 %v1106, %v1415
  %v1454 = vadd.f32 %v1109, %v1418
  %v1455 = vadd.f32 %v1114, %v1423
  %v1456 = vadd.f32 %v1117, %v1426
  %v1457 = vadd.f32 %v1122, %v1431
  %v1458 = vadd.f32 %v1125, %v1434
  %v1459 = vadd.f32 %v1130, %v1439
  %v1460 = vadd.f32 %v1133, %v1442
  %v1461 = vld [vmem:[%s371] sm:$0xf]
  %v1462 = vld [vmem:[%s371 + $0x8] sm:$0xf]
  %v1463 = vld [vmem:[%s371 + $0x10] sm:$0xf]
  %v1464 = vld [vmem:[%s371 + $0x18] sm:$0xf]
  %v1465 = vld [vmem:[%s371 + $0x20] sm:$0xf]
  %v1466 = vld [vmem:[%s371 + $0x28] sm:$0xf]
  %v1467 = vld [vmem:[%s371 + $0x30] sm:$0xf]
  %v1468 = vld [vmem:[%s371 + $0x38] sm:$0xf]
  %v1469 = vld [vmem:[%s371 + $0x50] sm:$0xf]
  %v1470 = vld [vmem:[%s371 + $0x58] sm:$0xf]
  %v1471 = vld [vmem:[%s371 + $0x60] sm:$0xf]
  %v1472 = vld [vmem:[%s371 + $0x68] sm:$0xf]
  %v1473 = vld [vmem:[%s371 + $0x70] sm:$0xf]
  %v1474 = vld [vmem:[%s371 + $0x78] sm:$0xf]
  %v1475 = vld [vmem:[%s371 + $0x80] sm:$0xf]
  %v1476 = vld [vmem:[%s371 + $0x88] sm:$0xf]
  %s1477 = scalar_lea.vmem %s1, 192
  %v1478 = vld [vmem:[%s1477] sm:$0xf]
  %v1479 = vld [vmem:[%s1477 + $0x4] sm:$0xf]
  %v1480 = vld [vmem:[%s1477 + $0x8] sm:$0xf]
  %v1481 = vld [vmem:[%s1477 + $0xc] sm:$0xf]
  %v1482 = vld [vmem:[%s1477 + $0x10] sm:$0xf]
  %v1483 = vld [vmem:[%s1477 + $0x14] sm:$0xf]
  %v1484 = vld [vmem:[%s1477 + $0x18] sm:$0xf]
  %v1485 = vld [vmem:[%s1477 + $0x1c] sm:$0xf]
  %v1486 = vld [vmem:[%s1477 + $0x20] sm:$0xf]
  %v1487 = vld [vmem:[%s1477 + $0x24] sm:$0xf]
  %v1488 = vld [vmem:[%s1477 + $0x28] sm:$0xf]
  %v1489 = vld [vmem:[%s1477 + $0x2c] sm:$0xf]
  %v1490 = vld [vmem:[%s1477 + $0x30] sm:$0xf]
  %v1491 = vld [vmem:[%s1477 + $0x34] sm:$0xf]
  %v1492 = vld [vmem:[%s1477 + $0x38] sm:$0xf]
  %v1493 = vld [vmem:[%s1477 + $0x3c] sm:$0xf]
  %v1510 = vunpack.c.l.b16 %v1461
  %v1511 = vunpack.c.l.b16 %v1462
  %v1512 = vunpack.c.l.b16 %v1463
  %v1513 = vunpack.c.l.b16 %v1464
  %v1514 = vunpack.c.l.b16 %v1465
  %v1515 = vunpack.c.l.b16 %v1466
  %v1516 = vunpack.c.l.b16 %v1467
  %v1517 = vunpack.c.l.b16 %v1468
  %v1518 = vunpack.c.l.b16 %v1469
  %v1519 = vunpack.c.l.b16 %v1470
  %v1520 = vunpack.c.l.b16 %v1471
  %v1521 = vunpack.c.l.b16 %v1472
  %v1522 = vunpack.c.l.b16 %v1473
  %v1523 = vunpack.c.l.b16 %v1474
  %v1524 = vunpack.c.l.b16 %v1475
  %v1525 = vunpack.c.l.b16 %v1476
  %v1526 = vpack.c.b16 %v1511, %v1510
  %v1527 = vpack.c.b16 %v1513, %v1512
  %v1528 = vpack.c.b16 %v1515, %v1514
  %v1529 = vpack.c.b16 %v1517, %v1516
  %v1530 = vpack.c.b16 %v1519, %v1518
  %v1531 = vpack.c.b16 %v1521, %v1520
  %v1532 = vpack.c.b16 %v1523, %v1522
  %v1533 = vpack.c.b16 %v1525, %v1524
  %v1558 = vunpack.c.l.b16 %v1478
  %v1559 = vunpack.c.l.b16 %v1479
  %v1560 = vunpack.c.l.b16 %v1480
  %v1561 = vunpack.c.l.b16 %v1481
  %v1562 = vunpack.c.l.b16 %v1482
  %v1563 = vunpack.c.l.b16 %v1483
  %v1564 = vunpack.c.l.b16 %v1484
  %v1565 = vunpack.c.l.b16 %v1485
  %v1566 = vunpack.c.l.b16 %v1486
  %v1567 = vunpack.c.l.b16 %v1487
  %v1568 = vunpack.c.l.b16 %v1488
  %v1569 = vunpack.c.l.b16 %v1489
  %v1570 = vunpack.c.l.b16 %v1490
  %v1571 = vunpack.c.l.b16 %v1491
  %v1572 = vunpack.c.l.b16 %v1492
  %v1573 = vunpack.c.l.b16 %v1493
  %v1574 = vpack.c.b16 %v1559, %v1558
  %v1575 = vpack.c.b16 %v1561, %v1560
  %v1576 = vpack.c.b16 %v1563, %v1562
  %v1577 = vpack.c.b16 %v1565, %v1564
  %v1578 = vpack.c.b16 %v1567, %v1566
  %v1579 = vpack.c.b16 %v1569, %v1568
  %v1580 = vpack.c.b16 %v1571, %v1570
  %v1581 = vpack.c.b16 %v1573, %v1572
  %1590 = vmatprep.subr.bf16.mxu0 0
  %1591 = vmatpush1.bf16.msra.mxu0 %v1581
  %1592 = vmatprep.subr.bf16.mxu0 0
  %1593 = vmatpush1.bf16.msra.mxu0 %v1580
  %1594 = vmatprep.subr.bf16.mxu0 0
  %1595 = vmatpush1.bf16.msra.mxu0 %v1579
  %1596 = vmatprep.subr.bf16.mxu0 0
  %1597 = vmatpush1.bf16.msra.mxu0 %v1578
  %1598 = vmatprep.subr.bf16.mxu0 0
  %1599 = vmatpush1.bf16.msra.mxu0 %v1577
  %1600 = vmatprep.subr.bf16.mxu0 0
  %1601 = vmatpush1.bf16.msra.mxu0 %v1576
  %1602 = vmatprep.subr.bf16.mxu0 0
  %1603 = vmatpush1.bf16.msra.mxu0 %v1575
  %1604 = vmatprep.subr.bf16.mxu0 0
  %1605 = vmatpush1.bf16.msra.mxu0 %v1574
  %1606 = vmatprep.subr.bf16.mxu0 0
  %1607 = vmatpush2.bf16.msra.mxu0 0
  %1608 = vmatprep.subr.bf16.mxu0 0
  %1609 = vmatpush2.bf16.msra.mxu0 0
  %1610 = vmatprep.subr.bf16.mxu0 0
  %1611 = vmatpush2.bf16.msra.mxu0 0
  %1612 = vmatprep.subr.bf16.mxu0 0
  %1613 = vmatpush2.bf16.msra.mxu0 0
  %1614 = vmatprep.subr.bf16.mxu0 0
  %1615 = vmatpush2.bf16.msra.mxu0 0
  %1616 = vmatprep.subr.bf16.mxu0 0
  %1617 = vmatpush2.bf16.msra.mxu0 0
  %1618 = vmatprep.subr.bf16.mxu0 0
  %1619 = vmatpush2.bf16.msra.mxu0 0
  %1620 = vmatprep.subr.bf16.mxu0 0
  %1621 = vmatpush2.bf16.msra.mxu0 0
  %1622 = vmatprep.mubr.bf16.mxu0 0
  %1623 = vmatmul.mubr.bf16.gmra.mxu0 %v1526
  %v1624 = vpop.f32.mrf.mxu0
  %v1625 = vadd.f32 0.0, %v1624
  %v1626 = vpop.f32.mrf.mxu0
  %v1627 = vpop.f32.mrf.mxu0
  %v1628 = vadd.f32 0.0, %v1627
  %v1629 = vpop.f32.mrf.mxu0
  %1630 = vmatprep.mubr.bf16.mxu0 0
  %1631 = vmatmul.mubr.bf16.gmra.mxu0 %v1527
  %v1632 = vpop.f32.mrf.mxu0
  %v1633 = vadd.f32 0.0, %v1632
  %v1634 = vpop.f32.mrf.mxu0
  %v1635 = vpop.f32.mrf.mxu0
  %v1636 = vadd.f32 0.0, %v1635
  %v1637 = vpop.f32.mrf.mxu0
  %1638 = vmatprep.mubr.bf16.mxu0 0
  %1639 = vmatmul.mubr.bf16.gmra.mxu0 %v1528
  %v1640 = vpop.f32.mrf.mxu0
  %v1641 = vadd.f32 0.0, %v1640
  %v1642 = vpop.f32.mrf.mxu0
  %v1643 = vpop.f32.mrf.mxu0
  %v1644 = vadd.f32 0.0, %v1643
  %v1645 = vpop.f32.mrf.mxu0
  %1646 = vmatprep.mubr.bf16.mxu0 0
  %1647 = vmatmul.mubr.bf16.gmra.mxu0 %v1529
  %v1648 = vpop.f32.mrf.mxu0
  %v1649 = vadd.f32 0.0, %v1648
  %v1650 = vpop.f32.mrf.mxu0
  %v1651 = vpop.f32.mrf.mxu0
  %v1652 = vadd.f32 0.0, %v1651
  %v1653 = vpop.f32.mrf.mxu0
  %1654 = vmatprep.mubr.bf16.mxu0 0
  %1655 = vmatmul.mubr.bf16.gmra.mxu0 %v1530
  %v1656 = vpop.f32.mrf.mxu0
  %v1657 = vadd.f32 0.0, %v1656
  %v1658 = vpop.f32.mrf.mxu0
  %v1659 = vpop.f32.mrf.mxu0
  %v1660 = vadd.f32 0.0, %v1659
  %v1661 = vpop.f32.mrf.mxu0
  %1662 = vmatprep.mubr.bf16.mxu0 0
  %1663 = vmatmul.mubr.bf16.gmra.mxu0 %v1531
  %v1664 = vpop.f32.mrf.mxu0
  %v1665 = vadd.f32 0.0, %v1664
  %v1666 = vpop.f32.mrf.mxu0
  %v1667 = vpop.f32.mrf.mxu0
  %v1668 = vadd.f32 0.0, %v1667
  %v1669 = vpop.f32.mrf.mxu0
  %1670 = vmatprep.mubr.bf16.mxu0 0
  %1671 = vmatmul.mubr.bf16.gmra.mxu0 %v1532
  %v1672 = vpop.f32.mrf.mxu0
  %v1673 = vadd.f32 0.0, %v1672
  %v1674 = vpop.f32.mrf.mxu0
  %v1675 = vpop.f32.mrf.mxu0
  %v1676 = vadd.f32 0.0, %v1675
  %v1677 = vpop.f32.mrf.mxu0
  %1678 = vmatprep.mubr.bf16.mxu0 0
  %1679 = vmatmul.mubr.bf16.gmra.mxu0 %v1533
  %v1680 = vpop.f32.mrf.mxu0
  %v1681 = vadd.f32 0.0, %v1680
  %v1682 = vpop.f32.mrf.mxu0
  %v1683 = vpop.f32.mrf.mxu0
  %v1684 = vadd.f32 0.0, %v1683
  %v1685 = vpop.f32.mrf.mxu0
  %1686 = vdwg.mxu0
  %v1687 = vadd.f32 %v1445, %v1625
  %v1688 = vadd.f32 %v1446, %v1628
  %v1689 = vadd.f32 %v1447, %v1633
  %v1690 = vadd.f32 %v1448, %v1636
  %v1691 = vadd.f32 %v1449, %v1641
  %v1692 = vadd.f32 %v1450, %v1644
  %v1693 = vadd.f32 %v1451, %v1649
  %v1694 = vadd.f32 %v1452, %v1652
  %v1695 = vadd.f32 %v1453, %v1657
  %v1696 = vadd.f32 %v1454, %v1660
  %v1697 = vadd.f32 %v1455, %v1665
  %v1698 = vadd.f32 %v1456, %v1668
  %v1699 = vadd.f32 %v1457, %v1673
  %v1700 = vadd.f32 %v1458, %v1676
  %v1701 = vadd.f32 %v1459, %v1681
  %v1702 = vadd.f32 %v1460, %v1684
  %v1703 = vld [vmem:[%s371] sm:$0xf]
  %v1704 = vld [vmem:[%s371 + $0x4] sm:$0x1]
  %v1705 = vld [vmem:[%s371 + $0x8] sm:$0xf]
  %v1706 = vld [vmem:[%s371 + $0xc] sm:$0x1]
  %v1707 = vld [vmem:[%s371 + $0x10] sm:$0xf]
  %v1708 = vld [vmem:[%s371 + $0x14] sm:$0x1]
  %v1709 = vld [vmem:[%s371 + $0x18] sm:$0xf]
  %v1710 = vld [vmem:[%s371 + $0x1c] sm:$0x1]
  %v1711 = vld [vmem:[%s371 + $0x20] sm:$0xf]
  %v1712 = vld [vmem:[%s371 + $0x24] sm:$0x1]
  %v1713 = vld [vmem:[%s371 + $0x28] sm:$0xf]
  %v1714 = vld [vmem:[%s371 + $0x2c] sm:$0x1]
  %v1715 = vld [vmem:[%s371 + $0x30] sm:$0xf]
  %v1716 = vld [vmem:[%s371 + $0x34] sm:$0x1]
  %v1717 = vld [vmem:[%s371 + $0x38] sm:$0xf]
  %v1718 = vld [vmem:[%s371 + $0x3c] sm:$0x1]
  %v1719 = vld [vmem:[%s371 + $0x50] sm:$0xf]
  %v1720 = vld [vmem:[%s371 + $0x54] sm:$0x1]
  %v1721 = vld [vmem:[%s371 + $0x58] sm:$0xf]
  %v1722 = vld [vmem:[%s371 + $0x5c] sm:$0x1]
  %v1723 = vld [vmem:[%s371 + $0x60] sm:$0xf]
  %v1724 = vld [vmem:[%s371 + $0x64] sm:$0x1]
  %v1725 = vld [vmem:[%s371 + $0x68] sm:$0xf]
  %v1726 = vld [vmem:[%s371 + $0x6c] sm:$0x1]
  %v1727 = vld [vmem:[%s371 + $0x70] sm:$0xf]
  %v1728 = vld [vmem:[%s371 + $0x74] sm:$0x1]
  %v1729 = vld [vmem:[%s371 + $0x78] sm:$0xf]
  %v1730 = vld [vmem:[%s371 + $0x7c] sm:$0x1]
  %v1731 = vld [vmem:[%s371 + $0x80] sm:$0xf]
  %v1732 = vld [vmem:[%s371 + $0x84] sm:$0x1]
  %v1733 = vld [vmem:[%s371 + $0x88] sm:$0xf]
  %v1734 = vld [vmem:[%s371 + $0x8c] sm:$0x1]
  %v1736 = vshrl.u32 %v1703, 16
  %v1738 = vrot.slane %v1736, 4
  %v1739 = vshll.u32 %v1703, 16
  %v1741 = vrot.slane %v1739, 5
  %v1742 = vor.u32 %v1738, %v1741
  %v1743 = vrot.slane %v1742, 4
  %v1745 = vshll.u32 %v1704, 16
  %v1747 = vrot.slane %v1745, 5
  %v1748 = vsel %vm524, %v1743, %v1747
  %v1750 = vshrl.u32 %v1705, 16
  %v1752 = vrot.slane %v1750, 4
  %v1753 = vshll.u32 %v1705, 16
  %v1755 = vrot.slane %v1753, 5
  %v1756 = vor.u32 %v1752, %v1755
  %v1757 = vrot.slane %v1756, 4
  %v1759 = vshll.u32 %v1706, 16
  %v1761 = vrot.slane %v1759, 5
  %v1762 = vsel %vm524, %v1757, %v1761
  %v1764 = vshrl.u32 %v1707, 16
  %v1766 = vrot.slane %v1764, 4
  %v1767 = vshll.u32 %v1707, 16
  %v1769 = vrot.slane %v1767, 5
  %v1770 = vor.u32 %v1766, %v1769
  %v1771 = vrot.slane %v1770, 4
  %v1773 = vshll.u32 %v1708, 16
  %v1775 = vrot.slane %v1773, 5
  %v1776 = vsel %vm524, %v1771, %v1775
  %v1778 = vshrl.u32 %v1709, 16
  %v1780 = vrot.slane %v1778, 4
  %v1781 = vshll.u32 %v1709, 16
  %v1783 = vrot.slane %v1781, 5
  %v1784 = vor.u32 %v1780, %v1783
  %v1785 = vrot.slane %v1784, 4
  %v1787 = vshll.u32 %v1710, 16
  %v1789 = vrot.slane %v1787, 5
  %v1790 = vsel %vm524, %v1785, %v1789
  %v1792 = vshrl.u32 %v1711, 16
  %v1794 = vrot.slane %v1792, 4
  %v1795 = vshll.u32 %v1711, 16
  %v1797 = vrot.slane %v1795, 5
  %v1798 = vor.u32 %v1794, %v1797
  %v1799 = vrot.slane %v1798, 4
  %v1801 = vshll.u32 %v1712, 16
  %v1803 = vrot.slane %v1801, 5
  %v1804 = vsel %vm524, %v1799, %v1803
  %v1806 = vshrl.u32 %v1713, 16
  %v1808 = vrot.slane %v1806, 4
  %v1809 = vshll.u32 %v1713, 16
  %v1811 = vrot.slane %v1809, 5
  %v1812 = vor.u32 %v1808, %v1811
  %v1813 = vrot.slane %v1812, 4
  %v1815 = vshll.u32 %v1714, 16
  %v1817 = vrot.slane %v1815, 5
  %v1818 = vsel %vm524, %v1813, %v1817
  %v1820 = vshrl.u32 %v1715, 16
  %v1822 = vrot.slane %v1820, 4
  %v1823 = vshll.u32 %v1715, 16
  %v1825 = vrot.slane %v1823, 5
  %v1826 = vor.u32 %v1822, %v1825
  %v1827 = vrot.slane %v1826, 4
  %v1829 = vshll.u32 %v1716, 16
  %v1831 = vrot.slane %v1829, 5
  %v1832 = vsel %vm524, %v1827, %v1831
  %v1834 = vshrl.u32 %v1717, 16
  %v1836 = vrot.slane %v1834, 4
  %v1837 = vshll.u32 %v1717, 16
  %v1839 = vrot.slane %v1837, 5
  %v1840 = vor.u32 %v1836, %v1839
  %v1841 = vrot.slane %v1840, 4
  %v1843 = vshll.u32 %v1718, 16
  %v1845 = vrot.slane %v1843, 5
  %v1846 = vsel %vm524, %v1841, %v1845
  %v1848 = vshrl.u32 %v1719, 16
  %v1850 = vrot.slane %v1848, 4
  %v1851 = vshll.u32 %v1719, 16
  %v1853 = vrot.slane %v1851, 5
  %v1854 = vor.u32 %v1850, %v1853
  %v1855 = vrot.slane %v1854, 4
  %v1857 = vshll.u32 %v1720, 16
  %v1859 = vrot.slane %v1857, 5
  %v1860 = vsel %vm524, %v1855, %v1859
  %v1862 = vshrl.u32 %v1721, 16
  %v1864 = vrot.slane %v1862, 4
  %v1865 = vshll.u32 %v1721, 16
  %v1867 = vrot.slane %v1865, 5
  %v1868 = vor.u32 %v1864, %v1867
  %v1869 = vrot.slane %v1868, 4
  %v1871 = vshll.u32 %v1722, 16
  %v1873 = vrot.slane %v1871, 5
  %v1874 = vsel %vm524, %v1869, %v1873
  %v1876 = vshrl.u32 %v1723, 16
  %v1878 = vrot.slane %v1876, 4
  %v1879 = vshll.u32 %v1723, 16
  %v1881 = vrot.slane %v1879, 5
  %v1882 = vor.u32 %v1878, %v1881
  %v1883 = vrot.slane %v1882, 4
  %v1885 = vshll.u32 %v1724, 16
  %v1887 = vrot.slane %v1885, 5
  %v1888 = vsel %vm524, %v1883, %v1887
  %v1890 = vshrl.u32 %v1725, 16
  %v1892 = vrot.slane %v1890, 4
  %v1893 = vshll.u32 %v1725, 16
  %v1895 = vrot.slane %v1893, 5
  %v1896 = vor.u32 %v1892, %v1895
  %v1897 = vrot.slane %v1896, 4
  %v1899 = vshll.u32 %v1726, 16
  %v1901 = vrot.slane %v1899, 5
  %v1902 = vsel %vm524, %v1897, %v1901
  %v1904 = vshrl.u32 %v1727, 16
  %v1906 = vrot.slane %v1904, 4
  %v1907 = vshll.u32 %v1727, 16
  %v1909 = vrot.slane %v1907, 5
  %v1910 = vor.u32 %v1906, %v1909
  %v1911 = vrot.slane %v1910, 4
  %v1913 = vshll.u32 %v1728, 16
  %v1915 = vrot.slane %v1913, 5
  %v1916 = vsel %vm524, %v1911, %v1915
  %v1918 = vshrl.u32 %v1729, 16
  %v1920 = vrot.slane %v1918, 4
  %v1921 = vshll.u32 %v1729, 16
  %v1923 = vrot.slane %v1921, 5
  %v1924 = vor.u32 %v1920, %v1923
  %v1925 = vrot.slane %v1924, 4
  %v1927 = vshll.u32 %v1730, 16
  %v1929 = vrot.slane %v1927, 5
  %v1930 = vsel %vm524, %v1925, %v1929
  %v1932 = vshrl.u32 %v1731, 16
  %v1934 = vrot.slane %v1932, 4
  %v1935 = vshll.u32 %v1731, 16
  %v1937 = vrot.slane %v1935, 5
  %v1938 = vor.u32 %v1934, %v1937
  %v1939 = vrot.slane %v1938, 4
  %v1941 = vshll.u32 %v1732, 16
  %v1943 = vrot.slane %v1941, 5
  %v1944 = vsel %vm524, %v1939, %v1943
  %v1946 = vshrl.u32 %v1733, 16
  %v1948 = vrot.slane %v1946, 4
  %v1949 = vshll.u32 %v1733, 16
  %v1951 = vrot.slane %v1949, 5
  %v1952 = vor.u32 %v1948, %v1951
  %v1953 = vrot.slane %v1952, 4
  %v1955 = vshll.u32 %v1734, 16
  %v1957 = vrot.slane %v1955, 5
  %v1958 = vsel %vm524, %v1953, %v1957
  %s1959 = scalar_lea.vmem %s1, 256
  %v1960 = vld [vmem:[%s1959] sm:$0xf]
  %v1961 = vld [vmem:[%s1959 + $0x4] sm:$0xf]
  %v1962 = vld [vmem:[%s1959 + $0x8] sm:$0xf]
  %v1963 = vld [vmem:[%s1959 + $0xc] sm:$0xf]
  %v1964 = vld [vmem:[%s1959 + $0x10] sm:$0xf]
  %v1965 = vld [vmem:[%s1959 + $0x14] sm:$0xf]
  %v1966 = vld [vmem:[%s1959 + $0x18] sm:$0xf]
  %v1967 = vld [vmem:[%s1959 + $0x1c] sm:$0xf]
  %v1968 = vld [vmem:[%s1959 + $0x20] sm:$0xf]
  %v1969 = vld [vmem:[%s1959 + $0x24] sm:$0xf]
  %v1970 = vld [vmem:[%s1959 + $0x28] sm:$0xf]
  %v1971 = vld [vmem:[%s1959 + $0x2c] sm:$0xf]
  %v1972 = vld [vmem:[%s1959 + $0x30] sm:$0xf]
  %v1973 = vld [vmem:[%s1959 + $0x34] sm:$0xf]
  %v1974 = vld [vmem:[%s1959 + $0x38] sm:$0xf]
  %v1975 = vld [vmem:[%s1959 + $0x3c] sm:$0xf]
  %v1976 = vunpack.c.l.b16 %v1748
  %v1977 = vunpack.c.l.b16 %v1762
  %v1978 = vunpack.c.l.b16 %v1776
  %v1979 = vunpack.c.l.b16 %v1790
  %v1980 = vunpack.c.l.b16 %v1804
  %v1981 = vunpack.c.l.b16 %v1818
  %v1982 = vunpack.c.l.b16 %v1832
  %v1983 = vunpack.c.l.b16 %v1846
  %v1984 = vunpack.c.l.b16 %v1860
  %v1985 = vunpack.c.l.b16 %v1874
  %v1986 = vunpack.c.l.b16 %v1888
  %v1987 = vunpack.c.l.b16 %v1902
  %v1988 = vunpack.c.l.b16 %v1916
  %v1989 = vunpack.c.l.b16 %v1930
  %v1990 = vunpack.c.l.b16 %v1944
  %v1991 = vunpack.c.l.b16 %v1958
  %v1992 = vpack.c.b16 %v1977, %v1976
  %v1993 = vpack.c.b16 %v1979, %v1978
  %v1994 = vpack.c.b16 %v1981, %v1980
  %v1995 = vpack.c.b16 %v1983, %v1982
  %v1996 = vpack.c.b16 %v1985, %v1984
  %v1997 = vpack.c.b16 %v1987, %v1986
  %v1998 = vpack.c.b16 %v1989, %v1988
  %v1999 = vpack.c.b16 %v1991, %v1990
  %v2024 = vunpack.c.l.b16 %v1960
  %v2025 = vunpack.c.l.b16 %v1961
  %v2026 = vunpack.c.l.b16 %v1962
  %v2027 = vunpack.c.l.b16 %v1963
  %v2028 = vunpack.c.l.b16 %v1964
  %v2029 = vunpack.c.l.b16 %v1965
  %v2030 = vunpack.c.l.b16 %v1966
  %v2031 = vunpack.c.l.b16 %v1967
  %v2032 = vunpack.c.l.b16 %v1968
  %v2033 = vunpack.c.l.b16 %v1969
  %v2034 = vunpack.c.l.b16 %v1970
  %v2035 = vunpack.c.l.b16 %v1971
  %v2036 = vunpack.c.l.b16 %v1972
  %v2037 = vunpack.c.l.b16 %v1973
  %v2038 = vunpack.c.l.b16 %v1974
  %v2039 = vunpack.c.l.b16 %v1975
  %v2040 = vpack.c.b16 %v2025, %v2024
  %v2041 = vpack.c.b16 %v2027, %v2026
  %v2042 = vpack.c.b16 %v2029, %v2028
  %v2043 = vpack.c.b16 %v2031, %v2030
  %v2044 = vpack.c.b16 %v2033, %v2032
  %v2045 = vpack.c.b16 %v2035, %v2034
  %v2046 = vpack.c.b16 %v2037, %v2036
  %v2047 = vpack.c.b16 %v2039, %v2038
  %2056 = vmatprep.subr.bf16.mxu0 0
  %2057 = vmatpush1.bf16.msra.mxu0 %v2047
  %2058 = vmatprep.subr.bf16.mxu0 0
  %2059 = vmatpush1.bf16.msra.mxu0 %v2046
  %2060 = vmatprep.subr.bf16.mxu0 0
  %2061 = vmatpush1.bf16.msra.mxu0 %v2045
  %2062 = vmatprep.subr.bf16.mxu0 0
  %2063 = vmatpush1.bf16.msra.mxu0 %v2044
  %2064 = vmatprep.subr.bf16.mxu0 0
  %2065 = vmatpush1.bf16.msra.mxu0 %v2043
  %2066 = vmatprep.subr.bf16.mxu0 0
  %2067 = vmatpush1.bf16.msra.mxu0 %v2042
  %2068 = vmatprep.subr.bf16.mxu0 0
  %2069 = vmatpush1.bf16.msra.mxu0 %v2041
  %2070 = vmatprep.subr.bf16.mxu0 0
  %2071 = vmatpush1.bf16.msra.mxu0 %v2040
  %2072 = vmatprep.subr.bf16.mxu0 0
  %2073 = vmatpush2.bf16.msra.mxu0 0
  %2074 = vmatprep.subr.bf16.mxu0 0
  %2075 = vmatpush2.bf16.msra.mxu0 0
  %2076 = vmatprep.subr.bf16.mxu0 0
  %2077 = vmatpush2.bf16.msra.mxu0 0
  %2078 = vmatprep.subr.bf16.mxu0 0
  %2079 = vmatpush2.bf16.msra.mxu0 0
  %2080 = vmatprep.subr.bf16.mxu0 0
  %2081 = vmatpush2.bf16.msra.mxu0 0
  %2082 = vmatprep.subr.bf16.mxu0 0
  %2083 = vmatpush2.bf16.msra.mxu0 0
  %2084 = vmatprep.subr.bf16.mxu0 0
  %2085 = vmatpush2.bf16.msra.mxu0 0
  %2086 = vmatprep.subr.bf16.mxu0 0
  %2087 = vmatpush2.bf16.msra.mxu0 0
  %2088 = vmatprep.mubr.bf16.mxu0 0
  %2089 = vmatmul.mubr.bf16.gmra.mxu0 %v1992
  %v2090 = vpop.f32.mrf.mxu0
  %v2091 = vadd.f32 0.0, %v2090
  %v2092 = vpop.f32.mrf.mxu0
  %v2093 = vpop.f32.mrf.mxu0
  %v2094 = vadd.f32 0.0, %v2093
  %v2095 = vpop.f32.mrf.mxu0
  %2096 = vmatprep.mubr.bf16.mxu0 0
  %2097 = vmatmul.mubr.bf16.gmra.mxu0 %v1993
  %v2098 = vpop.f32.mrf.mxu0
  %v2099 = vadd.f32 0.0, %v2098
  %v2100 = vpop.f32.mrf.mxu0
  %v2101 = vpop.f32.mrf.mxu0
  %v2102 = vadd.f32 0.0, %v2101
  %v2103 = vpop.f32.mrf.mxu0
  %2104 = vmatprep.mubr.bf16.mxu0 0
  %2105 = vmatmul.mubr.bf16.gmra.mxu0 %v1994
  %v2106 = vpop.f32.mrf.mxu0
  %v2107 = vadd.f32 0.0, %v2106
  %v2108 = vpop.f32.mrf.mxu0
  %v2109 = vpop.f32.mrf.mxu0
  %v2110 = vadd.f32 0.0, %v2109
  %v2111 = vpop.f32.mrf.mxu0
  %2112 = vmatprep.mubr.bf16.mxu0 0
  %2113 = vmatmul.mubr.bf16.gmra.mxu0 %v1995
  %v2114 = vpop.f32.mrf.mxu0
  %v2115 = vadd.f32 0.0, %v2114
  %v2116 = vpop.f32.mrf.mxu0
  %v2117 = vpop.f32.mrf.mxu0
  %v2118 = vadd.f32 0.0, %v2117
  %v2119 = vpop.f32.mrf.mxu0
  %2120 = vmatprep.mubr.bf16.mxu0 0
  %2121 = vmatmul.mubr.bf16.gmra.mxu0 %v1996
  %v2122 = vpop.f32.mrf.mxu0
  %v2123 = vadd.f32 0.0, %v2122
  %v2124 = vpop.f32.mrf.mxu0
  %v2125 = vpop.f32.mrf.mxu0
  %v2126 = vadd.f32 0.0, %v2125
  %v2127 = vpop.f32.mrf.mxu0
  %2128 = vmatprep.mubr.bf16.mxu0 0
  %2129 = vmatmul.mubr.bf16.gmra.mxu0 %v1997
  %v2130 = vpop.f32.mrf.mxu0
  %v2131 = vadd.f32 0.0, %v2130
  %v2132 = vpop.f32.mrf.mxu0
  %v2133 = vpop.f32.mrf.mxu0
  %v2134 = vadd.f32 0.0, %v2133
  %v2135 = vpop.f32.mrf.mxu0
  %2136 = vmatprep.mubr.bf16.mxu0 0
  %2137 = vmatmul.mubr.bf16.gmra.mxu0 %v1998
  %v2138 = vpop.f32.mrf.mxu0
  %v2139 = vadd.f32 0.0, %v2138
  %v2140 = vpop.f32.mrf.mxu0
  %v2141 = vpop.f32.mrf.mxu0
  %v2142 = vadd.f32 0.0, %v2141
  %v2143 = vpop.f32.mrf.mxu0
  %2144 = vmatprep.mubr.bf16.mxu0 0
  %2145 = vmatmul.mubr.bf16.gmra.mxu0 %v1999
  %v2146 = vpop.f32.mrf.mxu0
  %v2147 = vadd.f32 0.0, %v2146
  %v2148 = vpop.f32.mrf.mxu0
  %v2149 = vpop.f32.mrf.mxu0
  %v2150 = vadd.f32 0.0, %v2149
  %v2151 = vpop.f32.mrf.mxu0
  %2152 = vdwg.mxu0
  %v2153 = vadd.f32 %v1687, %v2091
  %v2154 = vadd.f32 %v1688, %v2094
  %v2155 = vadd.f32 %v1689, %v2099
  %v2156 = vadd.f32 %v1690, %v2102
  %v2157 = vadd.f32 %v1691, %v2107
  %v2158 = vadd.f32 %v1692, %v2110
  %v2159 = vadd.f32 %v1693, %v2115
  %v2160 = vadd.f32 %v1694, %v2118
  %v2161 = vadd.f32 %v1695, %v2123
  %v2162 = vadd.f32 %v1696, %v2126
  %v2163 = vadd.f32 %v1697, %v2131
  %v2164 = vadd.f32 %v1698, %v2134
  %v2165 = vadd.f32 %v1699, %v2139
  %v2166 = vadd.f32 %v1700, %v2142
  %v2167 = vadd.f32 %v1701, %v2147
  %v2168 = vadd.f32 %v1702, %v2150
  %v2169 = vld [vmem:[%s371] sm:$0xe]
  %v2170 = vld [vmem:[%s371 + $0x8] sm:$0xe]
  %v2171 = vld [vmem:[%s371 + $0x10] sm:$0xe]
  %v2172 = vld [vmem:[%s371 + $0x18] sm:$0xe]
  %v2173 = vld [vmem:[%s371 + $0x20] sm:$0xe]
  %v2174 = vld [vmem:[%s371 + $0x28] sm:$0xe]
  %v2175 = vld [vmem:[%s371 + $0x30] sm:$0xe]
  %v2176 = vld [vmem:[%s371 + $0x38] sm:$0xe]
  %v2177 = vld [vmem:[%s371 + $0x50] sm:$0xe]
  %v2178 = vld [vmem:[%s371 + $0x58] sm:$0xe]
  %v2179 = vld [vmem:[%s371 + $0x60] sm:$0xe]
  %v2180 = vld [vmem:[%s371 + $0x68] sm:$0xe]
  %v2181 = vld [vmem:[%s371 + $0x70] sm:$0xe]
  %v2182 = vld [vmem:[%s371 + $0x78] sm:$0xe]
  %v2183 = vld [vmem:[%s371 + $0x80] sm:$0xe]
  %v2184 = vld [vmem:[%s371 + $0x88] sm:$0xe]
  %v2217 = vrot.slane %v2169, 5
  %v2218 = vrot.slane %v2217, 4
  %v2219 = vrot.slane %v1704, 5
  %v2220 = vsel %vm1186, %v2218, %v2219
  %v2221 = vrot.slane %v2170, 5
  %v2222 = vrot.slane %v2221, 4
  %v2223 = vrot.slane %v1706, 5
  %v2224 = vsel %vm1186, %v2222, %v2223
  %v2225 = vrot.slane %v2171, 5
  %v2226 = vrot.slane %v2225, 4
  %v2227 = vrot.slane %v1708, 5
  %v2228 = vsel %vm1186, %v2226, %v2227
  %v2229 = vrot.slane %v2172, 5
  %v2230 = vrot.slane %v2229, 4
  %v2231 = vrot.slane %v1710, 5
  %v2232 = vsel %vm1186, %v2230, %v2231
  %v2233 = vrot.slane %v2173, 5
  %v2234 = vrot.slane %v2233, 4
  %v2235 = vrot.slane %v1712, 5
  %v2236 = vsel %vm1186, %v2234, %v2235
  %v2237 = vrot.slane %v2174, 5
  %v2238 = vrot.slane %v2237, 4
  %v2239 = vrot.slane %v1714, 5
  %v2240 = vsel %vm1186, %v2238, %v2239
  %v2241 = vrot.slane %v2175, 5
  %v2242 = vrot.slane %v2241, 4
  %v2243 = vrot.slane %v1716, 5
  %v2244 = vsel %vm1186, %v2242, %v2243
  %v2245 = vrot.slane %v2176, 5
  %v2246 = vrot.slane %v2245, 4
  %v2247 = vrot.slane %v1718, 5
  %v2248 = vsel %vm1186, %v2246, %v2247
  %v2249 = vrot.slane %v2177, 5
  %v2250 = vrot.slane %v2249, 4
  %v2251 = vrot.slane %v1720, 5
  %v2252 = vsel %vm1186, %v2250, %v2251
  %v2253 = vrot.slane %v2178, 5
  %v2254 = vrot.slane %v2253, 4
  %v2255 = vrot.slane %v1722, 5
  %v2256 = vsel %vm1186, %v2254, %v2255
  %v2257 = vrot.slane %v2179, 5
  %v2258 = vrot.slane %v2257, 4
  %v2259 = vrot.slane %v1724, 5
  %v2260 = vsel %vm1186, %v2258, %v2259
  %v2261 = vrot.slane %v2180, 5
  %v2262 = vrot.slane %v2261, 4
  %v2263 = vrot.slane %v1726, 5
  %v2264 = vsel %vm1186, %v2262, %v2263
  %v2265 = vrot.slane %v2181, 5
  %v2266 = vrot.slane %v2265, 4
  %v2267 = vrot.slane %v1728, 5
  %v2268 = vsel %vm1186, %v2266, %v2267
  %v2269 = vrot.slane %v2182, 5
  %v2270 = vrot.slane %v2269, 4
  %v2271 = vrot.slane %v1730, 5
  %v2272 = vsel %vm1186, %v2270, %v2271
  %v2273 = vrot.slane %v2183, 5
  %v2274 = vrot.slane %v2273, 4
  %v2275 = vrot.slane %v1732, 5
  %v2276 = vsel %vm1186, %v2274, %v2275
  %v2277 = vrot.slane %v2184, 5
  %v2278 = vrot.slane %v2277, 4
  %v2279 = vrot.slane %v1734, 5
  %v2280 = vsel %vm1186, %v2278, %v2279
  %s2281 = scalar_lea.vmem %s1, 320
  %v2282 = vld [vmem:[%s2281] sm:$0xf]
  %v2283 = vld [vmem:[%s2281 + $0x4] sm:$0xf]
  %v2284 = vld [vmem:[%s2281 + $0x8] sm:$0xf]
  %v2285 = vld [vmem:[%s2281 + $0xc] sm:$0xf]
  %v2286 = vld [vmem:[%s2281 + $0x10] sm:$0xf]
  %v2287 = vld [vmem:[%s2281 + $0x14] sm:$0xf]
  %v2288 = vld [vmem:[%s2281 + $0x18] sm:$0xf]
  %v2289 = vld [vmem:[%s2281 + $0x1c] sm:$0xf]
  %v2290 = vld [vmem:[%s2281 + $0x20] sm:$0xf]
  %v2291 = vld [vmem:[%s2281 + $0x24] sm:$0xf]
  %v2292 = vld [vmem:[%s2281 + $0x28] sm:$0xf]
  %v2293 = vld [vmem:[%s2281 + $0x2c] sm:$0xf]
  %v2294 = vld [vmem:[%s2281 + $0x30] sm:$0xf]
  %v2295 = vld [vmem:[%s2281 + $0x34] sm:$0xf]
  %v2296 = vld [vmem:[%s2281 + $0x38] sm:$0xf]
  %v2297 = vld [vmem:[%s2281 + $0x3c] sm:$0xf]
  %v2298 = vunpack.c.l.b16 %v2220
  %v2299 = vunpack.c.l.b16 %v2224
  %v2300 = vunpack.c.l.b16 %v2228
  %v2301 = vunpack.c.l.b16 %v2232
  %v2302 = vunpack.c.l.b16 %v2236
  %v2303 = vunpack.c.l.b16 %v2240
  %v2304 = vunpack.c.l.b16 %v2244
  %v2305 = vunpack.c.l.b16 %v2248
  %v2306 = vunpack.c.l.b16 %v2252
  %v2307 = vunpack.c.l.b16 %v2256
  %v2308 = vunpack.c.l.b16 %v2260
  %v2309 = vunpack.c.l.b16 %v2264
  %v2310 = vunpack.c.l.b16 %v2268
  %v2311 = vunpack.c.l.b16 %v2272
  %v2312 = vunpack.c.l.b16 %v2276
  %v2313 = vunpack.c.l.b16 %v2280
  %v2314 = vpack.c.b16 %v2299, %v2298
  %v2315 = vpack.c.b16 %v2301, %v2300
  %v2316 = vpack.c.b16 %v2303, %v2302
  %v2317 = vpack.c.b16 %v2305, %v2304
  %v2318 = vpack.c.b16 %v2307, %v2306
  %v2319 = vpack.c.b16 %v2309, %v2308
  %v2320 = vpack.c.b16 %v2311, %v2310
  %v2321 = vpack.c.b16 %v2313, %v2312
  %v2346 = vunpack.c.l.b16 %v2282
  %v2347 = vunpack.c.l.b16 %v2283
  %v2348 = vunpack.c.l.b16 %v2284
  %v2349 = vunpack.c.l.b16 %v2285
  %v2350 = vunpack.c.l.b16 %v2286
  %v2351 = vunpack.c.l.b16 %v2287
  %v2352 = vunpack.c.l.b16 %v2288
  %v2353 = vunpack.c.l.b16 %v2289
  %v2354 = vunpack.c.l.b16 %v2290
  %v2355 = vunpack.c.l.b16 %v2291
  %v2356 = vunpack.c.l.b16 %v2292
  %v2357 = vunpack.c.l.b16 %v2293
  %v2358 = vunpack.c.l.b16 %v2294
  %v2359 = vunpack.c.l.b16 %v2295
  %v2360 = vunpack.c.l.b16 %v2296
  %v2361 = vunpack.c.l.b16 %v2297
  %v2362 = vpack.c.b16 %v2347, %v2346
  %v2363 = vpack.c.b16 %v2349, %v2348
  %v2364 = vpack.c.b16 %v2351, %v2350
  %v2365 = vpack.c.b16 %v2353, %v2352
  %v2366 = vpack.c.b16 %v2355, %v2354
  %v2367 = vpack.c.b16 %v2357, %v2356
  %v2368 = vpack.c.b16 %v2359, %v2358
  %v2369 = vpack.c.b16 %v2361, %v2360
  %2378 = vmatprep.subr.bf16.mxu0 0
  %2379 = vmatpush1.bf16.msra.mxu0 %v2369
  %2380 = vmatprep.subr.bf16.mxu0 0
  %2381 = vmatpush1.bf16.msra.mxu0 %v2368
  %2382 = vmatprep.subr.bf16.mxu0 0
  %2383 = vmatpush1.bf16.msra.mxu0 %v2367
  %2384 = vmatprep.subr.bf16.mxu0 0
  %2385 = vmatpush1.bf16.msra.mxu0 %v2366
  %2386 = vmatprep.subr.bf16.mxu0 0
  %2387 = vmatpush1.bf16.msra.mxu0 %v2365
  %2388 = vmatprep.subr.bf16.mxu0 0
  %2389 = vmatpush1.bf16.msra.mxu0 %v2364
  %2390 = vmatprep.subr.bf16.mxu0 0
  %2391 = vmatpush1.bf16.msra.mxu0 %v2363
  %2392 = vmatprep.subr.bf16.mxu0 0
  %2393 = vmatpush1.bf16.msra.mxu0 %v2362
  %2394 = vmatprep.subr.bf16.mxu0 0
  %2395 = vmatpush2.bf16.msra.mxu0 0
  %2396 = vmatprep.subr.bf16.mxu0 0
  %2397 = vmatpush2.bf16.msra.mxu0 0
  %2398 = vmatprep.subr.bf16.mxu0 0
  %2399 = vmatpush2.bf16.msra.mxu0 0
  %2400 = vmatprep.subr.bf16.mxu0 0
  %2401 = vmatpush2.bf16.msra.mxu0 0
  %2402 = vmatprep.subr.bf16.mxu0 0
  %2403 = vmatpush2.bf16.msra.mxu0 0
  %2404 = vmatprep.subr.bf16.mxu0 0
  %2405 = vmatpush2.bf16.msra.mxu0 0
  %2406 = vmatprep.subr.bf16.mxu0 0
  %2407 = vmatpush2.bf16.msra.mxu0 0
  %2408 = vmatprep.subr.bf16.mxu0 0
  %2409 = vmatpush2.bf16.msra.mxu0 0
  %2410 = vmatprep.mubr.bf16.mxu0 0
  %2411 = vmatmul.mubr.bf16.gmra.mxu0 %v2314
  %v2412 = vpop.f32.mrf.mxu0
  %v2413 = vadd.f32 0.0, %v2412
  %v2414 = vpop.f32.mrf.mxu0
  %v2415 = vpop.f32.mrf.mxu0
  %v2416 = vadd.f32 0.0, %v2415
  %v2417 = vpop.f32.mrf.mxu0
  %2418 = vmatprep.mubr.bf16.mxu0 0
  %2419 = vmatmul.mubr.bf16.gmra.mxu0 %v2315
  %v2420 = vpop.f32.mrf.mxu0
  %v2421 = vadd.f32 0.0, %v2420
  %v2422 = vpop.f32.mrf.mxu0
  %v2423 = vpop.f32.mrf.mxu0
  %v2424 = vadd.f32 0.0, %v2423
  %v2425 = vpop.f32.mrf.mxu0
  %2426 = vmatprep.mubr.bf16.mxu0 0
  %2427 = vmatmul.mubr.bf16.gmra.mxu0 %v2316
  %v2428 = vpop.f32.mrf.mxu0
  %v2429 = vadd.f32 0.0, %v2428
  %v2430 = vpop.f32.mrf.mxu0
  %v2431 = vpop.f32.mrf.mxu0
  %v2432 = vadd.f32 0.0, %v2431
  %v2433 = vpop.f32.mrf.mxu0
  %2434 = vmatprep.mubr.bf16.mxu0 0
  %2435 = vmatmul.mubr.bf16.gmra.mxu0 %v2317
  %v2436 = vpop.f32.mrf.mxu0
  %v2437 = vadd.f32 0.0, %v2436
  %v2438 = vpop.f32.mrf.mxu0
  %v2439 = vpop.f32.mrf.mxu0
  %v2440 = vadd.f32 0.0, %v2439
  %v2441 = vpop.f32.mrf.mxu0
  %2442 = vmatprep.mubr.bf16.mxu0 0
  %2443 = vmatmul.mubr.bf16.gmra.mxu0 %v2318
  %v2444 = vpop.f32.mrf.mxu0
  %v2445 = vadd.f32 0.0, %v2444
  %v2446 = vpop.f32.mrf.mxu0
  %v2447 = vpop.f32.mrf.mxu0
  %v2448 = vadd.f32 0.0, %v2447
  %v2449 = vpop.f32.mrf.mxu0
  %2450 = vmatprep.mubr.bf16.mxu0 0
  %2451 = vmatmul.mubr.bf16.gmra.mxu0 %v2319
  %v2452 = vpop.f32.mrf.mxu0
  %v2453 = vadd.f32 0.0, %v2452
  %v2454 = vpop.f32.mrf.mxu0
  %v2455 = vpop.f32.mrf.mxu0
  %v2456 = vadd.f32 0.0, %v2455
  %v2457 = vpop.f32.mrf.mxu0
  %2458 = vmatprep.mubr.bf16.mxu0 0
  %2459 = vmatmul.mubr.bf16.gmra.mxu0 %v2320
  %v2460 = vpop.f32.mrf.mxu0
  %v2461 = vadd.f32 0.0, %v2460
  %v2462 = vpop.f32.mrf.mxu0
  %v2463 = vpop.f32.mrf.mxu0
  %v2464 = vadd.f32 0.0, %v2463
  %v2465 = vpop.f32.mrf.mxu0
  %2466 = vmatprep.mubr.bf16.mxu0 0
  %2467 = vmatmul.mubr.bf16.gmra.mxu0 %v2321
  %v2468 = vpop.f32.mrf.mxu0
  %v2469 = vadd.f32 0.0, %v2468
  %v2470 = vpop.f32.mrf.mxu0
  %v2471 = vpop.f32.mrf.mxu0
  %v2472 = vadd.f32 0.0, %v2471
  %v2473 = vpop.f32.mrf.mxu0
  %2474 = vdwg.mxu0
  %v2475 = vadd.f32 %v2153, %v2413
  %v2476 = vadd.f32 %v2154, %v2416
  %v2477 = vadd.f32 %v2155, %v2421
  %v2478 = vadd.f32 %v2156, %v2424
  %v2479 = vadd.f32 %v2157, %v2429
  %v2480 = vadd.f32 %v2158, %v2432
  %v2481 = vadd.f32 %v2159, %v2437
  %v2482 = vadd.f32 %v2160, %v2440
  %v2483 = vadd.f32 %v2161, %v2445
  %v2484 = vadd.f32 %v2162, %v2448
  %v2485 = vadd.f32 %v2163, %v2453
  %v2486 = vadd.f32 %v2164, %v2456
  %v2487 = vadd.f32 %v2165, %v2461
  %v2488 = vadd.f32 %v2166, %v2464
  %v2489 = vadd.f32 %v2167, %v2469
  %v2490 = vadd.f32 %v2168, %v2472
  %s2491 = scalar_lea.vmem [#allocation2], 16
  %v2492 = vld [vmem:[%s2491] sm:$0xf]
  %v2493 = vld [vmem:[%s2491 + $0x8] sm:$0xf]
  %v2494 = vld [vmem:[%s2491 + $0x10] sm:$0xf]
  %v2495 = vld [vmem:[%s2491 + $0x18] sm:$0xf]
  %v2496 = vld [vmem:[%s2491 + $0x20] sm:$0xf]
  %v2497 = vld [vmem:[%s2491 + $0x28] sm:$0xf]
  %v2498 = vld [vmem:[%s2491 + $0x30] sm:$0xf]
  %v2499 = vld [vmem:[%s2491 + $0x38] sm:$0xf]
  %v2500 = vld [vmem:[%s2491 + $0x50] sm:$0xf]
  %v2501 = vld [vmem:[%s2491 + $0x58] sm:$0xf]
  %v2502 = vld [vmem:[%s2491 + $0x60] sm:$0xf]
  %v2503 = vld [vmem:[%s2491 + $0x68] sm:$0xf]
  %v2504 = vld [vmem:[%s2491 + $0x70] sm:$0xf]
  %v2505 = vld [vmem:[%s2491 + $0x78] sm:$0xf]
  %v2506 = vld [vmem:[%s2491 + $0x80] sm:$0xf]
  %v2507 = vld [vmem:[%s2491 + $0x88] sm:$0xf]
  %s2508 = scalar_lea.vmem %s1, 384
  %v2509 = vld [vmem:[%s2508] sm:$0xf]
  %v2510 = vld [vmem:[%s2508 + $0x4] sm:$0xf]
  %v2511 = vld [vmem:[%s2508 + $0x8] sm:$0xf]
  %v2512 = vld [vmem:[%s2508 + $0xc] sm:$0xf]
  %v2513 = vld [vmem:[%s2508 + $0x10] sm:$0xf]
  %v2514 = vld [vmem:[%s2508 + $0x14] sm:$0xf]
  %v2515 = vld [vmem:[%s2508 + $0x18] sm:$0xf]
  %v2516 = vld [vmem:[%s2508 + $0x1c] sm:$0xf]
  %v2517 = vld [vmem:[%s2508 + $0x20] sm:$0xf]
  %v2518 = vld [vmem:[%s2508 + $0x24] sm:$0xf]
  %v2519 = vld [vmem:[%s2508 + $0x28] sm:$0xf]
  %v2520 = vld [vmem:[%s2508 + $0x2c] sm:$0xf]
  %v2521 = vld [vmem:[%s2508 + $0x30] sm:$0xf]
  %v2522 = vld [vmem:[%s2508 + $0x34] sm:$0xf]
  %v2523 = vld [vmem:[%s2508 + $0x38] sm:$0xf]
  %v2524 = vld [vmem:[%s2508 + $0x3c] sm:$0xf]
  %v2541 = vunpack.c.l.b16 %v2492
  %v2542 = vunpack.c.l.b16 %v2493
  %v2543 = vunpack.c.l.b16 %v2494
  %v2544 = vunpack.c.l.b16 %v2495
  %v2545 = vunpack.c.l.b16 %v2496
  %v2546 = vunpack.c.l.b16 %v2497
  %v2547 = vunpack.c.l.b16 %v2498
  %v2548 = vunpack.c.l.b16 %v2499
  %v2549 = vunpack.c.l.b16 %v2500
  %v2550 = vunpack.c.l.b16 %v2501
  %v2551 = vunpack.c.l.b16 %v2502
  %v2552 = vunpack.c.l.b16 %v2503
  %v2553 = vunpack.c.l.b16 %v2504
  %v2554 = vunpack.c.l.b16 %v2505
  %v2555 = vunpack.c.l.b16 %v2506
  %v2556 = vunpack.c.l.b16 %v2507
  %v2557 = vpack.c.b16 %v2542, %v2541
  %v2558 = vpack.c.b16 %v2544, %v2543
  %v2559 = vpack.c.b16 %v2546, %v2545
  %v2560 = vpack.c.b16 %v2548, %v2547
  %v2561 = vpack.c.b16 %v2550, %v2549
  %v2562 = vpack.c.b16 %v2552, %v2551
  %v2563 = vpack.c.b16 %v2554, %v2553
  %v2564 = vpack.c.b16 %v2556, %v2555
  %v2589 = vunpack.c.l.b16 %v2509
  %v2590 = vunpack.c.l.b16 %v2510
  %v2591 = vunpack.c.l.b16 %v2511
  %v2592 = vunpack.c.l.b16 %v2512
  %v2593 = vunpack.c.l.b16 %v2513
  %v2594 = vunpack.c.l.b16 %v2514
  %v2595 = vunpack.c.l.b16 %v2515
  %v2596 = vunpack.c.l.b16 %v2516
  %v2597 = vunpack.c.l.b16 %v2517
  %v2598 = vunpack.c.l.b16 %v2518
  %v2599 = vunpack.c.l.b16 %v2519
  %v2600 = vunpack.c.l.b16 %v2520
  %v2601 = vunpack.c.l.b16 %v2521
  %v2602 = vunpack.c.l.b16 %v2522
  %v2603 = vunpack.c.l.b16 %v2523
  %v2604 = vunpack.c.l.b16 %v2524
  %v2605 = vpack.c.b16 %v2590, %v2589
  %v2606 = vpack.c.b16 %v2592, %v2591
  %v2607 = vpack.c.b16 %v2594, %v2593
  %v2608 = vpack.c.b16 %v2596, %v2595
  %v2609 = vpack.c.b16 %v2598, %v2597
  %v2610 = vpack.c.b16 %v2600, %v2599
  %v2611 = vpack.c.b16 %v2602, %v2601
  %v2612 = vpack.c.b16 %v2604, %v2603
  %2621 = vmatprep.subr.bf16.mxu0 0
  %2622 = vmatpush1.bf16.msra.mxu0 %v2612
  %2623 = vmatprep.subr.bf16.mxu0 0
  %2624 = vmatpush1.bf16.msra.mxu0 %v2611
  %2625 = vmatprep.subr.bf16.mxu0 0
  %2626 = vmatpush1.bf16.msra.mxu0 %v2610
  %2627 = vmatprep.subr.bf16.mxu0 0
  %2628 = vmatpush1.bf16.msra.mxu0 %v2609
  %2629 = vmatprep.subr.bf16.mxu0 0
  %2630 = vmatpush1.bf16.msra.mxu0 %v2608
  %2631 = vmatprep.subr.bf16.mxu0 0
  %2632 = vmatpush1.bf16.msra.mxu0 %v2607
  %2633 = vmatprep.subr.bf16.mxu0 0
  %2634 = vmatpush1.bf16.msra.mxu0 %v2606
  %2635 = vmatprep.subr.bf16.mxu0 0
  %2636 = vmatpush1.bf16.msra.mxu0 %v2605
  %2637 = vmatprep.subr.bf16.mxu0 0
  %2638 = vmatpush2.bf16.msra.mxu0 0
  %2639 = vmatprep.subr.bf16.mxu0 0
  %2640 = vmatpush2.bf16.msra.mxu0 0
  %2641 = vmatprep.subr.bf16.mxu0 0
  %2642 = vmatpush2.bf16.msra.mxu0 0
  %2643 = vmatprep.subr.bf16.mxu0 0
  %2644 = vmatpush2.bf16.msra.mxu0 0
  %2645 = vmatprep.subr.bf16.mxu0 0
  %2646 = vmatpush2.bf16.msra.mxu0 0
  %2647 = vmatprep.subr.bf16.mxu0 0
  %2648 = vmatpush2.bf16.msra.mxu0 0
  %2649 = vmatprep.subr.bf16.mxu0 0
  %2650 = vmatpush2.bf16.msra.mxu0 0
  %2651 = vmatprep.subr.bf16.mxu0 0
  %2652 = vmatpush2.bf16.msra.mxu0 0
  %2653 = vmatprep.mubr.bf16.mxu0 0
  %2654 = vmatmul.mubr.bf16.gmra.mxu0 %v2557
  %v2655 = vpop.f32.mrf.mxu0
  %v2656 = vadd.f32 0.0, %v2655
  %v2657 = vpop.f32.mrf.mxu0
  %v2658 = vpop.f32.mrf.mxu0
  %v2659 = vadd.f32 0.0, %v2658
  %v2660 = vpop.f32.mrf.mxu0
  %2661 = vmatprep.mubr.bf16.mxu0 0
  %2662 = vmatmul.mubr.bf16.gmra.mxu0 %v2558
  %v2663 = vpop.f32.mrf.mxu0
  %v2664 = vadd.f32 0.0, %v2663
  %v2665 = vpop.f32.mrf.mxu0
  %v2666 = vpop.f32.mrf.mxu0
  %v2667 = vadd.f32 0.0, %v2666
  %v2668 = vpop.f32.mrf.mxu0
  %2669 = vmatprep.mubr.bf16.mxu0 0
  %2670 = vmatmul.mubr.bf16.gmra.mxu0 %v2559
  %v2671 = vpop.f32.mrf.mxu0
  %v2672 = vadd.f32 0.0, %v2671
  %v2673 = vpop.f32.mrf.mxu0
  %v2674 = vpop.f32.mrf.mxu0
  %v2675 = vadd.f32 0.0, %v2674
  %v2676 = vpop.f32.mrf.mxu0
  %2677 = vmatprep.mubr.bf16.mxu0 0
  %2678 = vmatmul.mubr.bf16.gmra.mxu0 %v2560
  %v2679 = vpop.f32.mrf.mxu0
  %v2680 = vadd.f32 0.0, %v2679
  %v2681 = vpop.f32.mrf.mxu0
  %v2682 = vpop.f32.mrf.mxu0
  %v2683 = vadd.f32 0.0, %v2682
  %v2684 = vpop.f32.mrf.mxu0
  %2685 = vmatprep.mubr.bf16.mxu0 0
  %2686 = vmatmul.mubr.bf16.gmra.mxu0 %v2561
  %v2687 = vpop.f32.mrf.mxu0
  %v2688 = vadd.f32 0.0, %v2687
  %v2689 = vpop.f32.mrf.mxu0
  %v2690 = vpop.f32.mrf.mxu0
  %v2691 = vadd.f32 0.0, %v2690
  %v2692 = vpop.f32.mrf.mxu0
  %2693 = vmatprep.mubr.bf16.mxu0 0
  %2694 = vmatmul.mubr.bf16.gmra.mxu0 %v2562
  %v2695 = vpop.f32.mrf.mxu0
  %v2696 = vadd.f32 0.0, %v2695
  %v2697 = vpop.f32.mrf.mxu0
  %v2698 = vpop.f32.mrf.mxu0
  %v2699 = vadd.f32 0.0, %v2698
  %v2700 = vpop.f32.mrf.mxu0
  %2701 = vmatprep.mubr.bf16.mxu0 0
  %2702 = vmatmul.mubr.bf16.gmra.mxu0 %v2563
  %v2703 = vpop.f32.mrf.mxu0
  %v2704 = vadd.f32 0.0, %v2703
  %v2705 = vpop.f32.mrf.mxu0
  %v2706 = vpop.f32.mrf.mxu0
  %v2707 = vadd.f32 0.0, %v2706
  %v2708 = vpop.f32.mrf.mxu0
  %2709 = vmatprep.mubr.bf16.mxu0 0
  %2710 = vmatmul.mubr.bf16.gmra.mxu0 %v2564
  %v2711 = vpop.f32.mrf.mxu0
  %v2712 = vadd.f32 0.0, %v2711
  %v2713 = vpop.f32.mrf.mxu0
  %v2714 = vpop.f32.mrf.mxu0
  %v2715 = vadd.f32 0.0, %v2714
  %v2716 = vpop.f32.mrf.mxu0
  %2717 = vdwg.mxu0
  %v2718 = vadd.f32 %v2475, %v2656
  %v2719 = vadd.f32 %v2476, %v2659
  %v2720 = vadd.f32 %v2477, %v2664
  %v2721 = vadd.f32 %v2478, %v2667
  %v2722 = vadd.f32 %v2479, %v2672
  %v2723 = vadd.f32 %v2480, %v2675
  %v2724 = vadd.f32 %v2481, %v2680
  %v2725 = vadd.f32 %v2482, %v2683
  %v2726 = vadd.f32 %v2483, %v2688
  %v2727 = vadd.f32 %v2484, %v2691
  %v2728 = vadd.f32 %v2485, %v2696
  %v2729 = vadd.f32 %v2486, %v2699
  %v2730 = vadd.f32 %v2487, %v2704
  %v2731 = vadd.f32 %v2488, %v2707
  %v2732 = vadd.f32 %v2489, %v2712
  %v2733 = vadd.f32 %v2490, %v2715
  %v2734 = vld [vmem:[%s2491] sm:$0xf]
  %v2735 = vld [vmem:[%s2491 + $0x4] sm:$0x1]
  %v2736 = vld [vmem:[%s2491 + $0x8] sm:$0xf]
  %v2737 = vld [vmem:[%s2491 + $0xc] sm:$0x1]
  %v2738 = vld [vmem:[%s2491 + $0x10] sm:$0xf]
  %v2739 = vld [vmem:[%s2491 + $0x14] sm:$0x1]
  %v2740 = vld [vmem:[%s2491 + $0x18] sm:$0xf]
  %v2741 = vld [vmem:[%s2491 + $0x1c] sm:$0x1]
  %v2742 = vld [vmem:[%s2491 + $0x20] sm:$0xf]
  %v2743 = vld [vmem:[%s2491 + $0x24] sm:$0x1]
  %v2744 = vld [vmem:[%s2491 + $0x28] sm:$0xf]
  %v2745 = vld [vmem:[%s2491 + $0x2c] sm:$0x1]
  %v2746 = vld [vmem:[%s2491 + $0x30] sm:$0xf]
  %v2747 = vld [vmem:[%s2491 + $0x34] sm:$0x1]
  %v2748 = vld [vmem:[%s2491 + $0x38] sm:$0xf]
  %v2749 = vld [vmem:[%s2491 + $0x3c] sm:$0x1]
  %v2750 = vld [vmem:[%s2491 + $0x50] sm:$0xf]
  %v2751 = vld [vmem:[%s2491 + $0x54] sm:$0x1]
  %v2752 = vld [vmem:[%s2491 + $0x58] sm:$0xf]
  %v2753 = vld [vmem:[%s2491 + $0x5c] sm:$0x1]
  %v2754 = vld [vmem:[%s2491 + $0x60] sm:$0xf]
  %v2755 = vld [vmem:[%s2491 + $0x64] sm:$0x1]
  %v2756 = vld [vmem:[%s2491 + $0x68] sm:$0xf]
  %v2757 = vld [vmem:[%s2491 + $0x6c] sm:$0x1]
  %v2758 = vld [vmem:[%s2491 + $0x70] sm:$0xf]
  %v2759 = vld [vmem:[%s2491 + $0x74] sm:$0x1]
  %v2760 = vld [vmem:[%s2491 + $0x78] sm:$0xf]
  %v2761 = vld [vmem:[%s2491 + $0x7c] sm:$0x1]
  %v2762 = vld [vmem:[%s2491 + $0x80] sm:$0xf]
  %v2763 = vld [vmem:[%s2491 + $0x84] sm:$0x1]
  %v2764 = vld [vmem:[%s2491 + $0x88] sm:$0xf]
  %v2765 = vld [vmem:[%s2491 + $0x8c] sm:$0x1]
  %v2767 = vshrl.u32 %v2734, 16
  %v2769 = vrot.slane %v2767, 4
  %v2770 = vshll.u32 %v2734, 16
  %v2772 = vrot.slane %v2770, 5
  %v2773 = vor.u32 %v2769, %v2772
  %v2774 = vrot.slane %v2773, 4
  %v2776 = vshll.u32 %v2735, 16
  %v2778 = vrot.slane %v2776, 5
  %v2779 = vsel %vm524, %v2774, %v2778
  %v2781 = vshrl.u32 %v2736, 16
  %v2783 = vrot.slane %v2781, 4
  %v2784 = vshll.u32 %v2736, 16
  %v2786 = vrot.slane %v2784, 5
  %v2787 = vor.u32 %v2783, %v2786
  %v2788 = vrot.slane %v2787, 4
  %v2790 = vshll.u32 %v2737, 16
  %v2792 = vrot.slane %v2790, 5
  %v2793 = vsel %vm524, %v2788, %v2792
  %v2795 = vshrl.u32 %v2738, 16
  %v2797 = vrot.slane %v2795, 4
  %v2798 = vshll.u32 %v2738, 16
  %v2800 = vrot.slane %v2798, 5
  %v2801 = vor.u32 %v2797, %v2800
  %v2802 = vrot.slane %v2801, 4
  %v2804 = vshll.u32 %v2739, 16
  %v2806 = vrot.slane %v2804, 5
  %v2807 = vsel %vm524, %v2802, %v2806
  %v2809 = vshrl.u32 %v2740, 16
  %v2811 = vrot.slane %v2809, 4
  %v2812 = vshll.u32 %v2740, 16
  %v2814 = vrot.slane %v2812, 5
  %v2815 = vor.u32 %v2811, %v2814
  %v2816 = vrot.slane %v2815, 4
  %v2818 = vshll.u32 %v2741, 16
  %v2820 = vrot.slane %v2818, 5
  %v2821 = vsel %vm524, %v2816, %v2820
  %v2823 = vshrl.u32 %v2742, 16
  %v2825 = vrot.slane %v2823, 4
  %v2826 = vshll.u32 %v2742, 16
  %v2828 = vrot.slane %v2826, 5
  %v2829 = vor.u32 %v2825, %v2828
  %v2830 = vrot.slane %v2829, 4
  %v2832 = vshll.u32 %v2743, 16
  %v2834 = vrot.slane %v2832, 5
  %v2835 = vsel %vm524, %v2830, %v2834
  %v2837 = vshrl.u32 %v2744, 16
  %v2839 = vrot.slane %v2837, 4
  %v2840 = vshll.u32 %v2744, 16
  %v2842 = vrot.slane %v2840, 5
  %v2843 = vor.u32 %v2839, %v2842
  %v2844 = vrot.slane %v2843, 4
  %v2846 = vshll.u32 %v2745, 16
  %v2848 = vrot.slane %v2846, 5
  %v2849 = vsel %vm524, %v2844, %v2848
  %v2851 = vshrl.u32 %v2746, 16
  %v2853 = vrot.slane %v2851, 4
  %v2854 = vshll.u32 %v2746, 16
  %v2856 = vrot.slane %v2854, 5
  %v2857 = vor.u32 %v2853, %v2856
  %v2858 = vrot.slane %v2857, 4
  %v2860 = vshll.u32 %v2747, 16
  %v2862 = vrot.slane %v2860, 5
  %v2863 = vsel %vm524, %v2858, %v2862
  %v2865 = vshrl.u32 %v2748, 16
  %v2867 = vrot.slane %v2865, 4
  %v2868 = vshll.u32 %v2748, 16
  %v2870 = vrot.slane %v2868, 5
  %v2871 = vor.u32 %v2867, %v2870
  %v2872 = vrot.slane %v2871, 4
  %v2874 = vshll.u32 %v2749, 16
  %v2876 = vrot.slane %v2874, 5
  %v2877 = vsel %vm524, %v2872, %v2876
  %v2879 = vshrl.u32 %v2750, 16
  %v2881 = vrot.slane %v2879, 4
  %v2882 = vshll.u32 %v2750, 16
  %v2884 = vrot.slane %v2882, 5
  %v2885 = vor.u32 %v2881, %v2884
  %v2886 = vrot.slane %v2885, 4
  %v2888 = vshll.u32 %v2751, 16
  %v2890 = vrot.slane %v2888, 5
  %v2891 = vsel %vm524, %v2886, %v2890
  %v2893 = vshrl.u32 %v2752, 16
  %v2895 = vrot.slane %v2893, 4
  %v2896 = vshll.u32 %v2752, 16
  %v2898 = vrot.slane %v2896, 5
  %v2899 = vor.u32 %v2895, %v2898
  %v2900 = vrot.slane %v2899, 4
  %v2902 = vshll.u32 %v2753, 16
  %v2904 = vrot.slane %v2902, 5
  %v2905 = vsel %vm524, %v2900, %v2904
  %v2907 = vshrl.u32 %v2754, 16
  %v2909 = vrot.slane %v2907, 4
  %v2910 = vshll.u32 %v2754, 16
  %v2912 = vrot.slane %v2910, 5
  %v2913 = vor.u32 %v2909, %v2912
  %v2914 = vrot.slane %v2913, 4
  %v2916 = vshll.u32 %v2755, 16
  %v2918 = vrot.slane %v2916, 5
  %v2919 = vsel %vm524, %v2914, %v2918
  %v2921 = vshrl.u32 %v2756, 16
  %v2923 = vrot.slane %v2921, 4
  %v2924 = vshll.u32 %v2756, 16
  %v2926 = vrot.slane %v2924, 5
  %v2927 = vor.u32 %v2923, %v2926
  %v2928 = vrot.slane %v2927, 4
  %v2930 = vshll.u32 %v2757, 16
  %v2932 = vrot.slane %v2930, 5
  %v2933 = vsel %vm524, %v2928, %v2932
  %v2935 = vshrl.u32 %v2758, 16
  %v2937 = vrot.slane %v2935, 4
  %v2938 = vshll.u32 %v2758, 16
  %v2940 = vrot.slane %v2938, 5
  %v2941 = vor.u32 %v2937, %v2940
  %v2942 = vrot.slane %v2941, 4
  %v2944 = vshll.u32 %v2759, 16
  %v2946 = vrot.slane %v2944, 5
  %v2947 = vsel %vm524, %v2942, %v2946
  %v2949 = vshrl.u32 %v2760, 16
  %v2951 = vrot.slane %v2949, 4
  %v2952 = vshll.u32 %v2760, 16
  %v2954 = vrot.slane %v2952, 5
  %v2955 = vor.u32 %v2951, %v2954
  %v2956 = vrot.slane %v2955, 4
  %v2958 = vshll.u32 %v2761, 16
  %v2960 = vrot.slane %v2958, 5
  %v2961 = vsel %vm524, %v2956, %v2960
  %v2963 = vshrl.u32 %v2762, 16
  %v2965 = vrot.slane %v2963, 4
  %v2966 = vshll.u32 %v2762, 16
  %v2968 = vrot.slane %v2966, 5
  %v2969 = vor.u32 %v2965, %v2968
  %v2970 = vrot.slane %v2969, 4
  %v2972 = vshll.u32 %v2763, 16
  %v2974 = vrot.slane %v2972, 5
  %v2975 = vsel %vm524, %v2970, %v2974
  %v2977 = vshrl.u32 %v2764, 16
  %v2979 = vrot.slane %v2977, 4
  %v2980 = vshll.u32 %v2764, 16
  %v2982 = vrot.slane %v2980, 5
  %v2983 = vor.u32 %v2979, %v2982
  %v2984 = vrot.slane %v2983, 4
  %v2986 = vshll.u32 %v2765, 16
  %v2988 = vrot.slane %v2986, 5
  %v2989 = vsel %vm524, %v2984, %v2988
  %s2990 = scalar_lea.vmem %s1, 448
  %v2991 = vld [vmem:[%s2990] sm:$0xf]
  %v2992 = vld [vmem:[%s2990 + $0x4] sm:$0xf]
  %v2993 = vld [vmem:[%s2990 + $0x8] sm:$0xf]
  %v2994 = vld [vmem:[%s2990 + $0xc] sm:$0xf]
  %v2995 = vld [vmem:[%s2990 + $0x10] sm:$0xf]
  %v2996 = vld [vmem:[%s2990 + $0x14] sm:$0xf]
  %v2997 = vld [vmem:[%s2990 + $0x18] sm:$0xf]
  %v2998 = vld [vmem:[%s2990 + $0x1c] sm:$0xf]
  %v2999 = vld [vmem:[%s2990 + $0x20] sm:$0xf]
  %v3000 = vld [vmem:[%s2990 + $0x24] sm:$0xf]
  %v3001 = vld [vmem:[%s2990 + $0x28] sm:$0xf]
  %v3002 = vld [vmem:[%s2990 + $0x2c] sm:$0xf]
  %v3003 = vld [vmem:[%s2990 + $0x30] sm:$0xf]
  %v3004 = vld [vmem:[%s2990 + $0x34] sm:$0xf]
  %v3005 = vld [vmem:[%s2990 + $0x38] sm:$0xf]
  %v3006 = vld [vmem:[%s2990 + $0x3c] sm:$0xf]
  %v3007 = vunpack.c.l.b16 %v2779
  %v3008 = vunpack.c.l.b16 %v2793
  %v3009 = vunpack.c.l.b16 %v2807
  %v3010 = vunpack.c.l.b16 %v2821
  %v3011 = vunpack.c.l.b16 %v2835
  %v3012 = vunpack.c.l.b16 %v2849
  %v3013 = vunpack.c.l.b16 %v2863
  %v3014 = vunpack.c.l.b16 %v2877
  %v3015 = vunpack.c.l.b16 %v2891
  %v3016 = vunpack.c.l.b16 %v2905
  %v3017 = vunpack.c.l.b16 %v2919
  %v3018 = vunpack.c.l.b16 %v2933
  %v3019 = vunpack.c.l.b16 %v2947
  %v3020 = vunpack.c.l.b16 %v2961
  %v3021 = vunpack.c.l.b16 %v2975
  %v3022 = vunpack.c.l.b16 %v2989
  %v3023 = vpack.c.b16 %v3008, %v3007
  %v3024 = vpack.c.b16 %v3010, %v3009
  %v3025 = vpack.c.b16 %v3012, %v3011
  %v3026 = vpack.c.b16 %v3014, %v3013
  %v3027 = vpack.c.b16 %v3016, %v3015
  %v3028 = vpack.c.b16 %v3018, %v3017
  %v3029 = vpack.c.b16 %v3020, %v3019
  %v3030 = vpack.c.b16 %v3022, %v3021
  %v3055 = vunpack.c.l.b16 %v2991
  %v3056 = vunpack.c.l.b16 %v2992
  %v3057 = vunpack.c.l.b16 %v2993
  %v3058 = vunpack.c.l.b16 %v2994
  %v3059 = vunpack.c.l.b16 %v2995
  %v3060 = vunpack.c.l.b16 %v2996
  %v3061 = vunpack.c.l.b16 %v2997
  %v3062 = vunpack.c.l.b16 %v2998
  %v3063 = vunpack.c.l.b16 %v2999
  %v3064 = vunpack.c.l.b16 %v3000
  %v3065 = vunpack.c.l.b16 %v3001
  %v3066 = vunpack.c.l.b16 %v3002
  %v3067 = vunpack.c.l.b16 %v3003
  %v3068 = vunpack.c.l.b16 %v3004
  %v3069 = vunpack.c.l.b16 %v3005
  %v3070 = vunpack.c.l.b16 %v3006
  %v3071 = vpack.c.b16 %v3056, %v3055
  %v3072 = vpack.c.b16 %v3058, %v3057
  %v3073 = vpack.c.b16 %v3060, %v3059
  %v3074 = vpack.c.b16 %v3062, %v3061
  %v3075 = vpack.c.b16 %v3064, %v3063
  %v3076 = vpack.c.b16 %v3066, %v3065
  %v3077 = vpack.c.b16 %v3068, %v3067
  %v3078 = vpack.c.b16 %v3070, %v3069
  %3087 = vmatprep.subr.bf16.mxu0 0
  %3088 = vmatpush1.bf16.msra.mxu0 %v3078
  %3089 = vmatprep.subr.bf16.mxu0 0
  %3090 = vmatpush1.bf16.msra.mxu0 %v3077
  %3091 = vmatprep.subr.bf16.mxu0 0
  %3092 = vmatpush1.bf16.msra.mxu0 %v3076
  %3093 = vmatprep.subr.bf16.mxu0 0
  %3094 = vmatpush1.bf16.msra.mxu0 %v3075
  %3095 = vmatprep.subr.bf16.mxu0 0
  %3096 = vmatpush1.bf16.msra.mxu0 %v3074
  %3097 = vmatprep.subr.bf16.mxu0 0
  %3098 = vmatpush1.bf16.msra.mxu0 %v3073
  %3099 = vmatprep.subr.bf16.mxu0 0
  %3100 = vmatpush1.bf16.msra.mxu0 %v3072
  %3101 = vmatprep.subr.bf16.mxu0 0
  %3102 = vmatpush1.bf16.msra.mxu0 %v3071
  %3103 = vmatprep.subr.bf16.mxu0 0
  %3104 = vmatpush2.bf16.msra.mxu0 0
  %3105 = vmatprep.subr.bf16.mxu0 0
  %3106 = vmatpush2.bf16.msra.mxu0 0
  %3107 = vmatprep.subr.bf16.mxu0 0
  %3108 = vmatpush2.bf16.msra.mxu0 0
  %3109 = vmatprep.subr.bf16.mxu0 0
  %3110 = vmatpush2.bf16.msra.mxu0 0
  %3111 = vmatprep.subr.bf16.mxu0 0
  %3112 = vmatpush2.bf16.msra.mxu0 0
  %3113 = vmatprep.subr.bf16.mxu0 0
  %3114 = vmatpush2.bf16.msra.mxu0 0
  %3115 = vmatprep.subr.bf16.mxu0 0
  %3116 = vmatpush2.bf16.msra.mxu0 0
  %3117 = vmatprep.subr.bf16.mxu0 0
  %3118 = vmatpush2.bf16.msra.mxu0 0
  %3119 = vmatprep.mubr.bf16.mxu0 0
  %3120 = vmatmul.mubr.bf16.gmra.mxu0 %v3023
  %v3121 = vpop.f32.mrf.mxu0
  %v3122 = vadd.f32 0.0, %v3121
  %v3123 = vpop.f32.mrf.mxu0
  %v3124 = vpop.f32.mrf.mxu0
  %v3125 = vadd.f32 0.0, %v3124
  %v3126 = vpop.f32.mrf.mxu0
  %3127 = vmatprep.mubr.bf16.mxu0 0
  %3128 = vmatmul.mubr.bf16.gmra.mxu0 %v3024
  %v3129 = vpop.f32.mrf.mxu0
  %v3130 = vadd.f32 0.0, %v3129
  %v3131 = vpop.f32.mrf.mxu0
  %v3132 = vpop.f32.mrf.mxu0
  %v3133 = vadd.f32 0.0, %v3132
  %v3134 = vpop.f32.mrf.mxu0
  %3135 = vmatprep.mubr.bf16.mxu0 0
  %3136 = vmatmul.mubr.bf16.gmra.mxu0 %v3025
  %v3137 = vpop.f32.mrf.mxu0
  %v3138 = vadd.f32 0.0, %v3137
  %v3139 = vpop.f32.mrf.mxu0
  %v3140 = vpop.f32.mrf.mxu0
  %v3141 = vadd.f32 0.0, %v3140
  %v3142 = vpop.f32.mrf.mxu0
  %3143 = vmatprep.mubr.bf16.mxu0 0
  %3144 = vmatmul.mubr.bf16.gmra.mxu0 %v3026
  %v3145 = vpop.f32.mrf.mxu0
  %v3146 = vadd.f32 0.0, %v3145
  %v3147 = vpop.f32.mrf.mxu0
  %v3148 = vpop.f32.mrf.mxu0
  %v3149 = vadd.f32 0.0, %v3148
  %v3150 = vpop.f32.mrf.mxu0
  %3151 = vmatprep.mubr.bf16.mxu0 0
  %3152 = vmatmul.mubr.bf16.gmra.mxu0 %v3027
  %v3153 = vpop.f32.mrf.mxu0
  %v3154 = vadd.f32 0.0, %v3153
  %v3155 = vpop.f32.mrf.mxu0
  %v3156 = vpop.f32.mrf.mxu0
  %v3157 = vadd.f32 0.0, %v3156
  %v3158 = vpop.f32.mrf.mxu0
  %3159 = vmatprep.mubr.bf16.mxu0 0
  %3160 = vmatmul.mubr.bf16.gmra.mxu0 %v3028
  %v3161 = vpop.f32.mrf.mxu0
  %v3162 = vadd.f32 0.0, %v3161
  %v3163 = vpop.f32.mrf.mxu0
  %v3164 = vpop.f32.mrf.mxu0
  %v3165 = vadd.f32 0.0, %v3164
  %v3166 = vpop.f32.mrf.mxu0
  %3167 = vmatprep.mubr.bf16.mxu0 0
  %3168 = vmatmul.mubr.bf16.gmra.mxu0 %v3029
  %v3169 = vpop.f32.mrf.mxu0
  %v3170 = vadd.f32 0.0, %v3169
  %v3171 = vpop.f32.mrf.mxu0
  %v3172 = vpop.f32.mrf.mxu0
  %v3173 = vadd.f32 0.0, %v3172
  %v3174 = vpop.f32.mrf.mxu0
  %3175 = vmatprep.mubr.bf16.mxu0 0
  %3176 = vmatmul.mubr.bf16.gmra.mxu0 %v3030
  %v3177 = vpop.f32.mrf.mxu0
  %v3178 = vadd.f32 0.0, %v3177
  %v3179 = vpop.f32.mrf.mxu0
  %v3180 = vpop.f32.mrf.mxu0
  %v3181 = vadd.f32 0.0, %v3180
  %v3182 = vpop.f32.mrf.mxu0
  %3183 = vdwg.mxu0
  %v3184 = vadd.f32 %v2718, %v3122
  %v3185 = vadd.f32 %v2719, %v3125
  %v3186 = vadd.f32 %v2720, %v3130
  %v3187 = vadd.f32 %v2721, %v3133
  %v3188 = vadd.f32 %v2722, %v3138
  %v3189 = vadd.f32 %v2723, %v3141
  %v3190 = vadd.f32 %v2724, %v3146
  %v3191 = vadd.f32 %v2725, %v3149
  %v3192 = vadd.f32 %v2726, %v3154
  %v3193 = vadd.f32 %v2727, %v3157
  %v3194 = vadd.f32 %v2728, %v3162
  %v3195 = vadd.f32 %v2729, %v3165
  %v3196 = vadd.f32 %v2730, %v3170
  %v3197 = vadd.f32 %v2731, %v3173
  %v3198 = vadd.f32 %v2732, %v3178
  %v3199 = vadd.f32 %v2733, %v3181
  %v3200 = vld [vmem:[%s2491] sm:$0xe]
  %v3201 = vld [vmem:[%s2491 + $0x8] sm:$0xe]
  %v3202 = vld [vmem:[%s2491 + $0x10] sm:$0xe]
  %v3203 = vld [vmem:[%s2491 + $0x18] sm:$0xe]
  %v3204 = vld [vmem:[%s2491 + $0x20] sm:$0xe]
  %v3205 = vld [vmem:[%s2491 + $0x28] sm:$0xe]
  %v3206 = vld [vmem:[%s2491 + $0x30] sm:$0xe]
  %v3207 = vld [vmem:[%s2491 + $0x38] sm:$0xe]
  %v3208 = vld [vmem:[%s2491 + $0x50] sm:$0xe]
  %v3209 = vld [vmem:[%s2491 + $0x58] sm:$0xe]
  %v3210 = vld [vmem:[%s2491 + $0x60] sm:$0xe]
  %v3211 = vld [vmem:[%s2491 + $0x68] sm:$0xe]
  %v3212 = vld [vmem:[%s2491 + $0x70] sm:$0xe]
  %v3213 = vld [vmem:[%s2491 + $0x78] sm:$0xe]
  %v3214 = vld [vmem:[%s2491 + $0x80] sm:$0xe]
  %v3215 = vld [vmem:[%s2491 + $0x88] sm:$0xe]
  %v3248 = vrot.slane %v3200, 5
  %v3249 = vrot.slane %v3248, 4
  %v3250 = vrot.slane %v2735, 5
  %v3251 = vsel %vm1186, %v3249, %v3250
  %v3252 = vrot.slane %v3201, 5
  %v3253 = vrot.slane %v3252, 4
  %v3254 = vrot.slane %v2737, 5
  %v3255 = vsel %vm1186, %v3253, %v3254
  %v3256 = vrot.slane %v3202, 5
  %v3257 = vrot.slane %v3256, 4
  %v3258 = vrot.slane %v2739, 5
  %v3259 = vsel %vm1186, %v3257, %v3258
  %v3260 = vrot.slane %v3203, 5
  %v3261 = vrot.slane %v3260, 4
  %v3262 = vrot.slane %v2741, 5
  %v3263 = vsel %vm1186, %v3261, %v3262
  %v3264 = vrot.slane %v3204, 5
  %v3265 = vrot.slane %v3264, 4
  %v3266 = vrot.slane %v2743, 5
  %v3267 = vsel %vm1186, %v3265, %v3266
  %v3268 = vrot.slane %v3205, 5
  %v3269 = vrot.slane %v3268, 4
  %v3270 = vrot.slane %v2745, 5
  %v3271 = vsel %vm1186, %v3269, %v3270
  %v3272 = vrot.slane %v3206, 5
  %v3273 = vrot.slane %v3272, 4
  %v3274 = vrot.slane %v2747, 5
  %v3275 = vsel %vm1186, %v3273, %v3274
  %v3276 = vrot.slane %v3207, 5
  %v3277 = vrot.slane %v3276, 4
  %v3278 = vrot.slane %v2749, 5
  %v3279 = vsel %vm1186, %v3277, %v3278
  %v3280 = vrot.slane %v3208, 5
  %v3281 = vrot.slane %v3280, 4
  %v3282 = vrot.slane %v2751, 5
  %v3283 = vsel %vm1186, %v3281, %v3282
  %v3284 = vrot.slane %v3209, 5
  %v3285 = vrot.slane %v3284, 4
  %v3286 = vrot.slane %v2753, 5
  %v3287 = vsel %vm1186, %v3285, %v3286
  %v3288 = vrot.slane %v3210, 5
  %v3289 = vrot.slane %v3288, 4
  %v3290 = vrot.slane %v2755, 5
  %v3291 = vsel %vm1186, %v3289, %v3290
  %v3292 = vrot.slane %v3211, 5
  %v3293 = vrot.slane %v3292, 4
  %v3294 = vrot.slane %v2757, 5
  %v3295 = vsel %vm1186, %v3293, %v3294
  %v3296 = vrot.slane %v3212, 5
  %v3297 = vrot.slane %v3296, 4
  %v3298 = vrot.slane %v2759, 5
  %v3299 = vsel %vm1186, %v3297, %v3298
  %v3300 = vrot.slane %v3213, 5
  %v3301 = vrot.slane %v3300, 4
  %v3302 = vrot.slane %v2761, 5
  %v3303 = vsel %vm1186, %v3301, %v3302
  %v3304 = vrot.slane %v3214, 5
  %v3305 = vrot.slane %v3304, 4
  %v3306 = vrot.slane %v2763, 5
  %v3307 = vsel %vm1186, %v3305, %v3306
  %v3308 = vrot.slane %v3215, 5
  %v3309 = vrot.slane %v3308, 4
  %v3310 = vrot.slane %v2765, 5
  %v3311 = vsel %vm1186, %v3309, %v3310
  %s3312 = scalar_lea.vmem %s1, 512
  %v3313 = vld [vmem:[%s3312] sm:$0xf]
  %v3314 = vld [vmem:[%s3312 + $0x4] sm:$0xf]
  %v3315 = vld [vmem:[%s3312 + $0x8] sm:$0xf]
  %v3316 = vld [vmem:[%s3312 + $0xc] sm:$0xf]
  %v3317 = vld [vmem:[%s3312 + $0x10] sm:$0xf]
  %v3318 = vld [vmem:[%s3312 + $0x14] sm:$0xf]
  %v3319 = vld [vmem:[%s3312 + $0x18] sm:$0xf]
  %v3320 = vld [vmem:[%s3312 + $0x1c] sm:$0xf]
  %v3321 = vld [vmem:[%s3312 + $0x20] sm:$0xf]
  %v3322 = vld [vmem:[%s3312 + $0x24] sm:$0xf]
  %v3323 = vld [vmem:[%s3312 + $0x28] sm:$0xf]
  %v3324 = vld [vmem:[%s3312 + $0x2c] sm:$0xf]
  %v3325 = vld [vmem:[%s3312 + $0x30] sm:$0xf]
  %v3326 = vld [vmem:[%s3312 + $0x34] sm:$0xf]
  %v3327 = vld [vmem:[%s3312 + $0x38] sm:$0xf]
  %v3328 = vld [vmem:[%s3312 + $0x3c] sm:$0xf]
  %v3329 = vunpack.c.l.b16 %v3251
  %v3330 = vunpack.c.l.b16 %v3255
  %v3331 = vunpack.c.l.b16 %v3259
  %v3332 = vunpack.c.l.b16 %v3263
  %v3333 = vunpack.c.l.b16 %v3267
  %v3334 = vunpack.c.l.b16 %v3271
  %v3335 = vunpack.c.l.b16 %v3275
  %v3336 = vunpack.c.l.b16 %v3279
  %v3337 = vunpack.c.l.b16 %v3283
  %v3338 = vunpack.c.l.b16 %v3287
  %v3339 = vunpack.c.l.b16 %v3291
  %v3340 = vunpack.c.l.b16 %v3295
  %v3341 = vunpack.c.l.b16 %v3299
  %v3342 = vunpack.c.l.b16 %v3303
  %v3343 = vunpack.c.l.b16 %v3307
  %v3344 = vunpack.c.l.b16 %v3311
  %v3345 = vpack.c.b16 %v3330, %v3329
  %v3346 = vpack.c.b16 %v3332, %v3331
  %v3347 = vpack.c.b16 %v3334, %v3333
  %v3348 = vpack.c.b16 %v3336, %v3335
  %v3349 = vpack.c.b16 %v3338, %v3337
  %v3350 = vpack.c.b16 %v3340, %v3339
  %v3351 = vpack.c.b16 %v3342, %v3341
  %v3352 = vpack.c.b16 %v3344, %v3343
  %v3377 = vunpack.c.l.b16 %v3313
  %v3378 = vunpack.c.l.b16 %v3314
  %v3379 = vunpack.c.l.b16 %v3315
  %v3380 = vunpack.c.l.b16 %v3316
  %v3381 = vunpack.c.l.b16 %v3317
  %v3382 = vunpack.c.l.b16 %v3318
  %v3383 = vunpack.c.l.b16 %v3319
  %v3384 = vunpack.c.l.b16 %v3320
  %v3385 = vunpack.c.l.b16 %v3321
  %v3386 = vunpack.c.l.b16 %v3322
  %v3387 = vunpack.c.l.b16 %v3323
  %v3388 = vunpack.c.l.b16 %v3324
  %v3389 = vunpack.c.l.b16 %v3325
  %v3390 = vunpack.c.l.b16 %v3326
  %v3391 = vunpack.c.l.b16 %v3327
  %v3392 = vunpack.c.l.b16 %v3328
  %v3393 = vpack.c.b16 %v3378, %v3377
  %v3394 = vpack.c.b16 %v3380, %v3379
  %v3395 = vpack.c.b16 %v3382, %v3381
  %v3396 = vpack.c.b16 %v3384, %v3383
  %v3397 = vpack.c.b16 %v3386, %v3385
  %v3398 = vpack.c.b16 %v3388, %v3387
  %v3399 = vpack.c.b16 %v3390, %v3389
  %v3400 = vpack.c.b16 %v3392, %v3391
  %3409 = vmatprep.subr.bf16.mxu0 0
  %3410 = vmatpush1.bf16.msra.mxu0 %v3400
  %3411 = vmatprep.subr.bf16.mxu0 0
  %3412 = vmatpush1.bf16.msra.mxu0 %v3399
  %3413 = vmatprep.subr.bf16.mxu0 0
  %3414 = vmatpush1.bf16.msra.mxu0 %v3398
  %3415 = vmatprep.subr.bf16.mxu0 0
  %3416 = vmatpush1.bf16.msra.mxu0 %v3397
  %3417 = vmatprep.subr.bf16.mxu0 0
  %3418 = vmatpush1.bf16.msra.mxu0 %v3396
  %3419 = vmatprep.subr.bf16.mxu0 0
  %3420 = vmatpush1.bf16.msra.mxu0 %v3395
  %3421 = vmatprep.subr.bf16.mxu0 0
  %3422 = vmatpush1.bf16.msra.mxu0 %v3394
  %3423 = vmatprep.subr.bf16.mxu0 0
  %3424 = vmatpush1.bf16.msra.mxu0 %v3393
  %3425 = vmatprep.subr.bf16.mxu0 0
  %3426 = vmatpush2.bf16.msra.mxu0 0
  %3427 = vmatprep.subr.bf16.mxu0 0
  %3428 = vmatpush2.bf16.msra.mxu0 0
  %3429 = vmatprep.subr.bf16.mxu0 0
  %3430 = vmatpush2.bf16.msra.mxu0 0
  %3431 = vmatprep.subr.bf16.mxu0 0
  %3432 = vmatpush2.bf16.msra.mxu0 0
  %3433 = vmatprep.subr.bf16.mxu0 0
  %3434 = vmatpush2.bf16.msra.mxu0 0
  %3435 = vmatprep.subr.bf16.mxu0 0
  %3436 = vmatpush2.bf16.msra.mxu0 0
  %3437 = vmatprep.subr.bf16.mxu0 0
  %3438 = vmatpush2.bf16.msra.mxu0 0
  %3439 = vmatprep.subr.bf16.mxu0 0
  %3440 = vmatpush2.bf16.msra.mxu0 0
  %3441 = vmatprep.mubr.bf16.mxu0 0
  %3442 = vmatmul.mubr.bf16.gmra.mxu0 %v3345
  %v3443 = vpop.f32.mrf.mxu0
  %v3444 = vadd.f32 0.0, %v3443
  %v3445 = vpop.f32.mrf.mxu0
  %v3446 = vpop.f32.mrf.mxu0
  %v3447 = vadd.f32 0.0, %v3446
  %v3448 = vpop.f32.mrf.mxu0
  %3449 = vmatprep.mubr.bf16.mxu0 0
  %3450 = vmatmul.mubr.bf16.gmra.mxu0 %v3346
  %v3451 = vpop.f32.mrf.mxu0
  %v3452 = vadd.f32 0.0, %v3451
  %v3453 = vpop.f32.mrf.mxu0
  %v3454 = vpop.f32.mrf.mxu0
  %v3455 = vadd.f32 0.0, %v3454
  %v3456 = vpop.f32.mrf.mxu0
  %3457 = vmatprep.mubr.bf16.mxu0 0
  %3458 = vmatmul.mubr.bf16.gmra.mxu0 %v3347
  %v3459 = vpop.f32.mrf.mxu0
  %v3460 = vadd.f32 0.0, %v3459
  %v3461 = vpop.f32.mrf.mxu0
  %v3462 = vpop.f32.mrf.mxu0
  %v3463 = vadd.f32 0.0, %v3462
  %v3464 = vpop.f32.mrf.mxu0
  %3465 = vmatprep.mubr.bf16.mxu0 0
  %3466 = vmatmul.mubr.bf16.gmra.mxu0 %v3348
  %v3467 = vpop.f32.mrf.mxu0
  %v3468 = vadd.f32 0.0, %v3467
  %v3469 = vpop.f32.mrf.mxu0
  %v3470 = vpop.f32.mrf.mxu0
  %v3471 = vadd.f32 0.0, %v3470
  %v3472 = vpop.f32.mrf.mxu0
  %3473 = vmatprep.mubr.bf16.mxu0 0
  %3474 = vmatmul.mubr.bf16.gmra.mxu0 %v3349
  %v3475 = vpop.f32.mrf.mxu0
  %v3476 = vadd.f32 0.0, %v3475
  %v3477 = vpop.f32.mrf.mxu0
  %v3478 = vpop.f32.mrf.mxu0
  %v3479 = vadd.f32 0.0, %v3478
  %v3480 = vpop.f32.mrf.mxu0
  %3481 = vmatprep.mubr.bf16.mxu0 0
  %3482 = vmatmul.mubr.bf16.gmra.mxu0 %v3350
  %v3483 = vpop.f32.mrf.mxu0
  %v3484 = vadd.f32 0.0, %v3483
  %v3485 = vpop.f32.mrf.mxu0
  %v3486 = vpop.f32.mrf.mxu0
  %v3487 = vadd.f32 0.0, %v3486
  %v3488 = vpop.f32.mrf.mxu0
  %3489 = vmatprep.mubr.bf16.mxu0 0
  %3490 = vmatmul.mubr.bf16.gmra.mxu0 %v3351
  %v3491 = vpop.f32.mrf.mxu0
  %v3492 = vadd.f32 0.0, %v3491
  %v3493 = vpop.f32.mrf.mxu0
  %v3494 = vpop.f32.mrf.mxu0
  %v3495 = vadd.f32 0.0, %v3494
  %v3496 = vpop.f32.mrf.mxu0
  %3497 = vmatprep.mubr.bf16.mxu0 0
  %3498 = vmatmul.mubr.bf16.gmra.mxu0 %v3352
  %v3499 = vpop.f32.mrf.mxu0
  %v3500 = vadd.f32 0.0, %v3499
  %v3501 = vpop.f32.mrf.mxu0
  %v3502 = vpop.f32.mrf.mxu0
  %v3503 = vadd.f32 0.0, %v3502
  %v3504 = vpop.f32.mrf.mxu0
  %3505 = vdwg.mxu0
  %v3506 = vadd.f32 %v3184, %v3444
  %v3507 = vadd.f32 %v3185, %v3447
  %v3508 = vadd.f32 %v3186, %v3452
  %v3509 = vadd.f32 %v3187, %v3455
  %v3510 = vadd.f32 %v3188, %v3460
  %v3511 = vadd.f32 %v3189, %v3463
  %v3512 = vadd.f32 %v3190, %v3468
  %v3513 = vadd.f32 %v3191, %v3471
  %v3514 = vadd.f32 %v3192, %v3476
  %v3515 = vadd.f32 %v3193, %v3479
  %v3516 = vadd.f32 %v3194, %v3484
  %v3517 = vadd.f32 %v3195, %v3487
  %v3518 = vadd.f32 %v3196, %v3492
  %v3519 = vadd.f32 %v3197, %v3495
  %v3520 = vadd.f32 %v3198, %v3500
  %v3521 = vadd.f32 %v3199, %v3503
  %v3522 = vld [vmem:[%s2 + $0x2] sm:$0x1]
  %v3523 = vlaneseq
  %v3524 = vshrl.u32 %v3523, 7
  %v3525 = vsub.s32 0, %v3524
  %v3526 = vrot.slane %v3522, %v3525
  %v3527 = vadd.f32 %v3506, %v3526
  %v3528 = vadd.f32 %v3507, %v3526
  %v3529 = vadd.f32 %v3508, %v3526
  %v3530 = vadd.f32 %v3509, %v3526
  %v3531 = vadd.f32 %v3510, %v3526
  %v3532 = vadd.f32 %v3511, %v3526
  %v3533 = vadd.f32 %v3512, %v3526
  %v3534 = vadd.f32 %v3513, %v3526
  %v3535 = vadd.f32 %v3514, %v3526
  %v3536 = vadd.f32 %v3515, %v3526
  %v3537 = vadd.f32 %v3516, %v3526
  %v3538 = vadd.f32 %v3517, %v3526
  %v3539 = vadd.f32 %v3518, %v3526
  %v3540 = vadd.f32 %v3519, %v3526
  %v3541 = vadd.f32 %v3520, %v3526
  %v3542 = vadd.f32 %v3521, %v3526
  %v3543 = vpack.c.bf16 %v3528, %v3527
  %v3544 = vpack.c.bf16 %v3530, %v3529
  %v3545 = vpack.c.bf16 %v3532, %v3531
  %v3546 = vpack.c.bf16 %v3534, %v3533
  %v3547 = vpack.c.bf16 %v3536, %v3535
  %v3548 = vpack.c.bf16 %v3538, %v3537
  %v3549 = vpack.c.bf16 %v3540, %v3539
  %v3550 = vpack.c.bf16 %v3542, %v3541
  %v3559 = vunpack.c.l.b16 %v3543
  %v3560 = vunpack.c.h.b16 %v3543
  %v3561 = vunpack.c.l.b16 %v3544
  %v3562 = vunpack.c.h.b16 %v3544
  %v3563 = vunpack.c.l.b16 %v3545
  %v3564 = vunpack.c.h.b16 %v3545
  %v3565 = vunpack.c.l.b16 %v3546
  %v3566 = vunpack.c.h.b16 %v3546
  %v3567 = vunpack.c.l.b16 %v3547
  %v3568 = vunpack.c.h.b16 %v3547
  %v3569 = vunpack.c.l.b16 %v3548
  %v3570 = vunpack.c.h.b16 %v3548
  %v3571 = vunpack.c.l.b16 %v3549
  %v3572 = vunpack.c.h.b16 %v3549
  %v3573 = vunpack.c.l.b16 %v3550
  %v3574 = vunpack.c.h.b16 %v3550
  %v3575 = vpack.c.b16 %v3559, %v3559
  %v3576 = vpack.c.b16 %v3560, %v3560
  %v3577 = vpack.c.b16 %v3561, %v3561
  %v3578 = vpack.c.b16 %v3562, %v3562
  %v3579 = vpack.c.b16 %v3563, %v3563
  %v3580 = vpack.c.b16 %v3564, %v3564
  %v3581 = vpack.c.b16 %v3565, %v3565
  %v3582 = vpack.c.b16 %v3566, %v3566
  %v3583 = vpack.c.b16 %v3567, %v3567
  %v3584 = vpack.c.b16 %v3568, %v3568
  %v3585 = vpack.c.b16 %v3569, %v3569
  %v3586 = vpack.c.b16 %v3570, %v3570
  %v3587 = vpack.c.b16 %v3571, %v3571
  %v3588 = vpack.c.b16 %v3572, %v3572
  %v3589 = vpack.c.b16 %v3573, %v3573
  %v3590 = vpack.c.b16 %v3574, %v3574
  %3607 = vst [vmem:[%s3] sm:$0xf] %v3575
  %3608 = vst [vmem:[%s3 + $0x4] sm:$0xf] %v3576
  %3609 = vst [vmem:[%s3 + $0x8] sm:$0xf] %v3577
  %3610 = vst [vmem:[%s3 + $0xc] sm:$0xf] %v3578
  %3611 = vst [vmem:[%s3 + $0x10] sm:$0xf] %v3579
  %3612 = vst [vmem:[%s3 + $0x14] sm:$0xf] %v3580
  %3613 = vst [vmem:[%s3 + $0x18] sm:$0xf] %v3581
  %3614 = vst [vmem:[%s3 + $0x1c] sm:$0xf] %v3582
  %3615 = vst [vmem:[%s3 + $0x20] sm:$0xf] %v3583
  %3616 = vst [vmem:[%s3 + $0x24] sm:$0xf] %v3584
  %3617 = vst [vmem:[%s3 + $0x28] sm:$0xf] %v3585
  %3618 = vst [vmem:[%s3 + $0x2c] sm:$0xf] %v3586
  %3619 = vst [vmem:[%s3 + $0x30] sm:$0xf] %v3587
  %3620 = vst [vmem:[%s3 + $0x34] sm:$0xf] %v3588
  %3621 = vst [vmem:[%s3 + $0x38] sm:$0xf] %v3589
  %3622 = vst [vmem:[%s3 + $0x3c] sm:$0xf] %v3590
  %v3623 = vadd.f32 %v3527, %v3528
  %v3624 = vadd.f32 %v3623, %v3529
  %v3625 = vadd.f32 %v3624, %v3530
  %v3626 = vadd.f32 %v3625, %v3531
  %v3627 = vadd.f32 %v3626, %v3532
  %v3628 = vadd.f32 %v3627, %v3533
  %v3629 = vadd.f32 %v3628, %v3534
  %v3630 = vadd.f32 %v3629, %v3535
  %v3631 = vadd.f32 %v3630, %v3536
  %v3632 = vadd.f32 %v3631, %v3537
  %v3633 = vadd.f32 %v3632, %v3538
  %v3634 = vadd.f32 %v3633, %v3539
  %v3635 = vadd.f32 %v3634, %v3540
  %v3636 = vadd.f32 %v3635, %v3541
  %v3637 = vadd.f32 %v3636, %v3542
  %v3638 = vrot.slane %v3637, 4
  %v3639 = vadd.f32 %v3637, %v3638
  %v3640 = vrot.slane %v3639, 2
  %v3641 = vadd.f32 %v3639, %v3640
  %v3642 = vrot.slane %v3641, 1
  %v3643 = vadd.f32 %v3641, %v3642
  %3644 = vst [vmem:[%s4] sm:$0x1] %v3643
  %v3645 = vmul.f32 %v3527, %v3527
  %v3646 = vmul.f32 %v3528, %v3528
  %v3647 = vmul.f32 %v3529, %v3529
  %v3648 = vmul.f32 %v3530, %v3530
  %v3649 = vmul.f32 %v3531, %v3531
  %v3650 = vmul.f32 %v3532, %v3532
  %v3651 = vmul.f32 %v3533, %v3533
  %v3652 = vmul.f32 %v3534, %v3534
  %v3653 = vmul.f32 %v3535, %v3535
  %v3654 = vmul.f32 %v3536, %v3536
  %v3655 = vmul.f32 %v3537, %v3537
  %v3656 = vmul.f32 %v3538, %v3538
  %v3657 = vmul.f32 %v3539, %v3539
  %v3658 = vmul.f32 %v3540, %v3540
  %v3659 = vmul.f32 %v3541, %v3541
  %v3660 = vmul.f32 %v3542, %v3542
  %v3661 = vadd.f32 %v3645, %v3646
  %v3662 = vadd.f32 %v3661, %v3647
  %v3663 = vadd.f32 %v3662, %v3648
  %v3664 = vadd.f32 %v3663, %v3649
  %v3665 = vadd.f32 %v3664, %v3650
  %v3666 = vadd.f32 %v3665, %v3651
  %v3667 = vadd.f32 %v3666, %v3652
  %v3668 = vadd.f32 %v3667, %v3653
  %v3669 = vadd.f32 %v3668, %v3654
  %v3670 = vadd.f32 %v3669, %v3655
  %v3671 = vadd.f32 %v3670, %v3656
  %v3672 = vadd.f32 %v3671, %v3657
  %v3673 = vadd.f32 %v3672, %v3658
  %v3674 = vadd.f32 %v3673, %v3659
  %v3675 = vadd.f32 %v3674, %v3660
  %v3676 = vrot.slane %v3675, 4
  %v3677 = vadd.f32 %v3675, %v3676
  %v3678 = vrot.slane %v3677, 2
  %v3679 = vadd.f32 %v3677, %v3678
  %v3680 = vrot.slane %v3679, 1
  %v3681 = vadd.f32 %v3679, %v3680
  %3682 = vst [vmem:[%s4 + $0x1] sm:$0x1] %v3681
  // Predicated region
  $region14: #{residual_block_diff.4} parent=0 // pred_check
    _
  $region15: #{residual_block_diff.4} parent=0 // pred_check_branch
    %3684 = sbr.rel (0) target = $region17
  $region16: #{residual_block_diff.4} parent=0 // pred_region
    _
  $region17: #{residual_block_diff.4} parent=0 // pred_fallthru
    _
  // Predicated region
  $region18: #{residual_block_diff.4} parent=0 // pred_check
    _
  $region19: #{residual_block_diff.4} parent=0 // pred_check_branch
    %3686 = sbr.rel (0) target = $region21
  $region20: #{residual_block_diff.4} parent=0 // pred_region
    _
  $region21: #{residual_block_diff.4} parent=0 // pred_fallthru
    _
  // Predicated region
  $region22: #{residual_block_diff.4} parent=0 // pred_check
    _
  $region23: #{residual_block_diff.4} parent=0 // pred_check_branch
    %3688 = sbr.rel (0) target = $region25
  $region24: #{residual_block_diff.4} parent=0 // pred_region
    _
  $region25: #{residual_block_diff.4} parent=0 // pred_fallthru
    _
  // Predicated region
  $region26: #{residual_block_diff.4} parent=0 // pred_check
    _
  $region27: #{residual_block_diff.4} parent=0 // pred_check_branch
    %3690 = sbr.rel (0) target = $region29
  $region28: #{residual_block_diff.4} parent=0 // pred_region
    _
  $region29: #{residual_block_diff.4} parent=0 // pred_fallthru
    _

</llo_original>
